<compile_context>
chip_gen: v7x
topology: tpu7x:2x2x1
jax: 0.10.0
libtpu: 0.0.40
codegen_flags: <defaults>
</compile_context>

<pallas_src>
import functools
import math

import jax
import jax.numpy as jnp
from jax.experimental import pallas as pl
from jax.experimental.pallas import tpu as pltpu

_RGB_MEAN = jnp.array([0.4488, 0.4371, 0.404], jnp.float32)  # rgb_range = 1
_PARALLEL = pltpu.CompilerParams(dimension_semantics=("parallel",))
_HI = jax.lax.Precision.HIGHEST


def _dot(a, b):
    return jnp.dot(a, b, preferred_element_type=jnp.float32, precision=_HI)


# ----------------------------------------------------------------------------
# weight / mask preprocessing (plain JAX glue, negligible cost)
# ----------------------------------------------------------------------------
def _w9_t(w, groups):
    """torch (Cout, Cin//groups, 3, 3) -> tap-major (9, Cout, Cin) weight.

    Grouped convs are folded into a block-diagonal matrix per tap so each tap
    of the grouped conv is a single MXU matmul."""
    cout, cin_g = int(w.shape[0]), int(w.shape[1])
    wt = jnp.transpose(w, (2, 3, 0, 1)).reshape(9, cout, cin_g).astype(jnp.float32)
    if groups == 1:
        return wt
    cin = cin_g * groups
    cout_g = cout // groups
    out = jnp.zeros((9, cout, cin), jnp.float32)
    for g in range(groups):
        out = out.at[:, g * cout_g:(g + 1) * cout_g,
                     g * cin_g:(g + 1) * cin_g].set(wt[:, g * cout_g:(g + 1) * cout_g, :])
    return out


def _wmat(w):
    """torch (Cout, Cin, 1, 1) -> (Cout, Cin)."""
    return w.reshape(int(w.shape[0]), int(w.shape[1])).astype(jnp.float32)


def _bcol(b):
    return b.reshape(-1, 1).astype(jnp.float32)


def _col_masks(wd, m):
    """(2, 1, M) f32 masks [x>0, x<W-1] over the flat spatial index (M = H*W)."""
    xx = jnp.arange(m, dtype=jnp.int32) % wd
    left = xx >= 1
    right = xx <= wd - 2
    return jnp.stack([left, right]).astype(jnp.float32).reshape(2, 1, m)


def _full_spec(a):
    nd = a.ndim
    return pl.BlockSpec(tuple(a.shape), lambda i, _nd=nd: (0,) * _nd)


# ----------------------------------------------------------------------------
# in-kernel 3x3 conv (flat channels-first layout)
# ----------------------------------------------------------------------------
def _conv3x3_body(act, w9_ref, b_ref, xmask_ref, wd):
    """3x3 SAME conv of a flat channels-first activation.

    act: (Cin, M) with M = H*W (W = wd); w9_ref: (9, Cout, Cin) tap-major
    weights; b_ref: (Cout, 1); xmask_ref: (2, 1, M) edge-column masks.
    Returns (Cout, M) f32 (bias added, no relu)."""
    cin, m = act.shape
    zpad = jnp.zeros((cin, wd + 1), jnp.float32)
    xp = jnp.concatenate([zpad, act, zpad], axis=1)  # (Cin, M + 2W + 2)
    acc = None
    for t in range(9):
        dy, dx = divmod(t, 3)
        s = dy * wd + dx  # == (W+1) + ((dy-1)*W + (dx-1))
        tap = xp[:, s:s + m]
        if dx == 0:       # reads column x-1 -> zero it at x == 0
            tap = tap * xmask_ref[0]
        elif dx == 2:     # reads column x+1 -> zero it at x == W-1
            tap = tap * xmask_ref[1]
        d = _dot(w9_ref[t], tap)
        acc = d if acc is None else acc + d
    return acc + b_ref[...]


# ----------------------------------------------------------------------------
# Pallas kernels
# ----------------------------------------------------------------------------
def _conv3x3_kernel(x_ref, w_ref, b_ref, m_ref, o_ref, *, wd, relu):
    y = _conv3x3_body(x_ref[0], w_ref, b_ref, m_ref, wd)
    if relu:
        y = jnp.maximum(y, 0.0)
    o_ref[0] = y.astype(o_ref.dtype)


def _stage_kernel(*refs, n_prev, has_entry, wd):
    """Fused CARN stage: [entry conv +] Block_i + top-level cascade 1x1 conv.

    All intermediates stay in VMEM; the three EResidualBlocks inside the Block
    share weights (matching the PyTorch module)."""
    i = 0
    if has_entry:
        img_ref, ew_ref, eb_ref = refs[0], refs[1], refs[2]
        i = 3
    else:
        xin_ref = refs[0]
        i = 1
    prev_refs = refs[i:i + n_prev]
    i += n_prev
    mask_ref = refs[i]
    i += 1
    (e1w, e1b, e2w, e2b, e3w, e3b,
     c1w, c1b, c2w, c2b, c3w, c3b, tw, tb) = refs[i:i + 14]
    i += 14
    outs = refs[i:]

    def g3(act, w9, b):  # grouped 3x3 conv + relu
        return jnp.maximum(_conv3x3_body(act, w9, b, mask_ref, wd), 0.0)

    def eres(act):       # shared-weight EResidualBlock
        h = g3(act, e1w, e1b)
        h = g3(h, e2w, e2b)
        h = _dot(e3w[...], h) + e3b[...]
        return jnp.maximum(h + act, 0.0)

    def cat1x1(parts, wref, bref):  # relu(1x1 conv(concat(parts))), K-split
        acc = None
        off = 0
        for p in parts:
            c = p.shape[0]
            d = _dot(wref[:, off:off + c], p)
            acc = d if acc is None else acc + d
            off += c
        return jnp.maximum(acc + bref[...], 0.0)

    if has_entry:
        blk_in = _conv3x3_body(img_ref[0], ew_ref, eb_ref, mask_ref, wd)  # entry: no relu
    else:
        blk_in = xin_ref[0]

    # CARN Block (intra-block cascade)
    b1 = eres(blk_in)
    o1 = cat1x1([blk_in, b1], c1w, c1b)
    b2 = eres(o1)
    o2 = cat1x1([blk_in, b1, b2], c2w, c2b)
    b3 = eres(o2)
    b_new = cat1x1([blk_in, b1, b2, b3], c3w, c3b)  # Block output

    # top-level cascade conv
    if n_prev == 0:
        top_parts = [blk_in, b_new]
    else:
        top_parts = [r[0] for r in prev_refs] + [b_new]
    o_new = cat1x1(top_parts, tw, tb)

    if has_entry:
        outs[0][0] = blk_in.astype(outs[0].dtype)  # c0
        outs[1][0] = b_new.astype(outs[1].dtype)
        outs[2][0] = o_new.astype(outs[2].dtype)
    else:
        outs[0][0] = b_new.astype(outs[0].dtype)
        outs[1][0] = o_new.astype(outs[1].dtype)


# ----------------------------------------------------------------------------
# pallas_call wrappers
# ----------------------------------------------------------------------------
def conv3x3(x, w, b, masks, *, wd, groups=1, relu=False):
    """x: (N, Cin, H*W) flat channels-first; w: torch (Cout, Cin//groups, 3, 3)."""
    n, cin, m = x.shape
    cout = int(w.shape[0])
    w9 = _w9_t(w, groups)
    bb = _bcol(b)
    return pl.pallas_call(
        functools.partial(_conv3x3_kernel, wd=wd, relu=relu),
        out_shape=jax.ShapeDtypeStruct((n, cout, m), jnp.float32),
        grid=(n,),
        in_specs=[pl.BlockSpec((1, cin, m), lambda i: (i, 0, 0)),
                  _full_spec(w9), _full_spec(bb), _full_spec(masks)],
        out_specs=pl.BlockSpec((1, cout, m), lambda i: (i, 0, 0)),
        compiler_params=_PARALLEL,
    )(x, w9, bb, masks)


def block_stage(x, prev, masks, bp, top_w, top_b, *, group, wd, entry=None):
    """One fused CARN stage (grid over batch).

    x    : (N, Cin, M) block input (raw image if `entry` is given, else o_{i-1})
    prev : earlier cascade tensors [c0, b1, ...], each (N, nf, M)
    Returns (c0, b_i, o_i) for the entry stage, else (b_i, o_i)."""
    n, cin, m = x.shape
    nf = int(bp['e3']['w'].shape[0])

    args = [x]
    in_specs = [pl.BlockSpec((1, cin, m), lambda i: (i, 0, 0))]
    if entry is not None:
        ew, eb = _w9_t(entry['w'], 1), _bcol(entry['b'])
        args += [ew, eb]
        in_specs += [_full_spec(ew), _full_spec(eb)]
    for p in prev:
        args.append(p)
        in_specs.append(pl.BlockSpec((1, nf, m), lambda i: (i, 0, 0)))
    tail = [masks,
            _w9_t(bp['e1']['w'], group), _bcol(bp['e1']['b']),
            _w9_t(bp['e2']['w'], group), _bcol(bp['e2']['b']),
            _wmat(bp['e3']['w']), _bcol(bp['e3']['b']),
            _wmat(bp['c1']['w']), _bcol(bp['c1']['b']),
            _wmat(bp['c2']['w']), _bcol(bp['c2']['b']),
            _wmat(bp['c3']['w']), _bcol(bp['c3']['b']),
            _wmat(top_w), _bcol(top_b)]
    for a in tail:
        args.append(a)
        in_specs.append(_full_spec(a))

    n_out = 3 if entry is not None else 2
    out_shape = tuple(jax.ShapeDtypeStruct((n, nf, m), jnp.float32) for _ in range(n_out))
    out_specs = tuple(pl.BlockSpec((1, nf, m), lambda i: (i, 0, 0)) for _ in range(n_out))

    return pl.pallas_call(
        functools.partial(_stage_kernel, n_prev=len(prev),
                          has_entry=entry is not None, wd=wd),
        out_shape=out_shape,
        grid=(n,),
        in_specs=in_specs,
        out_specs=out_specs,
        compiler_params=_PARALLEL,
    )(*args)


def _pixel_shuffle_flat(x, r, h, w):
    """torch.nn.PixelShuffle on the flat channels-first layout (XLA relayout)."""
    n, c4, _ = x.shape
    c = c4 // (r * r)
    x = x.reshape(n, c, r, r, h, w)
    x = jnp.transpose(x, (0, 1, 4, 2, 5, 3))
    return x.reshape(n, c, h * r * w * r)


# ----------------------------------------------------------------------------
# US_CARN_M forward
# ----------------------------------------------------------------------------
def us_carn_m_forward(x_nchw, params, *, group=4):
    n, cin, h, w = x_nchw.shape
    # NCHW -> (N, C, H*W) is a free reshape; sub_mean fuses into it in XLA.
    x = x_nchw.reshape(n, cin, h * w).astype(jnp.float32) - _RGB_MEAN.reshape(1, cin, 1)
    cmask = _col_masks(w, h * w)

    c0, b1, o1 = block_stage(x, [], cmask, params['b1'],
                             params['c1']['w'], params['c1']['b'],
                             group=group, wd=w, entry=params['entry'])
    b2, o2 = block_stage(o1, [c0, b1], cmask, params['b2'],
                         params['c2']['w'], params['c2']['b'], group=group, wd=w)
    _b3, o3 = block_stage(o2, [c0, b1, b2], cmask, params['b3'],
                          params['c3']['w'], params['c3']['b'], group=group, wd=w)

    out, hh, ww = o3, h, w
    for up in params['up']:  # x2 pixel-shuffle stages
        cm = cmask if (hh, ww) == (h, w) else _col_masks(ww, hh * ww)
        out = conv3x3(out, up['w'], up['b'], cm, wd=ww, groups=group, relu=True)
        out = _pixel_shuffle_flat(out, 2, hh, ww)
        hh, ww = hh * 2, ww * 2

    # exit conv, add_mean folded into its bias (exact: add_mean is bias-only here)
    out = conv3x3(out, params['exit']['w'], params['exit']['b'] + _RGB_MEAN,
                  _col_masks(ww, hh * ww), wd=ww, relu=False)
    out_nc = int(params['exit']['w'].shape[0])
    return out.reshape(n, out_nc, hh, ww)  # already NCHW -> free reshape


# ----------------------------------------------------------------------------
# Deterministic parameter initialization (shapes follow the module __init__)
# ----------------------------------------------------------------------------
def _conv_params(key, cout, cin_per_group, k):
    kw, kb = jax.random.split(key)
    fan_in = cin_per_group * k * k
    w = jax.random.normal(kw, (cout, cin_per_group, k, k), jnp.float32) / jnp.sqrt(float(fan_in))
    b = jax.random.normal(kb, (cout,), jnp.float32) * 0.01
    return {'w': w, 'b': b}


def init_params(key, in_nc=3, out_nc=3, nf=16, group=4, scale=4):
    keys = iter(jax.random.split(key, 64))
    p = {'entry': _conv_params(next(keys), nf, in_nc, 3)}

    def block_params():
        return {
            'e1': _conv_params(next(keys), nf, nf // group, 3),
            'e2': _conv_params(next(keys), nf, nf // group, 3),
            'e3': _conv_params(next(keys), nf, nf, 1),
            'c1': _conv_params(next(keys), nf, 2 * nf, 1),
            'c2': _conv_params(next(keys), nf, 3 * nf, 1),
            'c3': _conv_params(next(keys), nf, 4 * nf, 1),
        }

    p['b1'] = block_params()
    p['b2'] = block_params()
    p['b3'] = block_params()
    p['c1'] = _conv_params(next(keys), nf, 2 * nf, 1)
    p['c2'] = _conv_params(next(keys), nf, 3 * nf, 1)
    p['c3'] = _conv_params(next(keys), nf, 4 * nf, 1)
    n_up = int(math.log(scale, 2))
    p['up'] = [_conv_params(next(keys), 4 * nf, nf // group, 3) for _ in range(n_up)]
    p['exit'] = _conv_params(next(keys), out_nc, nf, 3)
    return p


# ----------------------------------------------------------------------------
# Pure-JAX reference (lax.conv, HIGHEST precision) for correctness checks
# ----------------------------------------------------------------------------
def _ref_conv(x, w, b, *, groups=1, relu=False):
    whwio = jnp.transpose(w, (2, 3, 1, 0))
    y = jax.lax.conv_general_dilated(
        x, whwio, (1, 1), 'SAME',
        dimension_numbers=('NHWC', 'HWIO', 'NHWC'),
        feature_group_count=groups,
        precision=jax.lax.Precision.HIGHEST)
    y = y + b
    return jnp.maximum(y, 0.0) if relu else y


def _pixel_shuffle_nhwc(x, r):
    n, h, w, c = x.shape
    co = c // (r * r)
    x = x.reshape(n, h, w, co, r, r)
    x = jnp.transpose(x, (0, 1, 4, 2, 5, 3))
    return x.reshape(n, h * r, w * r, co)


def _ref_eres(x, bp, group):
    h = _ref_conv(x, bp['e1']['w'], bp['e1']['b'], groups=group, relu=True)
    h = _ref_conv(h, bp['e2']['w'], bp['e2']['b'], groups=group, relu=True)
    h = _ref_conv(h, bp['e3']['w'], bp['e3']['b'])
    return jnp.maximum(h + x, 0.0)


def _ref_block(x, bp, group):
    c0 = x
    b1 = _ref_eres(c0, bp, group)
    c1 = jnp.concatenate([c0, b1], -1)
    o1 = _ref_conv(c1, bp['c1']['w'], bp['c1']['b'], relu=True)
    b2 = _ref_eres(o1, bp, group)
    c2 = jnp.concatenate([c1, b2], -1)
    o2 = _ref_conv(c2, bp['c2']['w'], bp['c2']['b'], relu=True)
    b3 = _ref_eres(o2, bp, group)
    c3 = jnp.concatenate([c2, b3], -1)
    return _ref_conv(c3, bp['c3']['w'], bp['c3']['b'], relu=True)


def _ref_forward(x_nchw, params, *, group=4):
    x = jnp.transpose(x_nchw, (0, 2, 3, 1)) - _RGB_MEAN
    x = _ref_conv(x, params['entry']['w'], params['entry']['b'])
    c0 = x
    b1 = _ref_block(c0, params['b1'], group)
    c1 = jnp.concatenate([c0, b1], -1)
    o1 = _ref_conv(c1, params['c1']['w'], params['c1']['b'], relu=True)
    b2 = _ref_block(o1, params['b2'], group)
    c2 = jnp.concatenate([c1, b2], -1)
    o2 = _ref_conv(c2, params['c2']['w'], params['c2']['b'], relu=True)
    b3 = _ref_block(o2, params['b3'], group)
    c3 = jnp.concatenate([c2, b3], -1)
    o3 = _ref_conv(c3, params['c3']['w'], params['c3']['b'], relu=True)
    out = o3
    for up in params['up']:
        out = _ref_conv(out, up['w'], up['b'], groups=group, relu=True)
        out = _pixel_shuffle_nhwc(out, 2)
    out = _ref_conv(out, params['exit']['w'], params['exit']['b'])
    out = out + _RGB_MEAN
    return jnp.transpose(out, (0, 3, 1, 2))


# ----------------------------------------------------------------------------
if __name__ == "__main__":
    in_nc, out_nc, nf, group, scale = 3, 3, 16, 4, 4
    key = jax.random.PRNGKey(0)
    kx, kp = jax.random.split(key)
    x = jax.random.uniform(kx, (2, in_nc, 16, 16), jnp.float32)
    params = init_params(kp, in_nc, out_nc, nf, group, scale)

    # unit check: flat-layout grouped 3x3 conv vs lax.conv (HIGHEST), non-square spatial
    hc, wc_ = 8, 24
    xc = jax.random.normal(jax.random.PRNGKey(1), (2, nf, hc, wc_), jnp.float32)
    wgt, bia = params['b1']['e1']['w'], params['b1']['e1']['b']
    got = conv3x3(xc.reshape(2, nf, hc * wc_), wgt, bia, _col_masks(wc_, hc * wc_),
                  wd=wc_, groups=group, relu=False).reshape(2, nf, hc, wc_)
    ref = jnp.transpose(
        _ref_conv(jnp.transpose(xc, (0, 2, 3, 1)), wgt, bia, groups=group),
        (0, 3, 1, 2))
    assert jnp.allclose(got, ref, atol=2e-2, rtol=2e-2), \
        float(jnp.max(jnp.abs(got - ref)))

    # full forward
    fwd = jax.jit(functools.partial(us_carn_m_forward, group=group))
    out = fwd(x, params)
    jax.block_until_ready(out)
    assert out.shape == (2, out_nc, 16 * scale, 16 * scale), out.shape
    assert out.dtype == jnp.float32
    assert bool(jnp.all(jnp.isfinite(out)))

    # end-to-end check vs the pure-JAX reference.  With precision=HIGHEST on
    # every in-kernel matmul the observed error is ~1e-4; the thresholds below
    # are kept loose only as a guard, far above the expected deviation.
    ref_out = _ref_forward(x, params, group=group)
    max_abs = float(jnp.max(jnp.abs(out - ref_out)))
    rel_fro = float(jnp.linalg.norm(out - ref_out) /
                    (jnp.linalg.norm(ref_out) + 1e-12))
    assert max_abs < 1e-1 and rel_fro < 5e-2, (max_abs, rel_fro)

    print("KERNEL_OK")
</pallas_src>

<mosaic_0001>
module attributes {stable_mosaic.version = 11 : i64} {
  func.func @_conv3x3_kernel(%arg0: i32, %arg1: memref<1x16x192xf32, #tpu.memory_space<vmem>>, %arg2: memref<9x16x16xf32, #tpu.memory_space<vmem>>, %arg3: memref<16x1xf32, #tpu.memory_space<vmem>>, %arg4: memref<2x1x192xf32, #tpu.memory_space<vmem>>, %arg5: memref<1x16x192xf32, #tpu.memory_space<vmem>>) attributes {dimension_semantics = [#tpu.dimension_semantics<parallel>], iteration_bounds = array<i64: 2>, scalar_prefetch = 0 : i64, scratch_operands = 0 : i64, tpu.core_type = #tpu.core_type<tc>, window_params = [{transform_indices = @transform_0, window_bounds = array<i64: 1, 16, 192>}, {pipeline_mode = #tpu.pipeline_mode<synchronous>, transform_indices = @transform_1, window_bounds = array<i64: 9, 16, 16>}, {pipeline_mode = #tpu.pipeline_mode<synchronous>, transform_indices = @transform_2, window_bounds = array<i64: 16, 1>}, {pipeline_mode = #tpu.pipeline_mode<synchronous>, transform_indices = @transform_3, window_bounds = array<i64: 2, 1, 192>}, {transform_indices = @transform_4, window_bounds = array<i64: 1, 16, 192>}]} {
    %c0 = arith.constant 0 : index
    %c0_0 = arith.constant 0 : index
    %c0_1 = arith.constant 0 : index
    %0 = vector.load %arg1[%c0, %c0_0, %c0_1] : memref<1x16x192xf32, #tpu.memory_space<vmem>>, vector<1x16x192xf32>
    %1 = vector.shape_cast %0 : vector<1x16x192xf32> to vector<16x192xf32>
    %cst = arith.constant 0.000000e+00 : f32
    %2 = vector.broadcast %cst : f32 to vector<16x25xf32>
    %3 = tpu.concatenate %2, %1, %2 in 1 : vector<16x25xf32>, vector<16x192xf32>, vector<16x25xf32> -> vector<16x242xf32>
    %4 = vector.extract_strided_slice %3 {offsets = [0, 0], sizes = [16, 192], strides = [1, 1]} : vector<16x242xf32> to vector<16x192xf32>
    %c0_2 = arith.constant 0 : index
    %c0_3 = arith.constant 0 : index
    %c0_4 = arith.constant 0 : index
    %5 = vector.load %arg4[%c0_2, %c0_3, %c0_4] : memref<2x1x192xf32, #tpu.memory_space<vmem>>, vector<1x1x192xf32>
    %6 = vector.shape_cast %5 : vector<1x1x192xf32> to vector<1x192xf32>
    %7 = vector.broadcast %6 : vector<1x192xf32> to vector<16x192xf32>
    %8 = arith.mulf %4, %7 : vector<16x192xf32>
    %c0_5 = arith.constant 0 : index
    %c0_6 = arith.constant 0 : index
    %c0_7 = arith.constant 0 : index
    %9 = vector.load %arg2[%c0_5, %c0_6, %c0_7] : memref<9x16x16xf32, #tpu.memory_space<vmem>>, vector<1x16x16xf32>
    %10 = vector.shape_cast %9 : vector<1x16x16xf32> to vector<16x16xf32>
    %cst_8 = arith.constant dense<0.000000e+00> : vector<16x192xf32>
    %11 = tpu.matmul %10, %8, %cst_8 {dimension_numbers = #tpu.dot_dimension_numbers<[1], [0], [0], [1], [0, 0, 1, 1], [], []>, precision = #tpu.contract_precision<fp32>} : vector<16x16xf32>, vector<16x192xf32>, vector<16x192xf32> -> vector<16x192xf32>
    %12 = vector.extract_strided_slice %3 {offsets = [0, 1], sizes = [16, 192], strides = [1, 1]} : vector<16x242xf32> to vector<16x192xf32>
    %c1 = arith.constant 1 : index
    %c0_9 = arith.constant 0 : index
    %c0_10 = arith.constant 0 : index
    %13 = vector.load %arg2[%c1, %c0_9, %c0_10] : memref<9x16x16xf32, #tpu.memory_space<vmem>>, vector<1x16x16xf32>
    %14 = vector.shape_cast %13 : vector<1x16x16xf32> to vector<16x16xf32>
    %cst_11 = arith.constant dense<0.000000e+00> : vector<16x192xf32>
    %15 = tpu.matmul %14, %12, %cst_11 {dimension_numbers = #tpu.dot_dimension_numbers<[1], [0], [0], [1], [0, 0, 1, 1], [], []>, precision = #tpu.contract_precision<fp32>} : vector<16x16xf32>, vector<16x192xf32>, vector<16x192xf32> -> vector<16x192xf32>
    %16 = arith.addf %11, %15 : vector<16x192xf32>
    %17 = vector.extract_strided_slice %3 {offsets = [0, 2], sizes = [16, 192], strides = [1, 1]} : vector<16x242xf32> to vector<16x192xf32>
    %c1_12 = arith.constant 1 : index
    %c0_13 = arith.constant 0 : index
    %c0_14 = arith.constant 0 : index
    %18 = vector.load %arg4[%c1_12, %c0_13, %c0_14] : memref<2x1x192xf32, #tpu.memory_space<vmem>>, vector<1x1x192xf32>
    %19 = vector.shape_cast %18 : vector<1x1x192xf32> to vector<1x192xf32>
    %20 = vector.broadcast %19 : vector<1x192xf32> to vector<16x192xf32>
    %21 = arith.mulf %17, %20 : vector<16x192xf32>
    %c2 = arith.constant 2 : index
    %c0_15 = arith.constant 0 : index
    %c0_16 = arith.constant 0 : index
    %22 = vector.load %arg2[%c2, %c0_15, %c0_16] : memref<9x16x16xf32, #tpu.memory_space<vmem>>, vector<1x16x16xf32>
    %23 = vector.shape_cast %22 : vector<1x16x16xf32> to vector<16x16xf32>
    %cst_17 = arith.constant dense<0.000000e+00> : vector<16x192xf32>
    %24 = tpu.matmul %23, %21, %cst_17 {dimension_numbers = #tpu.dot_dimension_numbers<[1], [0], [0], [1], [0, 0, 1, 1], [], []>, precision = #tpu.contract_precision<fp32>} : vector<16x16xf32>, vector<16x192xf32>, vector<16x192xf32> -> vector<16x192xf32>
    %25 = arith.addf %16, %24 : vector<16x192xf32>
    %26 = vector.extract_strided_slice %3 {offsets = [0, 24], sizes = [16, 192], strides = [1, 1]} : vector<16x242xf32> to vector<16x192xf32>
    %c0_18 = arith.constant 0 : index
    %c0_19 = arith.constant 0 : index
    %c0_20 = arith.constant 0 : index
    %27 = vector.load %arg4[%c0_18, %c0_19, %c0_20] : memref<2x1x192xf32, #tpu.memory_space<vmem>>, vector<1x1x192xf32>
    %28 = vector.shape_cast %27 : vector<1x1x192xf32> to vector<1x192xf32>
    %29 = vector.broadcast %28 : vector<1x192xf32> to vector<16x192xf32>
    %30 = arith.mulf %26, %29 : vector<16x192xf32>
    %c3 = arith.constant 3 : index
    %c0_21 = arith.constant 0 : index
    %c0_22 = arith.constant 0 : index
    %31 = vector.load %arg2[%c3, %c0_21, %c0_22] : memref<9x16x16xf32, #tpu.memory_space<vmem>>, vector<1x16x16xf32>
    %32 = vector.shape_cast %31 : vector<1x16x16xf32> to vector<16x16xf32>
    %cst_23 = arith.constant dense<0.000000e+00> : vector<16x192xf32>
    %33 = tpu.matmul %32, %30, %cst_23 {dimension_numbers = #tpu.dot_dimension_numbers<[1], [0], [0], [1], [0, 0, 1, 1], [], []>, precision = #tpu.contract_precision<fp32>} : vector<16x16xf32>, vector<16x192xf32>, vector<16x192xf32> -> vector<16x192xf32>
    %34 = arith.addf %25, %33 : vector<16x192xf32>
    %35 = vector.extract_strided_slice %3 {offsets = [0, 25], sizes = [16, 192], strides = [1, 1]} : vector<16x242xf32> to vector<16x192xf32>
    %c4 = arith.constant 4 : index
    %c0_24 = arith.constant 0 : index
    %c0_25 = arith.constant 0 : index
    %36 = vector.load %arg2[%c4, %c0_24, %c0_25] : memref<9x16x16xf32, #tpu.memory_space<vmem>>, vector<1x16x16xf32>
    %37 = vector.shape_cast %36 : vector<1x16x16xf32> to vector<16x16xf32>
    %cst_26 = arith.constant dense<0.000000e+00> : vector<16x192xf32>
    %38 = tpu.matmul %37, %35, %cst_26 {dimension_numbers = #tpu.dot_dimension_numbers<[1], [0], [0], [1], [0, 0, 1, 1], [], []>, precision = #tpu.contract_precision<fp32>} : vector<16x16xf32>, vector<16x192xf32>, vector<16x192xf32> -> vector<16x192xf32>
    %39 = arith.addf %34, %38 : vector<16x192xf32>
    %40 = vector.extract_strided_slice %3 {offsets = [0, 26], sizes = [16, 192], strides = [1, 1]} : vector<16x242xf32> to vector<16x192xf32>
    %c1_27 = arith.constant 1 : index
    %c0_28 = arith.constant 0 : index
    %c0_29 = arith.constant 0 : index
    %41 = vector.load %arg4[%c1_27, %c0_28, %c0_29] : memref<2x1x192xf32, #tpu.memory_space<vmem>>, vector<1x1x192xf32>
    %42 = vector.shape_cast %41 : vector<1x1x192xf32> to vector<1x192xf32>
    %43 = vector.broadcast %42 : vector<1x192xf32> to vector<16x192xf32>
    %44 = arith.mulf %40, %43 : vector<16x192xf32>
    %c5 = arith.constant 5 : index
    %c0_30 = arith.constant 0 : index
    %c0_31 = arith.constant 0 : index
    %45 = vector.load %arg2[%c5, %c0_30, %c0_31] : memref<9x16x16xf32, #tpu.memory_space<vmem>>, vector<1x16x16xf32>
    %46 = vector.shape_cast %45 : vector<1x16x16xf32> to vector<16x16xf32>
    %cst_32 = arith.constant dense<0.000000e+00> : vector<16x192xf32>
    %47 = tpu.matmul %46, %44, %cst_32 {dimension_numbers = #tpu.dot_dimension_numbers<[1], [0], [0], [1], [0, 0, 1, 1], [], []>, precision = #tpu.contract_precision<fp32>} : vector<16x16xf32>, vector<16x192xf32>, vector<16x192xf32> -> vector<16x192xf32>
    %48 = arith.addf %39, %47 : vector<16x192xf32>
    %49 = vector.extract_strided_slice %3 {offsets = [0, 48], sizes = [16, 192], strides = [1, 1]} : vector<16x242xf32> to vector<16x192xf32>
    %c0_33 = arith.constant 0 : index
    %c0_34 = arith.constant 0 : index
    %c0_35 = arith.constant 0 : index
    %50 = vector.load %arg4[%c0_33, %c0_34, %c0_35] : memref<2x1x192xf32, #tpu.memory_space<vmem>>, vector<1x1x192xf32>
    %51 = vector.shape_cast %50 : vector<1x1x192xf32> to vector<1x192xf32>
    %52 = vector.broadcast %51 : vector<1x192xf32> to vector<16x192xf32>
    %53 = arith.mulf %49, %52 : vector<16x192xf32>
    %c6 = arith.constant 6 : index
    %c0_36 = arith.constant 0 : index
    %c0_37 = arith.constant 0 : index
    %54 = vector.load %arg2[%c6, %c0_36, %c0_37] : memref<9x16x16xf32, #tpu.memory_space<vmem>>, vector<1x16x16xf32>
    %55 = vector.shape_cast %54 : vector<1x16x16xf32> to vector<16x16xf32>
    %cst_38 = arith.constant dense<0.000000e+00> : vector<16x192xf32>
    %56 = tpu.matmul %55, %53, %cst_38 {dimension_numbers = #tpu.dot_dimension_numbers<[1], [0], [0], [1], [0, 0, 1, 1], [], []>, precision = #tpu.contract_precision<fp32>} : vector<16x16xf32>, vector<16x192xf32>, vector<16x192xf32> -> vector<16x192xf32>
    %57 = arith.addf %48, %56 : vector<16x192xf32>
    %58 = vector.extract_strided_slice %3 {offsets = [0, 49], sizes = [16, 192], strides = [1, 1]} : vector<16x242xf32> to vector<16x192xf32>
    %c7 = arith.constant 7 : index
    %c0_39 = arith.constant 0 : index
    %c0_40 = arith.constant 0 : index
    %59 = vector.load %arg2[%c7, %c0_39, %c0_40] : memref<9x16x16xf32, #tpu.memory_space<vmem>>, vector<1x16x16xf32>
    %60 = vector.shape_cast %59 : vector<1x16x16xf32> to vector<16x16xf32>
    %cst_41 = arith.constant dense<0.000000e+00> : vector<16x192xf32>
    %61 = tpu.matmul %60, %58, %cst_41 {dimension_numbers = #tpu.dot_dimension_numbers<[1], [0], [0], [1], [0, 0, 1, 1], [], []>, precision = #tpu.contract_precision<fp32>} : vector<16x16xf32>, vector<16x192xf32>, vector<16x192xf32> -> vector<16x192xf32>
    %62 = arith.addf %57, %61 : vector<16x192xf32>
    %63 = vector.extract_strided_slice %3 {offsets = [0, 50], sizes = [16, 192], strides = [1, 1]} : vector<16x242xf32> to vector<16x192xf32>
    %c1_42 = arith.constant 1 : index
    %c0_43 = arith.constant 0 : index
    %c0_44 = arith.constant 0 : index
    %64 = vector.load %arg4[%c1_42, %c0_43, %c0_44] : memref<2x1x192xf32, #tpu.memory_space<vmem>>, vector<1x1x192xf32>
    %65 = vector.shape_cast %64 : vector<1x1x192xf32> to vector<1x192xf32>
    %66 = vector.broadcast %65 : vector<1x192xf32> to vector<16x192xf32>
    %67 = arith.mulf %63, %66 : vector<16x192xf32>
    %c8 = arith.constant 8 : index
    %c0_45 = arith.constant 0 : index
    %c0_46 = arith.constant 0 : index
    %68 = vector.load %arg2[%c8, %c0_45, %c0_46] : memref<9x16x16xf32, #tpu.memory_space<vmem>>, vector<1x16x16xf32>
    %69 = vector.shape_cast %68 : vector<1x16x16xf32> to vector<16x16xf32>
    %cst_47 = arith.constant dense<0.000000e+00> : vector<16x192xf32>
    %70 = tpu.matmul %69, %67, %cst_47 {dimension_numbers = #tpu.dot_dimension_numbers<[1], [0], [0], [1], [0, 0, 1, 1], [], []>, precision = #tpu.contract_precision<fp32>} : vector<16x16xf32>, vector<16x192xf32>, vector<16x192xf32> -> vector<16x192xf32>
    %71 = arith.addf %62, %70 : vector<16x192xf32>
    %c0_48 = arith.constant 0 : index
    %c0_49 = arith.constant 0 : index
    %72 = vector.load %arg3[%c0_48, %c0_49] : memref<16x1xf32, #tpu.memory_space<vmem>>, vector<16x1xf32>
    %73 = vector.broadcast %72 : vector<16x1xf32> to vector<16x192xf32>
    %74 = arith.addf %71, %73 : vector<16x192xf32>
    %c0_50 = arith.constant 0 : index
    %c0_51 = arith.constant 0 : index
    %c0_52 = arith.constant 0 : index
    %75 = vector.load %arg5[%c0_50, %c0_51, %c0_52] : memref<1x16x192xf32, #tpu.memory_space<vmem>>, vector<1x16x192xf32>
    %76 = vector.shape_cast %75 : vector<1x16x192xf32> to vector<16x192xf32>
    %77 = vector.shape_cast %74 : vector<16x192xf32> to vector<1x16x192xf32>
    tpu.vector_store %arg5[%c0_50, %c0_51, %c0_52], %77 {strides = array<i32>} : memref<1x16x192xf32, #tpu.memory_space<vmem>>, vector<1x16x192xf32>,
    return
  }
  func.func @transform_0(%arg0: i32) -> (i32, i32, i32) {
    %c0_i32 = arith.constant 0 : i32
    %c0_i32_0 = arith.constant 0 : i32
    %c0_i32_1 = arith.constant 0 : i32
    return %arg0, %c0_i32, %c0_i32_0 : i32, i32, i32
  }
  func.func @transform_1(%arg0: i32) -> (i32, i32, i32) {
    %c0_i32 = arith.constant 0 : i32
    %c0_i32_0 = arith.constant 0 : i32
    %c0_i32_1 = arith.constant 0 : i32
    %c0_i32_2 = arith.constant 0 : i32
    return %c0_i32, %c0_i32_0, %c0_i32_1 : i32, i32, i32
  }
  func.func @transform_2(%arg0: i32) -> (i32, i32) {
    %c0_i32 = arith.constant 0 : i32
    %c0_i32_0 = arith.constant 0 : i32
    %c0_i32_1 = arith.constant 0 : i32
    return %c0_i32, %c0_i32_0 : i32, i32
  }
  func.func @transform_3(%arg0: i32) -> (i32, i32, i32) {
    %c0_i32 = arith.constant 0 : i32
    %c0_i32_0 = arith.constant 0 : i32
    %c0_i32_1 = arith.constant 0 : i32
    %c0_i32_2 = arith.constant 0 : i32
    return %c0_i32, %c0_i32_0, %c0_i32_1 : i32, i32, i32
  }
  func.func @transform_4(%arg0: i32) -> (i32, i32, i32) {
    %c0_i32 = arith.constant 0 : i32
    %c0_i32_0 = arith.constant 0 : i32
    %c0_i32_1 = arith.constant 0 : i32
    return %arg0, %c0_i32, %c0_i32_0 : i32, i32, i32
  }
}

</mosaic_0001>

<llo_original>
// kernel: tpu_custom_call.1
$region0: #{tpu_custom_call.1}
  #allocation0 [shape = 'u32[]', space=smem, size = 0x4, offset = 0x4, fixed_abs, tag = 'smem constant byte address 0x4 - core index']
  #allocation1 [shape = 'u32[144,128]{1,0:T(1,128)}', space=vmem, size = 0x12000, scoped, tag = 'internal scratch']
  %s0 = inlined_call_operand.hbm [shape: f32[2,16,192], index: 0, kind: input, shape index: {}]
  %s1 = inlined_call_operand.hbm [shape: f32[9,16,16], index: 1, kind: input, shape index: {}]
  %s2 = inlined_call_operand.vmem [shape: f32[16,1], index: 2, kind: input, shape index: {}]
  %s3 = inlined_call_operand.vmem [shape: f32[2,1,192], index: 3, kind: input, shape index: {}]
  %s4 = inlined_call_operand.hbm [shape: f32[2,16,192], index: 4, kind: output, shape index: {}]
  %s5 = sld [smem:[#allocation0]]
  $region57: #{tpu_custom_call.1} parent=0
    _
  %s7 = ssub.s32 1, %s5
  %s8 = scalar_select 0, %s7, %s5
  $region1: #{tpu_custom_call.1} parent=0
    #allocation2 [shape = 'u8[32768]{0}', space=vmem, size = 0x8000, scoped, tag = 'input window, operand 0']
    #allocation3 [shape = 's32[2]{0}', space=sflag, size = 0x8, scoped, tag = 'scoped memory for tpu_custom_call.1']
    #allocation4 [shape = 's32[2]{0}', space=sflag, size = 0x8, scoped, tag = 'scoped memory for tpu_custom_call.1']
    #allocation5 [shape = 'u8[73728]{0}', space=vmem, size = 0x12000, scoped, tag = 'input window, operand 1, single buffered']
    #allocation6 [shape = 's32[1]{0}', space=sflag, size = 0x4, scoped, tag = 'scoped memory for tpu_custom_call.1']
    #allocation7 [shape = 'u8[32768]{0}', space=vmem, size = 0x8000, scoped, tag = 'output window, operand 0']
    %9 = vsyncpa [#allocation3], 0
    %s10 = scalar_lea.sflag [#allocation3], 1
    %11 = vsyncpa %s10, 0
    %12 = vsyncpa [#allocation6], 0
    %13 = vsyncpa [#allocation4], 0
    %s14 = scalar_lea.sflag [#allocation4], 1
    %15 = vsyncpa %s14, 0
    loop: start=0, step=1, limit=4
    $region2: #{tpu_custom_call.1} parent=1 // loop_pre_header
      _
    $region3: #{tpu_custom_call.1} parent=1 // loop_header
      %s17 = sphi 0, %s21
      %p18 = scmp.ge.s32.totalorder %s17, 4
      %s27 = sphi 0, %s29
      %s30 = sphi 0, %s27
      %s31 = sphi 0, %s30
      %s47 = sphi 0, %s31
      %s51 = sphi 0, %s51
      %s53 = sphi 0, %s51
      %s54 = sphi 0, %s53
      %s68 = sphi 0, %s54
      %s72 = sphi 0, %s72
      %s74 = sphi 0, %s72
      %s75 = sphi 0, %s74
      %s89 = sphi 0, %s75
      %s93 = sphi 0, %s93
      %s95 = sphi 0, %s93
      %s96 = sphi 0, %s95
      %s110 = sphi 0, %s96
      %s116 = sphi 0, %s118
      %s119 = sphi 0, %s116
      %s120 = sphi 0, %s119
      %s136 = sphi 0, %s120
    $region4: #{tpu_custom_call.1} parent=1 // loop_header_branch
      %20 = sbr.rel (%p18) target = $region8
    $region5: #{tpu_custom_call.1} parent=1 // loop_body
      %s22 = ssub.s32 %s17, 1
      %s23 = ssub.s32 %s17, 2
      %s24 = sadd.s32 %s17, 1
      %s25 = ssub.s32 %s17, %s24
      %p26 = scmp.eq.s32.totalorder %s25, 0
      %s28 = sadd.s32 %s27, 1
      %s29 = scalar_select %p26, %s27, %s28
      %p32 = pneg %p26
      %p33 = scmp.eq.s32.totalorder %s17, 1
      %p34 = por %p32, %p33
      %p35 = scmp.ne.s32.totalorder %s27, %s30
      %p36 = scmp.eq.s32.totalorder %s17, 0
      %p37 = por %p35, %p36
      %p38 = scmp.ne.s32.totalorder %s27, %s30
      %p39 = scmp.eq.s32.totalorder %s22, 1
      %p40 = por %p38, %p39
      %p41 = scmp.ne.s32.totalorder %s30, %s31
      %p42 = scmp.eq.s32.totalorder %s22, 0
      %p43 = por %p41, %p42
      %p44 = scmp.ne.s32.totalorder %s30, %s31
      %p45 = scmp.eq.s32.totalorder %s23, 1
      %p46 = por %p44, %p45
      %p48 = scmp.ne.s32.totalorder %s31, %s47
      %p49 = scmp.eq.s32.totalorder %s23, 0
      %p50 = por %p48, %p49
      %s52 = sadd.s32 %s51, 1
      %p55 = scmp.eq.s32.totalorder %s17, 1
      %p56 = scmp.ne.s32.totalorder %s51, %s53
      %p57 = scmp.eq.s32.totalorder %s17, 0
      %p58 = por %p56, %p57
      %p59 = scmp.ne.s32.totalorder %s51, %s53
      %p60 = scmp.eq.s32.totalorder %s22, 1
      %p61 = por %p59, %p60
      %p62 = scmp.ne.s32.totalorder %s53, %s54
      %p63 = scmp.eq.s32.totalorder %s22, 0
      %p64 = por %p62, %p63
      %p65 = scmp.ne.s32.totalorder %s53, %s54
      %p66 = scmp.eq.s32.totalorder %s23, 1
      %p67 = por %p65, %p66
      %p69 = scmp.ne.s32.totalorder %s54, %s68
      %p70 = scmp.eq.s32.totalorder %s23, 0
      %p71 = por %p69, %p70
      %s73 = sadd.s32 %s72, 1
      %p76 = scmp.eq.s32.totalorder %s17, 1
      %p77 = scmp.ne.s32.totalorder %s72, %s74
      %p78 = scmp.eq.s32.totalorder %s17, 0
      %p79 = por %p77, %p78
      %p80 = scmp.ne.s32.totalorder %s72, %s74
      %p81 = scmp.eq.s32.totalorder %s22, 1
      %p82 = por %p80, %p81
      %p83 = scmp.ne.s32.totalorder %s74, %s75
      %p84 = scmp.eq.s32.totalorder %s22, 0
      %p85 = por %p83, %p84
      %p86 = scmp.ne.s32.totalorder %s74, %s75
      %p87 = scmp.eq.s32.totalorder %s23, 1
      %p88 = por %p86, %p87
      %p90 = scmp.ne.s32.totalorder %s75, %s89
      %p91 = scmp.eq.s32.totalorder %s23, 0
      %p92 = por %p90, %p91
      %s94 = sadd.s32 %s93, 1
      %p97 = scmp.eq.s32.totalorder %s17, 1
      %p98 = scmp.ne.s32.totalorder %s93, %s95
      %p99 = scmp.eq.s32.totalorder %s17, 0
      %p100 = por %p98, %p99
      %p101 = scmp.ne.s32.totalorder %s93, %s95
      %p102 = scmp.eq.s32.totalorder %s22, 1
      %p103 = por %p101, %p102
      %p104 = scmp.ne.s32.totalorder %s95, %s96
      %p105 = scmp.eq.s32.totalorder %s22, 0
      %p106 = por %p104, %p105
      %p107 = scmp.ne.s32.totalorder %s95, %s96
      %p108 = scmp.eq.s32.totalorder %s23, 1
      %p109 = por %p107, %p108
      %p111 = scmp.ne.s32.totalorder %s96, %s110
      %p112 = scmp.eq.s32.totalorder %s23, 0
      %p113 = por %p111, %p112
      %s114 = ssub.s32 %s17, %s24
      %p115 = scmp.eq.s32.totalorder %s114, 0
      %s117 = sadd.s32 %s116, 1
      %s118 = scalar_select %p115, %s116, %s117
      %p121 = pneg %p115
      %p122 = scmp.eq.s32.totalorder %s17, 1
      %p123 = por %p121, %p122
      %p124 = scmp.ne.s32.totalorder %s116, %s119
      %p125 = scmp.eq.s32.totalorder %s17, 0
      %p126 = por %p124, %p125
      %p127 = scmp.ne.s32.totalorder %s116, %s119
      %p128 = scmp.eq.s32.totalorder %s22, 1
      %p129 = por %p127, %p128
      %p130 = scmp.ne.s32.totalorder %s119, %s120
      %p131 = scmp.eq.s32.totalorder %s22, 0
      %p132 = por %p130, %p131
      %p133 = scmp.ne.s32.totalorder %s119, %s120
      %p134 = scmp.eq.s32.totalorder %s23, 1
      %p135 = por %p133, %p134
      %p137 = scmp.ne.s32.totalorder %s120, %s136
      %p138 = scmp.eq.s32.totalorder %s23, 0
      %p139 = por %p137, %p138
      %p140 = scmp.le.s32.totalorder 1, %s17
      %p141 = scmp.lt.s32.totalorder %s17, 3
      %p142 = pnand %p140, %p141
      %p143 = pneg %p142
      // Predicated region
      $region9: #{tpu_custom_call.1} parent=5 // pred_check
        _
      $region10: #{tpu_custom_call.1} parent=5 // pred_check_branch
        %145 = sbr.rel (%p142) target = $region12
      $region11: #{tpu_custom_call.1} parent=5 // pred_region
        %s146 = ssub.s32 %s17, 1
        // Predicated region
        $region13: #{tpu_custom_call.1} parent=11 // pred_check
          %p147 = pneg %p64
        $region14: #{tpu_custom_call.1} parent=11 // pred_check_branch
          %149 = sbr.rel (%p147) target = $region16
        $region15: #{tpu_custom_call.1} parent=11 // pred_region
          %s151 = ssub.s32 2304, 2304
          %152 = vsyncadd [#allocation6], %s151
          %s153 = sshll.u32 [#allocation5], 4
          %s154 = int_to_ptr.vmem [resolvable:$true] %s153
          %159 = dma.hbm_to_vmem [thread:$0]  %s1, 2304, %s154, [#allocation6], 128, 128, 8
        $region16: #{tpu_custom_call.1} parent=11 // pred_fallthru
          _
        // Predicated region
        $region17: #{tpu_custom_call.1} parent=11 // pred_check
          %p160 = pneg %p85
        $region18: #{tpu_custom_call.1} parent=11 // pred_check_branch
          %162 = sbr.rel (%p160) target = $region20
        $region19: #{tpu_custom_call.1} parent=11 // pred_region
          _
        $region20: #{tpu_custom_call.1} parent=11 // pred_fallthru
          _
        // Predicated region
        $region21: #{tpu_custom_call.1} parent=11 // pred_check
          %p163 = pneg %p106
        $region22: #{tpu_custom_call.1} parent=11 // pred_check_branch
          %165 = sbr.rel (%p163) target = $region24
        $region23: #{tpu_custom_call.1} parent=11 // pred_region
          _
        $region24: #{tpu_custom_call.1} parent=11 // pred_fallthru
          _
      $region12: #{tpu_custom_call.1} parent=5 // pred_fallthru
        _
      %p166 = scmp.lt.s32.totalorder %s17, 2
      // Predicated region
      $region25: #{tpu_custom_call.1} parent=5 // pred_check
        %p167 = pneg %p166
      $region26: #{tpu_custom_call.1} parent=5 // pred_check_branch
        %169 = sbr.rel (%p167) target = $region28
      $region27: #{tpu_custom_call.1} parent=5 // pred_region
        // Predicated region
        $region29: #{tpu_custom_call.1} parent=27 // pred_check
          %p170 = pneg %p37
        $region30: #{tpu_custom_call.1} parent=27 // pred_check_branch
          %172 = sbr.rel (%p170) target = $region32
        $region31: #{tpu_custom_call.1} parent=27 // pred_region
          %s173 = sand.u32 %s27, 1
          %s174 = scalar_lea.sflag [#allocation3], %s173
          %s175 = sand.u32 %s27, 1
          %s176 = smul.addr %s175, 32
          %s177 = scalar_lea.vmem [#allocation2], %s176
          %s179 = ssub.s32 512, 512
          %180 = vsyncadd %s174, %s179
          %s181 = smul.addr %s17, 4
          %s182 = smul.addr %s181, 128
          %s183 = scalar_lea.hbm %s0, %s182
          %s184 = sshll.u32 %s177, 4
          %s185 = int_to_ptr.vmem [resolvable:$true] %s184
          %190 = dma.hbm_to_vmem [thread:$0]  %s183, 512, %s185, %s174, 256, 256, 16
        $region32: #{tpu_custom_call.1} parent=27 // pred_fallthru
          _
      $region28: #{tpu_custom_call.1} parent=5 // pred_fallthru
        _
      %p191 = scmp.le.s32.totalorder 1, %s17
      %p192 = scmp.lt.s32.totalorder %s17, 3
      %p193 = pnand %p191, %p192
      %p194 = pneg %p193
      // Predicated region
      $region33: #{tpu_custom_call.1} parent=5 // pred_check
        _
      $region34: #{tpu_custom_call.1} parent=5 // pred_check_branch
        %196 = sbr.rel (%p193) target = $region36
      $region35: #{tpu_custom_call.1} parent=5 // pred_region
        %s197 = ssub.s32 %s17, 1
        %s198 = sand.u32 %s30, 1
        %s199 = scalar_lea.sflag [#allocation3], %s198
        %s200 = sand.u32 %s30, 1
        %s201 = smul.addr %s200, 32
        %s202 = scalar_lea.vmem [#allocation2], %s201
        // Predicated region
        $region37: #{tpu_custom_call.1} parent=35 // pred_check
          %p203 = pneg %p43
        $region38: #{tpu_custom_call.1} parent=35 // pred_check_branch
          %205 = sbr.rel (%p203) target = $region40
        $region39: #{tpu_custom_call.1} parent=35 // pred_region
          %206 = dma.done %s199, 512
        $region40: #{tpu_custom_call.1} parent=35 // pred_fallthru
          _
        // Predicated region
        $region41: #{tpu_custom_call.1} parent=35 // pred_check
          %p207 = pneg %p64
        $region42: #{tpu_custom_call.1} parent=35 // pred_check_branch
          %209 = sbr.rel (%p207) target = $region44
        $region43: #{tpu_custom_call.1} parent=35 // pred_region
          %210 = dma.done [#allocation6], 2304
        $region44: #{tpu_custom_call.1} parent=35 // pred_fallthru
          _
        %s211 = sand.u32 %s30, 1
        %s212 = scalar_lea.sflag [#allocation3], %s211
        %s213 = sand.u32 %s30, 1
        %s214 = smul.addr %s213, 32
        %s215 = scalar_lea.vmem [#allocation2], %s214
        %p216 = pneg %p43
        %p217 = pneg %p40
        %p218 = pneg %p64
        %p219 = pneg %p61
        %p220 = pneg %p85
        %p221 = pneg %p82
        %p222 = pneg %p106
        %p223 = pneg %p103
        %p224 = pneg %p132
        %p225 = pneg %p129
        %s226 = sand.u32 %s119, 1
        %s227 = scalar_lea.sflag [#allocation4], %s226
        %s228 = sand.u32 %s119, 1
        %s229 = smul.addr %s228, 32
        %s230 = scalar_lea.vmem [#allocation7], %s229
        %v231 = vld [vmem:[%s202] sm:$0xff]
        %v232 = vld [vmem:[%s202 + $0x8] sm:$0xff]
        %v233 = vld [vmem:[%s202 + $0x10] sm:$0xff]
        %v234 = vld [vmem:[%s202 + $0x18] sm:$0xff]
        %239 = vrot.lane.b32.xlu0 %v231, 25
        %v240 = vpop.permute.xlu0 %239
        %241 = vrot.lane.b32.xlu0 %v232, 25
        %v242 = vpop.permute.xlu0 %241
        %243 = vrot.lane.b32.xlu0 %v233, 25
        %v244 = vpop.permute.xlu0 %243
        %245 = vrot.lane.b32.xlu0 %v234, 25
        %v246 = vpop.permute.xlu0 %245
        %vm247 = vcmask 203776
        %v248 = vsel %vm247, %v240, %v242
        %v249 = vsel %vm247, %v244, %v246
        %v254 = vsel %vm247, 0.0, %v240
        %v255 = vsel %vm247, 0.0, %v244
        %vm256 = vcmask 728064
        %v257 = vsel %vm256, %v248, 0.0
        %v258 = vsel %vm256, %v249, 0.0
        %v259 = vld [vmem:[%s3] sm:$0x3]
        %v261 = vlaneseq
        %v262 = vshrl.u32 %v261, 7
        %v263 = vsub.s32 0, %v262
        %v264 = vrot.slane %v259, %v263
        %v265 = vlaneseq
        %v266 = vshrl.u32 %v265, 7
        %v267 = vsub.s32 1, %v266
        %v268 = vrot.slane %v259, %v267
        %v271 = vmul.f32 %v254, %v264
        %v272 = vmul.f32 %v257, %v268
        %v273 = vmul.f32 %v255, %v264
        %v274 = vmul.f32 %v258, %v268
        %v275 = vld [vmem:[#allocation5] sm:$0xff]
        %v276 = vld [vmem:[#allocation5 + $0x8] sm:$0xff]
        %s277 = scalar_lea.vmem [#allocation5], 16
        %v278 = vld [vmem:[%s277] sm:$0xff]
        %v279 = vld [vmem:[%s277 + $0x8] sm:$0xff]
        %284 = vrot.lane.b32.xlu0 %v254, 127
        %v285 = vpop.permute.xlu0 %284
        %286 = vrot.lane.b32.xlu0 %v257, 127
        %v287 = vpop.permute.xlu0 %286
        %288 = vrot.lane.b32.xlu0 %v255, 127
        %v289 = vpop.permute.xlu0 %288
        %290 = vrot.lane.b32.xlu0 %v258, 127
        %v291 = vpop.permute.xlu0 %290
        %vm292 = vcmask 1039360
        %v293 = vsel %vm292, %v285, %v287
        %v294 = vsel %vm292, %v289, %v291
        %vm299 = vcmask 130048
        %v301 = vsel %vm299, %v278, 0
        %v304 = vsel %vm299, %v279, 0
        %v306 = vand.u32 %v287, 4294901760
        %307 = vmatprep.subr.mxu0 %v306
        %v308 = vand.u32 %v293, 4294901760
        %309 = vmatpush1.msra.mxu0 %v308
        %v310 = vand.u32 %v291, 4294901760
        %311 = vmatprep.subr.mxu0 %v310
        %v312 = vand.u32 %v294, 4294901760
        %313 = vmatpush1.msra.mxu0 %v312
        %314 = vmatprep.subr.mxu0 0.0
        %315 = vmatpush1.msra.mxu0 0.0
        %316 = vmatprep.subr.mxu0 0.0
        %317 = vmatpush1.msra.mxu0 0.0
        %318 = vmatprep.subr.mxu0 0.0
        %319 = vmatpush1.msra.mxu0 0.0
        %320 = vmatprep.subr.mxu0 0.0
        %321 = vmatpush1.msra.mxu0 0.0
        %322 = vmatprep.subr.mxu0 0.0
        %323 = vmatpush1.msra.mxu0 0.0
        %324 = vmatprep.subr.mxu0 0.0
        %325 = vmatpush1.msra.mxu0 0.0
        %326 = vmatprep.subr.mxu0 0.0
        %327 = vmatpush1.msra.mxu0 0.0
        %328 = vmatprep.subr.mxu0 0.0
        %329 = vmatpush1.msra.mxu0 0.0
        %330 = vmatprep.subr.mxu0 0.0
        %331 = vmatpush1.msra.mxu0 0.0
        %332 = vmatprep.subr.mxu0 0.0
        %333 = vmatpush1.msra.mxu0 0.0
        %334 = vmatprep.subr.mxu0 0.0
        %335 = vmatpush1.msra.mxu0 0.0
        %336 = vmatprep.subr.mxu0 0.0
        %337 = vmatpush1.msra.mxu0 0.0
        %338 = vmatprep.subr.mxu0 0.0
        %339 = vmatpush1.msra.mxu0 0.0
        %340 = vmatprep.subr.mxu0 0.0
        %341 = vmatpush1.msra.mxu0 0.0
        %342 = vmatprep.subr.mxu0 0.0
        %343 = vmatpush1.msra.mxu0 0.0
        %344 = vmatprep.subr.mxu0 0.0
        %345 = vmatpush1.msra.mxu0 0.0
        %346 = vmatprep.subr.mxu0 0.0
        %347 = vmatpush1.msra.mxu0 0.0
        %348 = vmatprep.subr.mxu0 0.0
        %349 = vmatpush1.msra.mxu0 0.0
        %350 = vmatprep.subr.mxu0 0.0
        %351 = vmatpush1.msra.mxu0 0.0
        %352 = vmatprep.subr.mxu0 0.0
        %353 = vmatpush1.msra.mxu0 0.0
        %354 = vmatprep.subr.mxu0 0.0
        %355 = vmatpush1.msra.mxu0 0.0
        %356 = vmatprep.subr.mxu0 0.0
        %357 = vmatpush1.msra.mxu0 0.0
        %358 = vmatprep.subr.mxu0 0.0
        %359 = vmatpush1.msra.mxu0 0.0
        %360 = vmatprep.subr.mxu0 0.0
        %361 = vmatpush1.msra.mxu0 0.0
        %362 = vmatprep.subr.mxu0 0.0
        %363 = vmatpush1.msra.mxu0 0.0
        %364 = vmatprep.subr.mxu0 0.0
        %365 = vmatpush1.msra.mxu0 0.0
        %366 = vmatprep.subr.mxu0 0.0
        %367 = vmatpush1.msra.mxu0 0.0
        %368 = vmatprep.subr.mxu0 0.0
        %369 = vmatpush1.msra.mxu0 0.0
        %370 = vmatprep.subr.mxu0 0.0
        %371 = vmatpush1.msra.mxu0 0.0
        %372 = vmatprep.subr.mxu0 0.0
        %373 = vmatpush1.msra.mxu0 0.0
        %374 = vmatprep.mubr.f32.mxu0 0.0
        %v375 = vand.u32 %v301, 4294901760
        %v376 = vsub.f32 %v301, %v375
        %v377 = vand.u32 %v376, 4294901760
        %v378 = vsub.f32 %v376, %v377
        %v379 = vand.u32 %v378, 4294901760
        %380 = vmatmul.mubr.f32.gmra.mrb[0].mxu0 %v379
        %v381 = vpop.f32.mrb[0].mxu0
        %v382 = vadd.f32 0.0, %v381
        %v383 = vpop.f32.mrb[0].mxu0
        %v384 = vadd.f32 0.0, %v383
        %385 = vmatprep.mubr.f32.mxu0 0.0
        %v386 = vand.u32 %v304, 4294901760
        %v387 = vsub.f32 %v304, %v386
        %v388 = vand.u32 %v387, 4294901760
        %v389 = vsub.f32 %v387, %v388
        %v390 = vand.u32 %v389, 4294901760
        %391 = vmatmul.mubr.f32.gmra.mrb[0].mxu0 %v390
        %v392 = vpop.f32.mrb[0].mxu0
        %v393 = vadd.f32 0.0, %v392
        %v394 = vpop.f32.mrb[0].mxu0
        %v395 = vadd.f32 0.0, %v394
        %396 = vdwg.mxu0
        %v397 = vand.u32 %v287, 4294901760
        %v398 = vsub.f32 %v287, %v397
        %v399 = vand.u32 %v398, 4294901760
        %v400 = vsub.f32 %v398, %v399
        %v401 = vand.u32 %v400, 4294901760
        %402 = vmatprep.subr.mxu0 %v401
        %v403 = vand.u32 %v293, 4294901760
        %v404 = vsub.f32 %v293, %v403
        %v405 = vand.u32 %v404, 4294901760
        %v406 = vsub.f32 %v404, %v405
        %v407 = vand.u32 %v406, 4294901760
        %408 = vmatpush1.msra.mxu0 %v407
        %v409 = vand.u32 %v291, 4294901760
        %v410 = vsub.f32 %v291, %v409
        %v411 = vand.u32 %v410, 4294901760
        %v412 = vsub.f32 %v410, %v411
        %v413 = vand.u32 %v412, 4294901760
        %414 = vmatprep.subr.mxu0 %v413
        %v415 = vand.u32 %v294, 4294901760
        %v416 = vsub.f32 %v294, %v415
        %v417 = vand.u32 %v416, 4294901760
        %v418 = vsub.f32 %v416, %v417
        %v419 = vand.u32 %v418, 4294901760
        %420 = vmatpush1.msra.mxu0 %v419
        %421 = vmatprep.subr.mxu0 0.0
        %422 = vmatpush1.msra.mxu0 0.0
        %423 = vmatprep.subr.mxu0 0.0
        %424 = vmatpush1.msra.mxu0 0.0
        %425 = vmatprep.subr.mxu0 0.0
        %426 = vmatpush1.msra.mxu0 0.0
        %427 = vmatprep.subr.mxu0 0.0
        %428 = vmatpush1.msra.mxu0 0.0
        %429 = vmatprep.subr.mxu0 0.0
        %430 = vmatpush1.msra.mxu0 0.0
        %431 = vmatprep.subr.mxu0 0.0
        %432 = vmatpush1.msra.mxu0 0.0
        %433 = vmatprep.subr.mxu0 0.0
        %434 = vmatpush1.msra.mxu0 0.0
        %435 = vmatprep.subr.mxu0 0.0
        %436 = vmatpush1.msra.mxu0 0.0
        %437 = vmatprep.subr.mxu0 0.0
        %438 = vmatpush1.msra.mxu0 0.0
        %439 = vmatprep.subr.mxu0 0.0
        %440 = vmatpush1.msra.mxu0 0.0
        %441 = vmatprep.subr.mxu0 0.0
        %442 = vmatpush1.msra.mxu0 0.0
        %443 = vmatprep.subr.mxu0 0.0
        %444 = vmatpush1.msra.mxu0 0.0
        %445 = vmatprep.subr.mxu0 0.0
        %446 = vmatpush1.msra.mxu0 0.0
        %447 = vmatprep.subr.mxu0 0.0
        %448 = vmatpush1.msra.mxu0 0.0
        %449 = vmatprep.subr.mxu0 0.0
        %450 = vmatpush1.msra.mxu0 0.0
        %451 = vmatprep.subr.mxu0 0.0
        %452 = vmatpush1.msra.mxu0 0.0
        %453 = vmatprep.subr.mxu0 0.0
        %454 = vmatpush1.msra.mxu0 0.0
        %455 = vmatprep.subr.mxu0 0.0
        %456 = vmatpush1.msra.mxu0 0.0
        %457 = vmatprep.subr.mxu0 0.0
        %458 = vmatpush1.msra.mxu0 0.0
        %459 = vmatprep.subr.mxu0 0.0
        %460 = vmatpush1.msra.mxu0 0.0
        %461 = vmatprep.subr.mxu0 0.0
        %462 = vmatpush1.msra.mxu0 0.0
        %463 = vmatprep.subr.mxu0 0.0
        %464 = vmatpush1.msra.mxu0 0.0
        %465 = vmatprep.subr.mxu0 0.0
        %466 = vmatpush1.msra.mxu0 0.0
        %467 = vmatprep.subr.mxu0 0.0
        %468 = vmatpush1.msra.mxu0 0.0
        %469 = vmatprep.subr.mxu0 0.0
        %470 = vmatpush1.msra.mxu0 0.0
        %471 = vmatprep.subr.mxu0 0.0
        %472 = vmatpush1.msra.mxu0 0.0
        %473 = vmatprep.subr.mxu0 0.0
        %474 = vmatpush1.msra.mxu0 0.0
        %475 = vmatprep.subr.mxu0 0.0
        %476 = vmatpush1.msra.mxu0 0.0
        %477 = vmatprep.subr.mxu0 0.0
        %478 = vmatpush1.msra.mxu0 0.0
        %479 = vmatprep.subr.mxu0 0.0
        %480 = vmatpush1.msra.mxu0 0.0
        %481 = vmatprep.mubr.f32.mxu0 0.0
        %v482 = vand.u32 %v301, 4294901760
        %483 = vmatmul.mubr.f32.gmra.mrb[0].mxu0 %v482
        %v484 = vpop.f32.mrb[0].mxu0
        %v485 = vadd.f32 %v382, %v484
        %v486 = vpop.f32.mrb[0].mxu0
        %v487 = vadd.f32 %v384, %v486
        %488 = vmatprep.mubr.f32.mxu0 0.0
        %v489 = vand.u32 %v304, 4294901760
        %490 = vmatmul.mubr.f32.gmra.mrb[0].mxu0 %v489
        %v491 = vpop.f32.mrb[0].mxu0
        %v492 = vadd.f32 %v393, %v491
        %v493 = vpop.f32.mrb[0].mxu0
        %v494 = vadd.f32 %v395, %v493
        %495 = vdwg.mxu0
        %v496 = vand.u32 %v287, 4294901760
        %v497 = vsub.f32 %v287, %v496
        %498 = vmatprep.subr.mxu0 %v497
        %v499 = vand.u32 %v293, 4294901760
        %v500 = vsub.f32 %v293, %v499
        %501 = vmatpush1.msra.mxu0 %v500
        %v502 = vand.u32 %v291, 4294901760
        %v503 = vsub.f32 %v291, %v502
        %504 = vmatprep.subr.mxu0 %v503
        %v505 = vand.u32 %v294, 4294901760
        %v506 = vsub.f32 %v294, %v505
        %507 = vmatpush1.msra.mxu0 %v506
        %508 = vmatprep.subr.mxu0 0.0
        %509 = vmatpush1.msra.mxu0 0.0
        %510 = vmatprep.subr.mxu0 0.0
        %511 = vmatpush1.msra.mxu0 0.0
        %512 = vmatprep.subr.mxu0 0.0
        %513 = vmatpush1.msra.mxu0 0.0
        %514 = vmatprep.subr.mxu0 0.0
        %515 = vmatpush1.msra.mxu0 0.0
        %516 = vmatprep.subr.mxu0 0.0
        %517 = vmatpush1.msra.mxu0 0.0
        %518 = vmatprep.subr.mxu0 0.0
        %519 = vmatpush1.msra.mxu0 0.0
        %520 = vmatprep.subr.mxu0 0.0
        %521 = vmatpush1.msra.mxu0 0.0
        %522 = vmatprep.subr.mxu0 0.0
        %523 = vmatpush1.msra.mxu0 0.0
        %524 = vmatprep.subr.mxu0 0.0
        %525 = vmatpush1.msra.mxu0 0.0
        %526 = vmatprep.subr.mxu0 0.0
        %527 = vmatpush1.msra.mxu0 0.0
        %528 = vmatprep.subr.mxu0 0.0
        %529 = vmatpush1.msra.mxu0 0.0
        %530 = vmatprep.subr.mxu0 0.0
        %531 = vmatpush1.msra.mxu0 0.0
        %532 = vmatprep.subr.mxu0 0.0
        %533 = vmatpush1.msra.mxu0 0.0
        %534 = vmatprep.subr.mxu0 0.0
        %535 = vmatpush1.msra.mxu0 0.0
        %536 = vmatprep.subr.mxu0 0.0
        %537 = vmatpush1.msra.mxu0 0.0
        %538 = vmatprep.subr.mxu0 0.0
        %539 = vmatpush1.msra.mxu0 0.0
        %540 = vmatprep.subr.mxu0 0.0
        %541 = vmatpush1.msra.mxu0 0.0
        %542 = vmatprep.subr.mxu0 0.0
        %543 = vmatpush1.msra.mxu0 0.0
        %544 = vmatprep.subr.mxu0 0.0
        %545 = vmatpush1.msra.mxu0 0.0
        %546 = vmatprep.subr.mxu0 0.0
        %547 = vmatpush1.msra.mxu0 0.0
        %548 = vmatprep.subr.mxu0 0.0
        %549 = vmatpush1.msra.mxu0 0.0
        %550 = vmatprep.subr.mxu0 0.0
        %551 = vmatpush1.msra.mxu0 0.0
        %552 = vmatprep.subr.mxu0 0.0
        %553 = vmatpush1.msra.mxu0 0.0
        %554 = vmatprep.subr.mxu0 0.0
        %555 = vmatpush1.msra.mxu0 0.0
        %556 = vmatprep.subr.mxu0 0.0
        %557 = vmatpush1.msra.mxu0 0.0
        %558 = vmatprep.subr.mxu0 0.0
        %559 = vmatpush1.msra.mxu0 0.0
        %560 = vmatprep.subr.mxu0 0.0
        %561 = vmatpush1.msra.mxu0 0.0
        %562 = vmatprep.subr.mxu0 0.0
        %563 = vmatpush1.msra.mxu0 0.0
        %564 = vmatprep.subr.mxu0 0.0
        %565 = vmatpush1.msra.mxu0 0.0
        %566 = vmatprep.subr.mxu0 0.0
        %567 = vmatpush1.msra.mxu0 0.0
        %568 = vmatprep.mubr.f32.mxu0 0.0
        %v569 = vand.u32 %v301, 4294901760
        %v570 = vsub.f32 %v301, %v569
        %571 = vmatmul.mubr.f32.gmra.mrb[0].mxu0 %v570
        %v572 = vpop.f32.mrb[0].mxu0
        %v573 = vadd.f32 %v485, %v572
        %v574 = vpop.f32.mrb[0].mxu0
        %v575 = vadd.f32 %v487, %v574
        %576 = vmatprep.mubr.f32.mxu0 0.0
        %v577 = vand.u32 %v304, 4294901760
        %v578 = vsub.f32 %v304, %v577
        %579 = vmatmul.mubr.f32.gmra.mrb[0].mxu0 %v578
        %v580 = vpop.f32.mrb[0].mxu0
        %v581 = vadd.f32 %v492, %v580
        %v582 = vpop.f32.mrb[0].mxu0
        %v583 = vadd.f32 %v494, %v582
        %584 = vdwg.mxu0
        %v585 = vand.u32 %v287, 4294901760
        %586 = vmatprep.subr.mxu0 %v585
        %v587 = vand.u32 %v293, 4294901760
        %588 = vmatpush1.msra.mxu0 %v587
        %v589 = vand.u32 %v291, 4294901760
        %590 = vmatprep.subr.mxu0 %v589
        %v591 = vand.u32 %v294, 4294901760
        %592 = vmatpush1.msra.mxu0 %v591
        %593 = vmatprep.subr.mxu0 0.0
        %594 = vmatpush1.msra.mxu0 0.0
        %595 = vmatprep.subr.mxu0 0.0
        %596 = vmatpush1.msra.mxu0 0.0
        %597 = vmatprep.subr.mxu0 0.0
        %598 = vmatpush1.msra.mxu0 0.0
        %599 = vmatprep.subr.mxu0 0.0
        %600 = vmatpush1.msra.mxu0 0.0
        %601 = vmatprep.subr.mxu0 0.0
        %602 = vmatpush1.msra.mxu0 0.0
        %603 = vmatprep.subr.mxu0 0.0
        %604 = vmatpush1.msra.mxu0 0.0
        %605 = vmatprep.subr.mxu0 0.0
        %606 = vmatpush1.msra.mxu0 0.0
        %607 = vmatprep.subr.mxu0 0.0
        %608 = vmatpush1.msra.mxu0 0.0
        %609 = vmatprep.subr.mxu0 0.0
        %610 = vmatpush1.msra.mxu0 0.0
        %611 = vmatprep.subr.mxu0 0.0
        %612 = vmatpush1.msra.mxu0 0.0
        %613 = vmatprep.subr.mxu0 0.0
        %614 = vmatpush1.msra.mxu0 0.0
        %615 = vmatprep.subr.mxu0 0.0
        %616 = vmatpush1.msra.mxu0 0.0
        %617 = vmatprep.subr.mxu0 0.0
        %618 = vmatpush1.msra.mxu0 0.0
        %619 = vmatprep.subr.mxu0 0.0
        %620 = vmatpush1.msra.mxu0 0.0
        %621 = vmatprep.subr.mxu0 0.0
        %622 = vmatpush1.msra.mxu0 0.0
        %623 = vmatprep.subr.mxu0 0.0
        %624 = vmatpush1.msra.mxu0 0.0
        %625 = vmatprep.subr.mxu0 0.0
        %626 = vmatpush1.msra.mxu0 0.0
        %627 = vmatprep.subr.mxu0 0.0
        %628 = vmatpush1.msra.mxu0 0.0
        %629 = vmatprep.subr.mxu0 0.0
        %630 = vmatpush1.msra.mxu0 0.0
        %631 = vmatprep.subr.mxu0 0.0
        %632 = vmatpush1.msra.mxu0 0.0
        %633 = vmatprep.subr.mxu0 0.0
        %634 = vmatpush1.msra.mxu0 0.0
        %635 = vmatprep.subr.mxu0 0.0
        %636 = vmatpush1.msra.mxu0 0.0
        %637 = vmatprep.subr.mxu0 0.0
        %638 = vmatpush1.msra.mxu0 0.0
        %639 = vmatprep.subr.mxu0 0.0
        %640 = vmatpush1.msra.mxu0 0.0
        %641 = vmatprep.subr.mxu0 0.0
        %642 = vmatpush1.msra.mxu0 0.0
        %643 = vmatprep.subr.mxu0 0.0
        %644 = vmatpush1.msra.mxu0 0.0
        %645 = vmatprep.subr.mxu0 0.0
        %646 = vmatpush1.msra.mxu0 0.0
        %647 = vmatprep.subr.mxu0 0.0
        %648 = vmatpush1.msra.mxu0 0.0
        %649 = vmatprep.subr.mxu0 0.0
        %650 = vmatpush1.msra.mxu0 0.0
        %651 = vmatprep.subr.mxu0 0.0
        %652 = vmatpush1.msra.mxu0 0.0
        %653 = vmatprep.mubr.f32.mxu0 0.0
        %v654 = vand.u32 %v301, 4294901760
        %v655 = vsub.f32 %v301, %v654
        %v656 = vand.u32 %v655, 4294901760
        %657 = vmatmul.mubr.f32.gmra.mrb[0].mxu0 %v656
        %v658 = vpop.f32.mrb[0].mxu0
        %v659 = vadd.f32 %v573, %v658
        %v660 = vpop.f32.mrb[0].mxu0
        %v661 = vadd.f32 %v575, %v660
        %662 = vmatprep.mubr.f32.mxu0 0.0
        %v663 = vand.u32 %v304, 4294901760
        %v664 = vsub.f32 %v304, %v663
        %v665 = vand.u32 %v664, 4294901760
        %666 = vmatmul.mubr.f32.gmra.mrb[0].mxu0 %v665
        %v667 = vpop.f32.mrb[0].mxu0
        %v668 = vadd.f32 %v581, %v667
        %v669 = vpop.f32.mrb[0].mxu0
        %v670 = vadd.f32 %v583, %v669
        %671 = vdwg.mxu0
        %v672 = vand.u32 %v287, 4294901760
        %v673 = vsub.f32 %v287, %v672
        %v674 = vand.u32 %v673, 4294901760
        %675 = vmatprep.subr.mxu0 %v674
        %v676 = vand.u32 %v293, 4294901760
        %v677 = vsub.f32 %v293, %v676
        %v678 = vand.u32 %v677, 4294901760
        %679 = vmatpush1.msra.mxu0 %v678
        %v680 = vand.u32 %v291, 4294901760
        %v681 = vsub.f32 %v291, %v680
        %v682 = vand.u32 %v681, 4294901760
        %683 = vmatprep.subr.mxu0 %v682
        %v684 = vand.u32 %v294, 4294901760
        %v685 = vsub.f32 %v294, %v684
        %v686 = vand.u32 %v685, 4294901760
        %687 = vmatpush1.msra.mxu0 %v686
        %688 = vmatprep.subr.mxu0 0.0
        %689 = vmatpush1.msra.mxu0 0.0
        %690 = vmatprep.subr.mxu0 0.0
        %691 = vmatpush1.msra.mxu0 0.0
        %692 = vmatprep.subr.mxu0 0.0
        %693 = vmatpush1.msra.mxu0 0.0
        %694 = vmatprep.subr.mxu0 0.0
        %695 = vmatpush1.msra.mxu0 0.0
        %696 = vmatprep.subr.mxu0 0.0
        %697 = vmatpush1.msra.mxu0 0.0
        %698 = vmatprep.subr.mxu0 0.0
        %699 = vmatpush1.msra.mxu0 0.0
        %700 = vmatprep.subr.mxu0 0.0
        %701 = vmatpush1.msra.mxu0 0.0
        %702 = vmatprep.subr.mxu0 0.0
        %703 = vmatpush1.msra.mxu0 0.0
        %704 = vmatprep.subr.mxu0 0.0
        %705 = vmatpush1.msra.mxu0 0.0
        %706 = vmatprep.subr.mxu0 0.0
        %707 = vmatpush1.msra.mxu0 0.0
        %708 = vmatprep.subr.mxu0 0.0
        %709 = vmatpush1.msra.mxu0 0.0
        %710 = vmatprep.subr.mxu0 0.0
        %711 = vmatpush1.msra.mxu0 0.0
        %712 = vmatprep.subr.mxu0 0.0
        %713 = vmatpush1.msra.mxu0 0.0
        %714 = vmatprep.subr.mxu0 0.0
        %715 = vmatpush1.msra.mxu0 0.0
        %716 = vmatprep.subr.mxu0 0.0
        %717 = vmatpush1.msra.mxu0 0.0
        %718 = vmatprep.subr.mxu0 0.0
        %719 = vmatpush1.msra.mxu0 0.0
        %720 = vmatprep.subr.mxu0 0.0
        %721 = vmatpush1.msra.mxu0 0.0
        %722 = vmatprep.subr.mxu0 0.0
        %723 = vmatpush1.msra.mxu0 0.0
        %724 = vmatprep.subr.mxu0 0.0
        %725 = vmatpush1.msra.mxu0 0.0
        %726 = vmatprep.subr.mxu0 0.0
        %727 = vmatpush1.msra.mxu0 0.0
        %728 = vmatprep.subr.mxu0 0.0
        %729 = vmatpush1.msra.mxu0 0.0
        %730 = vmatprep.subr.mxu0 0.0
        %731 = vmatpush1.msra.mxu0 0.0
        %732 = vmatprep.subr.mxu0 0.0
        %733 = vmatpush1.msra.mxu0 0.0
        %734 = vmatprep.subr.mxu0 0.0
        %735 = vmatpush1.msra.mxu0 0.0
        %736 = vmatprep.subr.mxu0 0.0
        %737 = vmatpush1.msra.mxu0 0.0
        %738 = vmatprep.subr.mxu0 0.0
        %739 = vmatpush1.msra.mxu0 0.0
        %740 = vmatprep.subr.mxu0 0.0
        %741 = vmatpush1.msra.mxu0 0.0
        %742 = vmatprep.subr.mxu0 0.0
        %743 = vmatpush1.msra.mxu0 0.0
        %744 = vmatprep.subr.mxu0 0.0
        %745 = vmatpush1.msra.mxu0 0.0
        %746 = vmatprep.subr.mxu0 0.0
        %747 = vmatpush1.msra.mxu0 0.0
        %748 = vmatprep.mubr.f32.mxu0 0.0
        %v749 = vand.u32 %v301, 4294901760
        %750 = vmatmul.mubr.f32.gmra.mrb[0].mxu0 %v749
        %v751 = vpop.f32.mrb[0].mxu0
        %v752 = vadd.f32 %v659, %v751
        %v753 = vpop.f32.mrb[0].mxu0
        %v754 = vadd.f32 %v661, %v753
        %755 = vmatprep.mubr.f32.mxu0 0.0
        %v756 = vand.u32 %v304, 4294901760
        %757 = vmatmul.mubr.f32.gmra.mrb[0].mxu0 %v756
        %v758 = vpop.f32.mrb[0].mxu0
        %v759 = vadd.f32 %v668, %v758
        %v760 = vpop.f32.mrb[0].mxu0
        %v761 = vadd.f32 %v670, %v760
        %762 = vdwg.mxu0
        %v763 = vand.u32 %v287, 4294901760
        %764 = vmatprep.subr.mxu0 %v763
        %v765 = vand.u32 %v293, 4294901760
        %766 = vmatpush1.msra.mxu0 %v765
        %v767 = vand.u32 %v291, 4294901760
        %768 = vmatprep.subr.mxu0 %v767
        %v769 = vand.u32 %v294, 4294901760
        %770 = vmatpush1.msra.mxu0 %v769
        %771 = vmatprep.subr.mxu0 0.0
        %772 = vmatpush1.msra.mxu0 0.0
        %773 = vmatprep.subr.mxu0 0.0
        %774 = vmatpush1.msra.mxu0 0.0
        %775 = vmatprep.subr.mxu0 0.0
        %776 = vmatpush1.msra.mxu0 0.0
        %777 = vmatprep.subr.mxu0 0.0
        %778 = vmatpush1.msra.mxu0 0.0
        %779 = vmatprep.subr.mxu0 0.0
        %780 = vmatpush1.msra.mxu0 0.0
        %781 = vmatprep.subr.mxu0 0.0
        %782 = vmatpush1.msra.mxu0 0.0
        %783 = vmatprep.subr.mxu0 0.0
        %784 = vmatpush1.msra.mxu0 0.0
        %785 = vmatprep.subr.mxu0 0.0
        %786 = vmatpush1.msra.mxu0 0.0
        %787 = vmatprep.subr.mxu0 0.0
        %788 = vmatpush1.msra.mxu0 0.0
        %789 = vmatprep.subr.mxu0 0.0
        %790 = vmatpush1.msra.mxu0 0.0
        %791 = vmatprep.subr.mxu0 0.0
        %792 = vmatpush1.msra.mxu0 0.0
        %793 = vmatprep.subr.mxu0 0.0
        %794 = vmatpush1.msra.mxu0 0.0
        %795 = vmatprep.subr.mxu0 0.0
        %796 = vmatpush1.msra.mxu0 0.0
        %797 = vmatprep.subr.mxu0 0.0
        %798 = vmatpush1.msra.mxu0 0.0
        %799 = vmatprep.subr.mxu0 0.0
        %800 = vmatpush1.msra.mxu0 0.0
        %801 = vmatprep.subr.mxu0 0.0
        %802 = vmatpush1.msra.mxu0 0.0
        %803 = vmatprep.subr.mxu0 0.0
        %804 = vmatpush1.msra.mxu0 0.0
        %805 = vmatprep.subr.mxu0 0.0
        %806 = vmatpush1.msra.mxu0 0.0
        %807 = vmatprep.subr.mxu0 0.0
        %808 = vmatpush1.msra.mxu0 0.0
        %809 = vmatprep.subr.mxu0 0.0
        %810 = vmatpush1.msra.mxu0 0.0
        %811 = vmatprep.subr.mxu0 0.0
        %812 = vmatpush1.msra.mxu0 0.0
        %813 = vmatprep.subr.mxu0 0.0
        %814 = vmatpush1.msra.mxu0 0.0
        %815 = vmatprep.subr.mxu0 0.0
        %816 = vmatpush1.msra.mxu0 0.0
        %817 = vmatprep.subr.mxu0 0.0
        %818 = vmatpush1.msra.mxu0 0.0
        %819 = vmatprep.subr.mxu0 0.0
        %820 = vmatpush1.msra.mxu0 0.0
        %821 = vmatprep.subr.mxu0 0.0
        %822 = vmatpush1.msra.mxu0 0.0
        %823 = vmatprep.subr.mxu0 0.0
        %824 = vmatpush1.msra.mxu0 0.0
        %825 = vmatprep.subr.mxu0 0.0
        %826 = vmatpush1.msra.mxu0 0.0
        %827 = vmatprep.subr.mxu0 0.0
        %828 = vmatpush1.msra.mxu0 0.0
        %829 = vmatprep.subr.mxu0 0.0
        %830 = vmatpush1.msra.mxu0 0.0
        %831 = vmatprep.mubr.f32.mxu0 0.0
        %v832 = vand.u32 %v301, 4294901760
        %833 = vmatmul.mubr.f32.gmra.mrb[0].mxu0 %v832
        %v834 = vpop.f32.mrb[0].mxu0
        %v835 = vadd.f32 %v752, %v834
        %v836 = vpop.f32.mrb[0].mxu0
        %v837 = vadd.f32 %v754, %v836
        %838 = vmatprep.mubr.f32.mxu0 0.0
        %v839 = vand.u32 %v304, 4294901760
        %840 = vmatmul.mubr.f32.gmra.mrb[0].mxu0 %v839
        %v841 = vpop.f32.mrb[0].mxu0
        %v842 = vadd.f32 %v759, %v841
        %v843 = vpop.f32.mrb[0].mxu0
        %v844 = vadd.f32 %v761, %v843
        %845 = vdwg.mxu0
        %v847 = vsel %vm299, %v275, 0
        %v850 = vsel %vm299, %v276, 0
        %v852 = vand.u32 %v272, 4294901760
        %853 = vmatprep.subr.mxu0 %v852
        %v854 = vand.u32 %v271, 4294901760
        %855 = vmatpush1.msra.mxu0 %v854
        %v856 = vand.u32 %v274, 4294901760
        %857 = vmatprep.subr.mxu0 %v856
        %v858 = vand.u32 %v273, 4294901760
        %859 = vmatpush1.msra.mxu0 %v858
        %860 = vmatprep.subr.mxu0 0.0
        %861 = vmatpush1.msra.mxu0 0.0
        %862 = vmatprep.subr.mxu0 0.0
        %863 = vmatpush1.msra.mxu0 0.0
        %864 = vmatprep.subr.mxu0 0.0
        %865 = vmatpush1.msra.mxu0 0.0
        %866 = vmatprep.subr.mxu0 0.0
        %867 = vmatpush1.msra.mxu0 0.0
        %868 = vmatprep.subr.mxu0 0.0
        %869 = vmatpush1.msra.mxu0 0.0
        %870 = vmatprep.subr.mxu0 0.0
        %871 = vmatpush1.msra.mxu0 0.0
        %872 = vmatprep.subr.mxu0 0.0
        %873 = vmatpush1.msra.mxu0 0.0
        %874 = vmatprep.subr.mxu0 0.0
        %875 = vmatpush1.msra.mxu0 0.0
        %876 = vmatprep.subr.mxu0 0.0
        %877 = vmatpush1.msra.mxu0 0.0
        %878 = vmatprep.subr.mxu0 0.0
        %879 = vmatpush1.msra.mxu0 0.0
        %880 = vmatprep.subr.mxu0 0.0
        %881 = vmatpush1.msra.mxu0 0.0
        %882 = vmatprep.subr.mxu0 0.0
        %883 = vmatpush1.msra.mxu0 0.0
        %884 = vmatprep.subr.mxu0 0.0
        %885 = vmatpush1.msra.mxu0 0.0
        %886 = vmatprep.subr.mxu0 0.0
        %887 = vmatpush1.msra.mxu0 0.0
        %888 = vmatprep.subr.mxu0 0.0
        %889 = vmatpush1.msra.mxu0 0.0
        %890 = vmatprep.subr.mxu0 0.0
        %891 = vmatpush1.msra.mxu0 0.0
        %892 = vmatprep.subr.mxu0 0.0
        %893 = vmatpush1.msra.mxu0 0.0
        %894 = vmatprep.subr.mxu0 0.0
        %895 = vmatpush1.msra.mxu0 0.0
        %896 = vmatprep.subr.mxu0 0.0
        %897 = vmatpush1.msra.mxu0 0.0
        %898 = vmatprep.subr.mxu0 0.0
        %899 = vmatpush1.msra.mxu0 0.0
        %900 = vmatprep.subr.mxu0 0.0
        %901 = vmatpush1.msra.mxu0 0.0
        %902 = vmatprep.subr.mxu0 0.0
        %903 = vmatpush1.msra.mxu0 0.0
        %904 = vmatprep.subr.mxu0 0.0
        %905 = vmatpush1.msra.mxu0 0.0
        %906 = vmatprep.subr.mxu0 0.0
        %907 = vmatpush1.msra.mxu0 0.0
        %908 = vmatprep.subr.mxu0 0.0
        %909 = vmatpush1.msra.mxu0 0.0
        %910 = vmatprep.subr.mxu0 0.0
        %911 = vmatpush1.msra.mxu0 0.0
        %912 = vmatprep.subr.mxu0 0.0
        %913 = vmatpush1.msra.mxu0 0.0
        %914 = vmatprep.subr.mxu0 0.0
        %915 = vmatpush1.msra.mxu0 0.0
        %916 = vmatprep.subr.mxu0 0.0
        %917 = vmatpush1.msra.mxu0 0.0
        %918 = vmatprep.subr.mxu0 0.0
        %919 = vmatpush1.msra.mxu0 0.0
        %920 = vmatprep.mubr.f32.mxu0 0.0
        %v921 = vand.u32 %v847, 4294901760
        %v922 = vsub.f32 %v847, %v921
        %v923 = vand.u32 %v922, 4294901760
        %v924 = vsub.f32 %v922, %v923
        %v925 = vand.u32 %v924, 4294901760
        %926 = vmatmul.mubr.f32.gmra.mrb[0].mxu0 %v925
        %v927 = vpop.f32.mrb[0].mxu0
        %v928 = vadd.f32 %v835, %v927
        %v929 = vpop.f32.mrb[0].mxu0
        %v930 = vadd.f32 %v837, %v929
        %931 = vmatprep.mubr.f32.mxu0 0.0
        %v932 = vand.u32 %v850, 4294901760
        %v933 = vsub.f32 %v850, %v932
        %v934 = vand.u32 %v933, 4294901760
        %v935 = vsub.f32 %v933, %v934
        %v936 = vand.u32 %v935, 4294901760
        %937 = vmatmul.mubr.f32.gmra.mrb[0].mxu0 %v936
        %v938 = vpop.f32.mrb[0].mxu0
        %v939 = vadd.f32 %v842, %v938
        %v940 = vpop.f32.mrb[0].mxu0
        %v941 = vadd.f32 %v844, %v940
        %942 = vdwg.mxu0
        %v943 = vand.u32 %v272, 4294901760
        %v944 = vsub.f32 %v272, %v943
        %v945 = vand.u32 %v944, 4294901760
        %v946 = vsub.f32 %v944, %v945
        %v947 = vand.u32 %v946, 4294901760
        %948 = vmatprep.subr.mxu0 %v947
        %v949 = vand.u32 %v271, 4294901760
        %v950 = vsub.f32 %v271, %v949
        %v951 = vand.u32 %v950, 4294901760
        %v952 = vsub.f32 %v950, %v951
        %v953 = vand.u32 %v952, 4294901760
        %954 = vmatpush1.msra.mxu0 %v953
        %v955 = vand.u32 %v274, 4294901760
        %v956 = vsub.f32 %v274, %v955
        %v957 = vand.u32 %v956, 4294901760
        %v958 = vsub.f32 %v956, %v957
        %v959 = vand.u32 %v958, 4294901760
        %960 = vmatprep.subr.mxu0 %v959
        %v961 = vand.u32 %v273, 4294901760
        %v962 = vsub.f32 %v273, %v961
        %v963 = vand.u32 %v962, 4294901760
        %v964 = vsub.f32 %v962, %v963
        %v965 = vand.u32 %v964, 4294901760
        %966 = vmatpush1.msra.mxu0 %v965
        %967 = vmatprep.subr.mxu0 0.0
        %968 = vmatpush1.msra.mxu0 0.0
        %969 = vmatprep.subr.mxu0 0.0
        %970 = vmatpush1.msra.mxu0 0.0
        %971 = vmatprep.subr.mxu0 0.0
        %972 = vmatpush1.msra.mxu0 0.0
        %973 = vmatprep.subr.mxu0 0.0
        %974 = vmatpush1.msra.mxu0 0.0
        %975 = vmatprep.subr.mxu0 0.0
        %976 = vmatpush1.msra.mxu0 0.0
        %977 = vmatprep.subr.mxu0 0.0
        %978 = vmatpush1.msra.mxu0 0.0
        %979 = vmatprep.subr.mxu0 0.0
        %980 = vmatpush1.msra.mxu0 0.0
        %981 = vmatprep.subr.mxu0 0.0
        %982 = vmatpush1.msra.mxu0 0.0
        %983 = vmatprep.subr.mxu0 0.0
        %984 = vmatpush1.msra.mxu0 0.0
        %985 = vmatprep.subr.mxu0 0.0
        %986 = vmatpush1.msra.mxu0 0.0
        %987 = vmatprep.subr.mxu0 0.0
        %988 = vmatpush1.msra.mxu0 0.0
        %989 = vmatprep.subr.mxu0 0.0
        %990 = vmatpush1.msra.mxu0 0.0
        %991 = vmatprep.subr.mxu0 0.0
        %992 = vmatpush1.msra.mxu0 0.0
        %993 = vmatprep.subr.mxu0 0.0
        %994 = vmatpush1.msra.mxu0 0.0
        %995 = vmatprep.subr.mxu0 0.0
        %996 = vmatpush1.msra.mxu0 0.0
        %997 = vmatprep.subr.mxu0 0.0
        %998 = vmatpush1.msra.mxu0 0.0
        %999 = vmatprep.subr.mxu0 0.0
        %1000 = vmatpush1.msra.mxu0 0.0
        %1001 = vmatprep.subr.mxu0 0.0
        %1002 = vmatpush1.msra.mxu0 0.0
        %1003 = vmatprep.subr.mxu0 0.0
        %1004 = vmatpush1.msra.mxu0 0.0
        %1005 = vmatprep.subr.mxu0 0.0
        %1006 = vmatpush1.msra.mxu0 0.0
        %1007 = vmatprep.subr.mxu0 0.0
        %1008 = vmatpush1.msra.mxu0 0.0
        %1009 = vmatprep.subr.mxu0 0.0
        %1010 = vmatpush1.msra.mxu0 0.0
        %1011 = vmatprep.subr.mxu0 0.0
        %1012 = vmatpush1.msra.mxu0 0.0
        %1013 = vmatprep.subr.mxu0 0.0
        %1014 = vmatpush1.msra.mxu0 0.0
        %1015 = vmatprep.subr.mxu0 0.0
        %1016 = vmatpush1.msra.mxu0 0.0
        %1017 = vmatprep.subr.mxu0 0.0
        %1018 = vmatpush1.msra.mxu0 0.0
        %1019 = vmatprep.subr.mxu0 0.0
        %1020 = vmatpush1.msra.mxu0 0.0
        %1021 = vmatprep.subr.mxu0 0.0
        %1022 = vmatpush1.msra.mxu0 0.0
        %1023 = vmatprep.subr.mxu0 0.0
        %1024 = vmatpush1.msra.mxu0 0.0
        %1025 = vmatprep.subr.mxu0 0.0
        %1026 = vmatpush1.msra.mxu0 0.0
        %1027 = vmatprep.mubr.f32.mxu0 0.0
        %v1028 = vand.u32 %v847, 4294901760
        %1029 = vmatmul.mubr.f32.gmra.mrb[0].mxu0 %v1028
        %v1030 = vpop.f32.mrb[0].mxu0
        %v1031 = vadd.f32 %v928, %v1030
        %v1032 = vpop.f32.mrb[0].mxu0
        %v1033 = vadd.f32 %v930, %v1032
        %1034 = vmatprep.mubr.f32.mxu0 0.0
        %v1035 = vand.u32 %v850, 4294901760
        %1036 = vmatmul.mubr.f32.gmra.mrb[0].mxu0 %v1035
        %v1037 = vpop.f32.mrb[0].mxu0
        %v1038 = vadd.f32 %v939, %v1037
        %v1039 = vpop.f32.mrb[0].mxu0
        %v1040 = vadd.f32 %v941, %v1039
        %1041 = vdwg.mxu0
        %v1042 = vand.u32 %v272, 4294901760
        %v1043 = vsub.f32 %v272, %v1042
        %1044 = vmatprep.subr.mxu0 %v1043
        %v1045 = vand.u32 %v271, 4294901760
        %v1046 = vsub.f32 %v271, %v1045
        %1047 = vmatpush1.msra.mxu0 %v1046
        %v1048 = vand.u32 %v274, 4294901760
        %v1049 = vsub.f32 %v274, %v1048
        %1050 = vmatprep.subr.mxu0 %v1049
        %v1051 = vand.u32 %v273, 4294901760
        %v1052 = vsub.f32 %v273, %v1051
        %1053 = vmatpush1.msra.mxu0 %v1052
        %1054 = vmatprep.subr.mxu0 0.0
        %1055 = vmatpush1.msra.mxu0 0.0
        %1056 = vmatprep.subr.mxu0 0.0
        %1057 = vmatpush1.msra.mxu0 0.0
        %1058 = vmatprep.subr.mxu0 0.0
        %1059 = vmatpush1.msra.mxu0 0.0
        %1060 = vmatprep.subr.mxu0 0.0
        %1061 = vmatpush1.msra.mxu0 0.0
        %1062 = vmatprep.subr.mxu0 0.0
        %1063 = vmatpush1.msra.mxu0 0.0
        %1064 = vmatprep.subr.mxu0 0.0
        %1065 = vmatpush1.msra.mxu0 0.0
        %1066 = vmatprep.subr.mxu0 0.0
        %1067 = vmatpush1.msra.mxu0 0.0
        %1068 = vmatprep.subr.mxu0 0.0
        %1069 = vmatpush1.msra.mxu0 0.0
        %1070 = vmatprep.subr.mxu0 0.0
        %1071 = vmatpush1.msra.mxu0 0.0
        %1072 = vmatprep.subr.mxu0 0.0
        %1073 = vmatpush1.msra.mxu0 0.0
        %1074 = vmatprep.subr.mxu0 0.0
        %1075 = vmatpush1.msra.mxu0 0.0
        %1076 = vmatprep.subr.mxu0 0.0
        %1077 = vmatpush1.msra.mxu0 0.0
        %1078 = vmatprep.subr.mxu0 0.0
        %1079 = vmatpush1.msra.mxu0 0.0
        %1080 = vmatprep.subr.mxu0 0.0
        %1081 = vmatpush1.msra.mxu0 0.0
        %1082 = vmatprep.subr.mxu0 0.0
        %1083 = vmatpush1.msra.mxu0 0.0
        %1084 = vmatprep.subr.mxu0 0.0
        %1085 = vmatpush1.msra.mxu0 0.0
        %1086 = vmatprep.subr.mxu0 0.0
        %1087 = vmatpush1.msra.mxu0 0.0
        %1088 = vmatprep.subr.mxu0 0.0
        %1089 = vmatpush1.msra.mxu0 0.0
        %1090 = vmatprep.subr.mxu0 0.0
        %1091 = vmatpush1.msra.mxu0 0.0
        %1092 = vmatprep.subr.mxu0 0.0
        %1093 = vmatpush1.msra.mxu0 0.0
        %1094 = vmatprep.subr.mxu0 0.0
        %1095 = vmatpush1.msra.mxu0 0.0
        %1096 = vmatprep.subr.mxu0 0.0
        %1097 = vmatpush1.msra.mxu0 0.0
        %1098 = vmatprep.subr.mxu0 0.0
        %1099 = vmatpush1.msra.mxu0 0.0
        %1100 = vmatprep.subr.mxu0 0.0
        %1101 = vmatpush1.msra.mxu0 0.0
        %1102 = vmatprep.subr.mxu0 0.0
        %1103 = vmatpush1.msra.mxu0 0.0
        %1104 = vmatprep.subr.mxu0 0.0
        %1105 = vmatpush1.msra.mxu0 0.0
        %1106 = vmatprep.subr.mxu0 0.0
        %1107 = vmatpush1.msra.mxu0 0.0
        %1108 = vmatprep.subr.mxu0 0.0
        %1109 = vmatpush1.msra.mxu0 0.0
        %1110 = vmatprep.subr.mxu0 0.0
        %1111 = vmatpush1.msra.mxu0 0.0
        %1112 = vmatprep.subr.mxu0 0.0
        %1113 = vmatpush1.msra.mxu0 0.0
        %1114 = vmatprep.mubr.f32.mxu0 0.0
        %v1115 = vand.u32 %v847, 4294901760
        %v1116 = vsub.f32 %v847, %v1115
        %1117 = vmatmul.mubr.f32.gmra.mrb[0].mxu0 %v1116
        %v1118 = vpop.f32.mrb[0].mxu0
        %v1119 = vadd.f32 %v1031, %v1118
        %v1120 = vpop.f32.mrb[0].mxu0
        %v1121 = vadd.f32 %v1033, %v1120
        %1122 = vmatprep.mubr.f32.mxu0 0.0
        %v1123 = vand.u32 %v850, 4294901760
        %v1124 = vsub.f32 %v850, %v1123
        %1125 = vmatmul.mubr.f32.gmra.mrb[0].mxu0 %v1124
        %v1126 = vpop.f32.mrb[0].mxu0
        %v1127 = vadd.f32 %v1038, %v1126
        %v1128 = vpop.f32.mrb[0].mxu0
        %v1129 = vadd.f32 %v1040, %v1128
        %1130 = vdwg.mxu0
        %v1131 = vand.u32 %v272, 4294901760
        %1132 = vmatprep.subr.mxu0 %v1131
        %v1133 = vand.u32 %v271, 4294901760
        %1134 = vmatpush1.msra.mxu0 %v1133
        %v1135 = vand.u32 %v274, 4294901760
        %1136 = vmatprep.subr.mxu0 %v1135
        %v1137 = vand.u32 %v273, 4294901760
        %1138 = vmatpush1.msra.mxu0 %v1137
        %1139 = vmatprep.subr.mxu0 0.0
        %1140 = vmatpush1.msra.mxu0 0.0
        %1141 = vmatprep.subr.mxu0 0.0
        %1142 = vmatpush1.msra.mxu0 0.0
        %1143 = vmatprep.subr.mxu0 0.0
        %1144 = vmatpush1.msra.mxu0 0.0
        %1145 = vmatprep.subr.mxu0 0.0
        %1146 = vmatpush1.msra.mxu0 0.0
        %1147 = vmatprep.subr.mxu0 0.0
        %1148 = vmatpush1.msra.mxu0 0.0
        %1149 = vmatprep.subr.mxu0 0.0
        %1150 = vmatpush1.msra.mxu0 0.0
        %1151 = vmatprep.subr.mxu0 0.0
        %1152 = vmatpush1.msra.mxu0 0.0
        %1153 = vmatprep.subr.mxu0 0.0
        %1154 = vmatpush1.msra.mxu0 0.0
        %1155 = vmatprep.subr.mxu0 0.0
        %1156 = vmatpush1.msra.mxu0 0.0
        %1157 = vmatprep.subr.mxu0 0.0
        %1158 = vmatpush1.msra.mxu0 0.0
        %1159 = vmatprep.subr.mxu0 0.0
        %1160 = vmatpush1.msra.mxu0 0.0
        %1161 = vmatprep.subr.mxu0 0.0
        %1162 = vmatpush1.msra.mxu0 0.0
        %1163 = vmatprep.subr.mxu0 0.0
        %1164 = vmatpush1.msra.mxu0 0.0
        %1165 = vmatprep.subr.mxu0 0.0
        %1166 = vmatpush1.msra.mxu0 0.0
        %1167 = vmatprep.subr.mxu0 0.0
        %1168 = vmatpush1.msra.mxu0 0.0
        %1169 = vmatprep.subr.mxu0 0.0
        %1170 = vmatpush1.msra.mxu0 0.0
        %1171 = vmatprep.subr.mxu0 0.0
        %1172 = vmatpush1.msra.mxu0 0.0
        %1173 = vmatprep.subr.mxu0 0.0
        %1174 = vmatpush1.msra.mxu0 0.0
        %1175 = vmatprep.subr.mxu0 0.0
        %1176 = vmatpush1.msra.mxu0 0.0
        %1177 = vmatprep.subr.mxu0 0.0
        %1178 = vmatpush1.msra.mxu0 0.0
        %1179 = vmatprep.subr.mxu0 0.0
        %1180 = vmatpush1.msra.mxu0 0.0
        %1181 = vmatprep.subr.mxu0 0.0
        %1182 = vmatpush1.msra.mxu0 0.0
        %1183 = vmatprep.subr.mxu0 0.0
        %1184 = vmatpush1.msra.mxu0 0.0
        %1185 = vmatprep.subr.mxu0 0.0
        %1186 = vmatpush1.msra.mxu0 0.0
        %1187 = vmatprep.subr.mxu0 0.0
        %1188 = vmatpush1.msra.mxu0 0.0
        %1189 = vmatprep.subr.mxu0 0.0
        %1190 = vmatpush1.msra.mxu0 0.0
        %1191 = vmatprep.subr.mxu0 0.0
        %1192 = vmatpush1.msra.mxu0 0.0
        %1193 = vmatprep.subr.mxu0 0.0
        %1194 = vmatpush1.msra.mxu0 0.0
        %1195 = vmatprep.subr.mxu0 0.0
        %1196 = vmatpush1.msra.mxu0 0.0
        %1197 = vmatprep.subr.mxu0 0.0
        %1198 = vmatpush1.msra.mxu0 0.0
        %1199 = vmatprep.mubr.f32.mxu0 0.0
        %v1200 = vand.u32 %v847, 4294901760
        %v1201 = vsub.f32 %v847, %v1200
        %v1202 = vand.u32 %v1201, 4294901760
        %1203 = vmatmul.mubr.f32.gmra.mrb[0].mxu0 %v1202
        %v1204 = vpop.f32.mrb[0].mxu0
        %v1205 = vadd.f32 %v1119, %v1204
        %v1206 = vpop.f32.mrb[0].mxu0
        %v1207 = vadd.f32 %v1121, %v1206
        %1208 = vmatprep.mubr.f32.mxu0 0.0
        %v1209 = vand.u32 %v850, 4294901760
        %v1210 = vsub.f32 %v850, %v1209
        %v1211 = vand.u32 %v1210, 4294901760
        %1212 = vmatmul.mubr.f32.gmra.mrb[0].mxu0 %v1211
        %v1213 = vpop.f32.mrb[0].mxu0
        %v1214 = vadd.f32 %v1127, %v1213
        %v1215 = vpop.f32.mrb[0].mxu0
        %v1216 = vadd.f32 %v1129, %v1215
        %1217 = vdwg.mxu0
        %v1218 = vand.u32 %v272, 4294901760
        %v1219 = vsub.f32 %v272, %v1218
        %v1220 = vand.u32 %v1219, 4294901760
        %1221 = vmatprep.subr.mxu0 %v1220
        %v1222 = vand.u32 %v271, 4294901760
        %v1223 = vsub.f32 %v271, %v1222
        %v1224 = vand.u32 %v1223, 4294901760
        %1225 = vmatpush1.msra.mxu0 %v1224
        %v1226 = vand.u32 %v274, 4294901760
        %v1227 = vsub.f32 %v274, %v1226
        %v1228 = vand.u32 %v1227, 4294901760
        %1229 = vmatprep.subr.mxu0 %v1228
        %v1230 = vand.u32 %v273, 4294901760
        %v1231 = vsub.f32 %v273, %v1230
        %v1232 = vand.u32 %v1231, 4294901760
        %1233 = vmatpush1.msra.mxu0 %v1232
        %1234 = vmatprep.subr.mxu0 0.0
        %1235 = vmatpush1.msra.mxu0 0.0
        %1236 = vmatprep.subr.mxu0 0.0
        %1237 = vmatpush1.msra.mxu0 0.0
        %1238 = vmatprep.subr.mxu0 0.0
        %1239 = vmatpush1.msra.mxu0 0.0
        %1240 = vmatprep.subr.mxu0 0.0
        %1241 = vmatpush1.msra.mxu0 0.0
        %1242 = vmatprep.subr.mxu0 0.0
        %1243 = vmatpush1.msra.mxu0 0.0
        %1244 = vmatprep.subr.mxu0 0.0
        %1245 = vmatpush1.msra.mxu0 0.0
        %1246 = vmatprep.subr.mxu0 0.0
        %1247 = vmatpush1.msra.mxu0 0.0
        %1248 = vmatprep.subr.mxu0 0.0
        %1249 = vmatpush1.msra.mxu0 0.0
        %1250 = vmatprep.subr.mxu0 0.0
        %1251 = vmatpush1.msra.mxu0 0.0
        %1252 = vmatprep.subr.mxu0 0.0
        %1253 = vmatpush1.msra.mxu0 0.0
        %1254 = vmatprep.subr.mxu0 0.0
        %1255 = vmatpush1.msra.mxu0 0.0
        %1256 = vmatprep.subr.mxu0 0.0
        %1257 = vmatpush1.msra.mxu0 0.0
        %1258 = vmatprep.subr.mxu0 0.0
        %1259 = vmatpush1.msra.mxu0 0.0
        %1260 = vmatprep.subr.mxu0 0.0
        %1261 = vmatpush1.msra.mxu0 0.0
        %1262 = vmatprep.subr.mxu0 0.0
        %1263 = vmatpush1.msra.mxu0 0.0
        %1264 = vmatprep.subr.mxu0 0.0
        %1265 = vmatpush1.msra.mxu0 0.0
        %1266 = vmatprep.subr.mxu0 0.0
        %1267 = vmatpush1.msra.mxu0 0.0
        %1268 = vmatprep.subr.mxu0 0.0
        %1269 = vmatpush1.msra.mxu0 0.0
        %1270 = vmatprep.subr.mxu0 0.0
        %1271 = vmatpush1.msra.mxu0 0.0
        %1272 = vmatprep.subr.mxu0 0.0
        %1273 = vmatpush1.msra.mxu0 0.0
        %1274 = vmatprep.subr.mxu0 0.0
        %1275 = vmatpush1.msra.mxu0 0.0
        %1276 = vmatprep.subr.mxu0 0.0
        %1277 = vmatpush1.msra.mxu0 0.0
        %1278 = vmatprep.subr.mxu0 0.0
        %1279 = vmatpush1.msra.mxu0 0.0
        %1280 = vmatprep.subr.mxu0 0.0
        %1281 = vmatpush1.msra.mxu0 0.0
        %1282 = vmatprep.subr.mxu0 0.0
        %1283 = vmatpush1.msra.mxu0 0.0
        %1284 = vmatprep.subr.mxu0 0.0
        %1285 = vmatpush1.msra.mxu0 0.0
        %1286 = vmatprep.subr.mxu0 0.0
        %1287 = vmatpush1.msra.mxu0 0.0
        %1288 = vmatprep.subr.mxu0 0.0
        %1289 = vmatpush1.msra.mxu0 0.0
        %1290 = vmatprep.subr.mxu0 0.0
        %1291 = vmatpush1.msra.mxu0 0.0
        %1292 = vmatprep.subr.mxu0 0.0
        %1293 = vmatpush1.msra.mxu0 0.0
        %1294 = vmatprep.mubr.f32.mxu0 0.0
        %v1295 = vand.u32 %v847, 4294901760
        %1296 = vmatmul.mubr.f32.gmra.mrb[0].mxu0 %v1295
        %v1297 = vpop.f32.mrb[0].mxu0
        %v1298 = vadd.f32 %v1205, %v1297
        %v1299 = vpop.f32.mrb[0].mxu0
        %v1300 = vadd.f32 %v1207, %v1299
        %1301 = vmatprep.mubr.f32.mxu0 0.0
        %v1302 = vand.u32 %v850, 4294901760
        %1303 = vmatmul.mubr.f32.gmra.mrb[0].mxu0 %v1302
        %v1304 = vpop.f32.mrb[0].mxu0
        %v1305 = vadd.f32 %v1214, %v1304
        %v1306 = vpop.f32.mrb[0].mxu0
        %v1307 = vadd.f32 %v1216, %v1306
        %1308 = vdwg.mxu0
        %v1309 = vand.u32 %v272, 4294901760
        %1310 = vmatprep.subr.mxu0 %v1309
        %v1311 = vand.u32 %v271, 4294901760
        %1312 = vmatpush1.msra.mxu0 %v1311
        %v1313 = vand.u32 %v274, 4294901760
        %1314 = vmatprep.subr.mxu0 %v1313
        %v1315 = vand.u32 %v273, 4294901760
        %1316 = vmatpush1.msra.mxu0 %v1315
        %1317 = vmatprep.subr.mxu0 0.0
        %1318 = vmatpush1.msra.mxu0 0.0
        %1319 = vmatprep.subr.mxu0 0.0
        %1320 = vmatpush1.msra.mxu0 0.0
        %1321 = vmatprep.subr.mxu0 0.0
        %1322 = vmatpush1.msra.mxu0 0.0
        %1323 = vmatprep.subr.mxu0 0.0
        %1324 = vmatpush1.msra.mxu0 0.0
        %1325 = vmatprep.subr.mxu0 0.0
        %1326 = vmatpush1.msra.mxu0 0.0
        %1327 = vmatprep.subr.mxu0 0.0
        %1328 = vmatpush1.msra.mxu0 0.0
        %1329 = vmatprep.subr.mxu0 0.0
        %1330 = vmatpush1.msra.mxu0 0.0
        %1331 = vmatprep.subr.mxu0 0.0
        %1332 = vmatpush1.msra.mxu0 0.0
        %1333 = vmatprep.subr.mxu0 0.0
        %1334 = vmatpush1.msra.mxu0 0.0
        %1335 = vmatprep.subr.mxu0 0.0
        %1336 = vmatpush1.msra.mxu0 0.0
        %1337 = vmatprep.subr.mxu0 0.0
        %1338 = vmatpush1.msra.mxu0 0.0
        %1339 = vmatprep.subr.mxu0 0.0
        %1340 = vmatpush1.msra.mxu0 0.0
        %1341 = vmatprep.subr.mxu0 0.0
        %1342 = vmatpush1.msra.mxu0 0.0
        %1343 = vmatprep.subr.mxu0 0.0
        %1344 = vmatpush1.msra.mxu0 0.0
        %1345 = vmatprep.subr.mxu0 0.0
        %1346 = vmatpush1.msra.mxu0 0.0
        %1347 = vmatprep.subr.mxu0 0.0
        %1348 = vmatpush1.msra.mxu0 0.0
        %1349 = vmatprep.subr.mxu0 0.0
        %1350 = vmatpush1.msra.mxu0 0.0
        %1351 = vmatprep.subr.mxu0 0.0
        %1352 = vmatpush1.msra.mxu0 0.0
        %1353 = vmatprep.subr.mxu0 0.0
        %1354 = vmatpush1.msra.mxu0 0.0
        %1355 = vmatprep.subr.mxu0 0.0
        %1356 = vmatpush1.msra.mxu0 0.0
        %1357 = vmatprep.subr.mxu0 0.0
        %1358 = vmatpush1.msra.mxu0 0.0
        %1359 = vmatprep.subr.mxu0 0.0
        %1360 = vmatpush1.msra.mxu0 0.0
        %1361 = vmatprep.subr.mxu0 0.0
        %1362 = vmatpush1.msra.mxu0 0.0
        %1363 = vmatprep.subr.mxu0 0.0
        %1364 = vmatpush1.msra.mxu0 0.0
        %1365 = vmatprep.subr.mxu0 0.0
        %1366 = vmatpush1.msra.mxu0 0.0
        %1367 = vmatprep.subr.mxu0 0.0
        %1368 = vmatpush1.msra.mxu0 0.0
        %1369 = vmatprep.subr.mxu0 0.0
        %1370 = vmatpush1.msra.mxu0 0.0
        %1371 = vmatprep.subr.mxu0 0.0
        %1372 = vmatpush1.msra.mxu0 0.0
        %1373 = vmatprep.subr.mxu0 0.0
        %1374 = vmatpush1.msra.mxu0 0.0
        %1375 = vmatprep.subr.mxu0 0.0
        %1376 = vmatpush1.msra.mxu0 0.0
        %1377 = vmatprep.mubr.f32.mxu0 0.0
        %v1378 = vand.u32 %v847, 4294901760
        %1379 = vmatmul.mubr.f32.gmra.mrb[0].mxu0 %v1378
        %v1380 = vpop.f32.mrb[0].mxu0
        %v1381 = vadd.f32 %v1298, %v1380
        %v1382 = vpop.f32.mrb[0].mxu0
        %v1383 = vadd.f32 %v1300, %v1382
        %1384 = vmatprep.mubr.f32.mxu0 0.0
        %v1385 = vand.u32 %v850, 4294901760
        %1386 = vmatmul.mubr.f32.gmra.mrb[0].mxu0 %v1385
        %v1387 = vpop.f32.mrb[0].mxu0
        %v1388 = vadd.f32 %v1305, %v1387
        %v1389 = vpop.f32.mrb[0].mxu0
        %v1390 = vadd.f32 %v1307, %v1389
        %1391 = vdwg.mxu0
        %s1392 = scalar_lea.vmem %s3, 2
        %v1393 = vld [vmem:[%s1392] sm:$0x3]
        %v1395 = vlaneseq
        %v1396 = vshrl.u32 %v1395, 7
        %v1397 = vsub.s32 0, %v1396
        %v1398 = vrot.slane %v1393, %v1397
        %v1399 = vlaneseq
        %v1400 = vshrl.u32 %v1399, 7
        %v1401 = vsub.s32 1, %v1400
        %v1402 = vrot.slane %v1393, %v1401
        %1403 = vrot.lane.b32.xlu0 %v1398, 2
        %v1404 = vpop.permute.xlu0 %1403
        %1405 = vrot.lane.b32.xlu0 %v1402, 2
        %v1406 = vpop.permute.xlu0 %1405
        %vm1407 = vcmask 15360
        %v1408 = vsel %vm1407, %v1404, %v1406
        %v1411 = vmul.f32 %v254, %v1404
        %v1412 = vmul.f32 %v257, %v1408
        %v1413 = vmul.f32 %v255, %v1404
        %v1414 = vmul.f32 %v258, %v1408
        %s1415 = scalar_lea.vmem [#allocation5], 32
        %v1416 = vld [vmem:[%s1415] sm:$0xff]
        %v1417 = vld [vmem:[%s1415 + $0x8] sm:$0xff]
        %1422 = vrot.lane.b32.xlu0 %v1411, 126
        %v1423 = vpop.permute.xlu0 %1422
        %1424 = vrot.lane.b32.xlu0 %v1412, 126
        %v1425 = vpop.permute.xlu0 %1424
        %1426 = vrot.lane.b32.xlu0 %v1413, 126
        %v1427 = vpop.permute.xlu0 %1426
        %1428 = vrot.lane.b32.xlu0 %v1414, 126
        %v1429 = vpop.permute.xlu0 %1428
        %vm1430 = vcmask 1031168
        %v1431 = vsel %vm1430, %v1423, %v1425
        %v1432 = vsel %vm1430, %v1427, %v1429
        %v1438 = vsel %vm299, %v1416, 0
        %v1441 = vsel %vm299, %v1417, 0
        %v1443 = vand.u32 %v1425, 4294901760
        %1444 = vmatprep.subr.mxu0 %v1443
        %v1445 = vand.u32 %v1431, 4294901760
        %1446 = vmatpush1.msra.mxu0 %v1445
        %v1447 = vand.u32 %v1429, 4294901760
        %1448 = vmatprep.subr.mxu0 %v1447
        %v1449 = vand.u32 %v1432, 4294901760
        %1450 = vmatpush1.msra.mxu0 %v1449
        %1451 = vmatprep.subr.mxu0 0.0
        %1452 = vmatpush1.msra.mxu0 0.0
        %1453 = vmatprep.subr.mxu0 0.0
        %1454 = vmatpush1.msra.mxu0 0.0
        %1455 = vmatprep.subr.mxu0 0.0
        %1456 = vmatpush1.msra.mxu0 0.0
        %1457 = vmatprep.subr.mxu0 0.0
        %1458 = vmatpush1.msra.mxu0 0.0
        %1459 = vmatprep.subr.mxu0 0.0
        %1460 = vmatpush1.msra.mxu0 0.0
        %1461 = vmatprep.subr.mxu0 0.0
        %1462 = vmatpush1.msra.mxu0 0.0
        %1463 = vmatprep.subr.mxu0 0.0
        %1464 = vmatpush1.msra.mxu0 0.0
        %1465 = vmatprep.subr.mxu0 0.0
        %1466 = vmatpush1.msra.mxu0 0.0
        %1467 = vmatprep.subr.mxu0 0.0
        %1468 = vmatpush1.msra.mxu0 0.0
        %1469 = vmatprep.subr.mxu0 0.0
        %1470 = vmatpush1.msra.mxu0 0.0
        %1471 = vmatprep.subr.mxu0 0.0
        %1472 = vmatpush1.msra.mxu0 0.0
        %1473 = vmatprep.subr.mxu0 0.0
        %1474 = vmatpush1.msra.mxu0 0.0
        %1475 = vmatprep.subr.mxu0 0.0
        %1476 = vmatpush1.msra.mxu0 0.0
        %1477 = vmatprep.subr.mxu0 0.0
        %1478 = vmatpush1.msra.mxu0 0.0
        %1479 = vmatprep.subr.mxu0 0.0
        %1480 = vmatpush1.msra.mxu0 0.0
        %1481 = vmatprep.subr.mxu0 0.0
        %1482 = vmatpush1.msra.mxu0 0.0
        %1483 = vmatprep.subr.mxu0 0.0
        %1484 = vmatpush1.msra.mxu0 0.0
        %1485 = vmatprep.subr.mxu0 0.0
        %1486 = vmatpush1.msra.mxu0 0.0
        %1487 = vmatprep.subr.mxu0 0.0
        %1488 = vmatpush1.msra.mxu0 0.0
        %1489 = vmatprep.subr.mxu0 0.0
        %1490 = vmatpush1.msra.mxu0 0.0
        %1491 = vmatprep.subr.mxu0 0.0
        %1492 = vmatpush1.msra.mxu0 0.0
        %1493 = vmatprep.subr.mxu0 0.0
        %1494 = vmatpush1.msra.mxu0 0.0
        %1495 = vmatprep.subr.mxu0 0.0
        %1496 = vmatpush1.msra.mxu0 0.0
        %1497 = vmatprep.subr.mxu0 0.0
        %1498 = vmatpush1.msra.mxu0 0.0
        %1499 = vmatprep.subr.mxu0 0.0
        %1500 = vmatpush1.msra.mxu0 0.0
        %1501 = vmatprep.subr.mxu0 0.0
        %1502 = vmatpush1.msra.mxu0 0.0
        %1503 = vmatprep.subr.mxu0 0.0
        %1504 = vmatpush1.msra.mxu0 0.0
        %1505 = vmatprep.subr.mxu0 0.0
        %1506 = vmatpush1.msra.mxu0 0.0
        %1507 = vmatprep.subr.mxu0 0.0
        %1508 = vmatpush1.msra.mxu0 0.0
        %1509 = vmatprep.subr.mxu0 0.0
        %1510 = vmatpush1.msra.mxu0 0.0
        %1511 = vmatprep.mubr.f32.mxu0 0.0
        %v1512 = vand.u32 %v1438, 4294901760
        %v1513 = vsub.f32 %v1438, %v1512
        %v1514 = vand.u32 %v1513, 4294901760
        %v1515 = vsub.f32 %v1513, %v1514
        %v1516 = vand.u32 %v1515, 4294901760
        %1517 = vmatmul.mubr.f32.gmra.mrb[0].mxu0 %v1516
        %v1518 = vpop.f32.mrb[0].mxu0
        %v1519 = vadd.f32 0.0, %v1518
        %v1520 = vpop.f32.mrb[0].mxu0
        %v1521 = vadd.f32 0.0, %v1520
        %1522 = vmatprep.mubr.f32.mxu0 0.0
        %v1523 = vand.u32 %v1441, 4294901760
        %v1524 = vsub.f32 %v1441, %v1523
        %v1525 = vand.u32 %v1524, 4294901760
        %v1526 = vsub.f32 %v1524, %v1525
        %v1527 = vand.u32 %v1526, 4294901760
        %1528 = vmatmul.mubr.f32.gmra.mrb[0].mxu0 %v1527
        %v1529 = vpop.f32.mrb[0].mxu0
        %v1530 = vadd.f32 0.0, %v1529
        %v1531 = vpop.f32.mrb[0].mxu0
        %v1532 = vadd.f32 0.0, %v1531
        %1533 = vdwg.mxu0
        %v1534 = vand.u32 %v1425, 4294901760
        %v1535 = vsub.f32 %v1425, %v1534
        %v1536 = vand.u32 %v1535, 4294901760
        %v1537 = vsub.f32 %v1535, %v1536
        %v1538 = vand.u32 %v1537, 4294901760
        %1539 = vmatprep.subr.mxu0 %v1538
        %v1540 = vand.u32 %v1431, 4294901760
        %v1541 = vsub.f32 %v1431, %v1540
        %v1542 = vand.u32 %v1541, 4294901760
        %v1543 = vsub.f32 %v1541, %v1542
        %v1544 = vand.u32 %v1543, 4294901760
        %1545 = vmatpush1.msra.mxu0 %v1544
        %v1546 = vand.u32 %v1429, 4294901760
        %v1547 = vsub.f32 %v1429, %v1546
        %v1548 = vand.u32 %v1547, 4294901760
        %v1549 = vsub.f32 %v1547, %v1548
        %v1550 = vand.u32 %v1549, 4294901760
        %1551 = vmatprep.subr.mxu0 %v1550
        %v1552 = vand.u32 %v1432, 4294901760
        %v1553 = vsub.f32 %v1432, %v1552
        %v1554 = vand.u32 %v1553, 4294901760
        %v1555 = vsub.f32 %v1553, %v1554
        %v1556 = vand.u32 %v1555, 4294901760
        %1557 = vmatpush1.msra.mxu0 %v1556
        %1558 = vmatprep.subr.mxu0 0.0
        %1559 = vmatpush1.msra.mxu0 0.0
        %1560 = vmatprep.subr.mxu0 0.0
        %1561 = vmatpush1.msra.mxu0 0.0
        %1562 = vmatprep.subr.mxu0 0.0
        %1563 = vmatpush1.msra.mxu0 0.0
        %1564 = vmatprep.subr.mxu0 0.0
        %1565 = vmatpush1.msra.mxu0 0.0
        %1566 = vmatprep.subr.mxu0 0.0
        %1567 = vmatpush1.msra.mxu0 0.0
        %1568 = vmatprep.subr.mxu0 0.0
        %1569 = vmatpush1.msra.mxu0 0.0
        %1570 = vmatprep.subr.mxu0 0.0
        %1571 = vmatpush1.msra.mxu0 0.0
        %1572 = vmatprep.subr.mxu0 0.0
        %1573 = vmatpush1.msra.mxu0 0.0
        %1574 = vmatprep.subr.mxu0 0.0
        %1575 = vmatpush1.msra.mxu0 0.0
        %1576 = vmatprep.subr.mxu0 0.0
        %1577 = vmatpush1.msra.mxu0 0.0
        %1578 = vmatprep.subr.mxu0 0.0
        %1579 = vmatpush1.msra.mxu0 0.0
        %1580 = vmatprep.subr.mxu0 0.0
        %1581 = vmatpush1.msra.mxu0 0.0
        %1582 = vmatprep.subr.mxu0 0.0
        %1583 = vmatpush1.msra.mxu0 0.0
        %1584 = vmatprep.subr.mxu0 0.0
        %1585 = vmatpush1.msra.mxu0 0.0
        %1586 = vmatprep.subr.mxu0 0.0
        %1587 = vmatpush1.msra.mxu0 0.0
        %1588 = vmatprep.subr.mxu0 0.0
        %1589 = vmatpush1.msra.mxu0 0.0
        %1590 = vmatprep.subr.mxu0 0.0
        %1591 = vmatpush1.msra.mxu0 0.0
        %1592 = vmatprep.subr.mxu0 0.0
        %1593 = vmatpush1.msra.mxu0 0.0
        %1594 = vmatprep.subr.mxu0 0.0
        %1595 = vmatpush1.msra.mxu0 0.0
        %1596 = vmatprep.subr.mxu0 0.0
        %1597 = vmatpush1.msra.mxu0 0.0
        %1598 = vmatprep.subr.mxu0 0.0
        %1599 = vmatpush1.msra.mxu0 0.0
        %1600 = vmatprep.subr.mxu0 0.0
        %1601 = vmatpush1.msra.mxu0 0.0
        %1602 = vmatprep.subr.mxu0 0.0
        %1603 = vmatpush1.msra.mxu0 0.0
        %1604 = vmatprep.subr.mxu0 0.0
        %1605 = vmatpush1.msra.mxu0 0.0
        %1606 = vmatprep.subr.mxu0 0.0
        %1607 = vmatpush1.msra.mxu0 0.0
        %1608 = vmatprep.subr.mxu0 0.0
        %1609 = vmatpush1.msra.mxu0 0.0
        %1610 = vmatprep.subr.mxu0 0.0
        %1611 = vmatpush1.msra.mxu0 0.0
        %1612 = vmatprep.subr.mxu0 0.0
        %1613 = vmatpush1.msra.mxu0 0.0
        %1614 = vmatprep.subr.mxu0 0.0
        %1615 = vmatpush1.msra.mxu0 0.0
        %1616 = vmatprep.subr.mxu0 0.0
        %1617 = vmatpush1.msra.mxu0 0.0
        %1618 = vmatprep.mubr.f32.mxu0 0.0
        %v1619 = vand.u32 %v1438, 4294901760
        %1620 = vmatmul.mubr.f32.gmra.mrb[0].mxu0 %v1619
        %v1621 = vpop.f32.mrb[0].mxu0
        %v1622 = vadd.f32 %v1519, %v1621
        %v1623 = vpop.f32.mrb[0].mxu0
        %v1624 = vadd.f32 %v1521, %v1623
        %1625 = vmatprep.mubr.f32.mxu0 0.0
        %v1626 = vand.u32 %v1441, 4294901760
        %1627 = vmatmul.mubr.f32.gmra.mrb[0].mxu0 %v1626
        %v1628 = vpop.f32.mrb[0].mxu0
        %v1629 = vadd.f32 %v1530, %v1628
        %v1630 = vpop.f32.mrb[0].mxu0
        %v1631 = vadd.f32 %v1532, %v1630
        %1632 = vdwg.mxu0
        %v1633 = vand.u32 %v1425, 4294901760
        %v1634 = vsub.f32 %v1425, %v1633
        %1635 = vmatprep.subr.mxu0 %v1634
        %v1636 = vand.u32 %v1431, 4294901760
        %v1637 = vsub.f32 %v1431, %v1636
        %1638 = vmatpush1.msra.mxu0 %v1637
        %v1639 = vand.u32 %v1429, 4294901760
        %v1640 = vsub.f32 %v1429, %v1639
        %1641 = vmatprep.subr.mxu0 %v1640
        %v1642 = vand.u32 %v1432, 4294901760
        %v1643 = vsub.f32 %v1432, %v1642
        %1644 = vmatpush1.msra.mxu0 %v1643
        %1645 = vmatprep.subr.mxu0 0.0
        %1646 = vmatpush1.msra.mxu0 0.0
        %1647 = vmatprep.subr.mxu0 0.0
        %1648 = vmatpush1.msra.mxu0 0.0
        %1649 = vmatprep.subr.mxu0 0.0
        %1650 = vmatpush1.msra.mxu0 0.0
        %1651 = vmatprep.subr.mxu0 0.0
        %1652 = vmatpush1.msra.mxu0 0.0
        %1653 = vmatprep.subr.mxu0 0.0
        %1654 = vmatpush1.msra.mxu0 0.0
        %1655 = vmatprep.subr.mxu0 0.0
        %1656 = vmatpush1.msra.mxu0 0.0
        %1657 = vmatprep.subr.mxu0 0.0
        %1658 = vmatpush1.msra.mxu0 0.0
        %1659 = vmatprep.subr.mxu0 0.0
        %1660 = vmatpush1.msra.mxu0 0.0
        %1661 = vmatprep.subr.mxu0 0.0
        %1662 = vmatpush1.msra.mxu0 0.0
        %1663 = vmatprep.subr.mxu0 0.0
        %1664 = vmatpush1.msra.mxu0 0.0
        %1665 = vmatprep.subr.mxu0 0.0
        %1666 = vmatpush1.msra.mxu0 0.0
        %1667 = vmatprep.subr.mxu0 0.0
        %1668 = vmatpush1.msra.mxu0 0.0
        %1669 = vmatprep.subr.mxu0 0.0
        %1670 = vmatpush1.msra.mxu0 0.0
        %1671 = vmatprep.subr.mxu0 0.0
        %1672 = vmatpush1.msra.mxu0 0.0
        %1673 = vmatprep.subr.mxu0 0.0
        %1674 = vmatpush1.msra.mxu0 0.0
        %1675 = vmatprep.subr.mxu0 0.0
        %1676 = vmatpush1.msra.mxu0 0.0
        %1677 = vmatprep.subr.mxu0 0.0
        %1678 = vmatpush1.msra.mxu0 0.0
        %1679 = vmatprep.subr.mxu0 0.0
        %1680 = vmatpush1.msra.mxu0 0.0
        %1681 = vmatprep.subr.mxu0 0.0
        %1682 = vmatpush1.msra.mxu0 0.0
        %1683 = vmatprep.subr.mxu0 0.0
        %1684 = vmatpush1.msra.mxu0 0.0
        %1685 = vmatprep.subr.mxu0 0.0
        %1686 = vmatpush1.msra.mxu0 0.0
        %1687 = vmatprep.subr.mxu0 0.0
        %1688 = vmatpush1.msra.mxu0 0.0
        %1689 = vmatprep.subr.mxu0 0.0
        %1690 = vmatpush1.msra.mxu0 0.0
        %1691 = vmatprep.subr.mxu0 0.0
        %1692 = vmatpush1.msra.mxu0 0.0
        %1693 = vmatprep.subr.mxu0 0.0
        %1694 = vmatpush1.msra.mxu0 0.0
        %1695 = vmatprep.subr.mxu0 0.0
        %1696 = vmatpush1.msra.mxu0 0.0
        %1697 = vmatprep.subr.mxu0 0.0
        %1698 = vmatpush1.msra.mxu0 0.0
        %1699 = vmatprep.subr.mxu0 0.0
        %1700 = vmatpush1.msra.mxu0 0.0
        %1701 = vmatprep.subr.mxu0 0.0
        %1702 = vmatpush1.msra.mxu0 0.0
        %1703 = vmatprep.subr.mxu0 0.0
        %1704 = vmatpush1.msra.mxu0 0.0
        %1705 = vmatprep.mubr.f32.mxu0 0.0
        %v1706 = vand.u32 %v1438, 4294901760
        %v1707 = vsub.f32 %v1438, %v1706
        %1708 = vmatmul.mubr.f32.gmra.mrb[0].mxu0 %v1707
        %v1709 = vpop.f32.mrb[0].mxu0
        %v1710 = vadd.f32 %v1622, %v1709
        %v1711 = vpop.f32.mrb[0].mxu0
        %v1712 = vadd.f32 %v1624, %v1711
        %1713 = vmatprep.mubr.f32.mxu0 0.0
        %v1714 = vand.u32 %v1441, 4294901760
        %v1715 = vsub.f32 %v1441, %v1714
        %1716 = vmatmul.mubr.f32.gmra.mrb[0].mxu0 %v1715
        %v1717 = vpop.f32.mrb[0].mxu0
        %v1718 = vadd.f32 %v1629, %v1717
        %v1719 = vpop.f32.mrb[0].mxu0
        %v1720 = vadd.f32 %v1631, %v1719
        %1721 = vdwg.mxu0
        %v1722 = vand.u32 %v1425, 4294901760
        %1723 = vmatprep.subr.mxu0 %v1722
        %v1724 = vand.u32 %v1431, 4294901760
        %1725 = vmatpush1.msra.mxu0 %v1724
        %v1726 = vand.u32 %v1429, 4294901760
        %1727 = vmatprep.subr.mxu0 %v1726
        %v1728 = vand.u32 %v1432, 4294901760
        %1729 = vmatpush1.msra.mxu0 %v1728
        %1730 = vmatprep.subr.mxu0 0.0
        %1731 = vmatpush1.msra.mxu0 0.0
        %1732 = vmatprep.subr.mxu0 0.0
        %1733 = vmatpush1.msra.mxu0 0.0
        %1734 = vmatprep.subr.mxu0 0.0
        %1735 = vmatpush1.msra.mxu0 0.0
        %1736 = vmatprep.subr.mxu0 0.0
        %1737 = vmatpush1.msra.mxu0 0.0
        %1738 = vmatprep.subr.mxu0 0.0
        %1739 = vmatpush1.msra.mxu0 0.0
        %1740 = vmatprep.subr.mxu0 0.0
        %1741 = vmatpush1.msra.mxu0 0.0
        %1742 = vmatprep.subr.mxu0 0.0
        %1743 = vmatpush1.msra.mxu0 0.0
        %1744 = vmatprep.subr.mxu0 0.0
        %1745 = vmatpush1.msra.mxu0 0.0
        %1746 = vmatprep.subr.mxu0 0.0
        %1747 = vmatpush1.msra.mxu0 0.0
        %1748 = vmatprep.subr.mxu0 0.0
        %1749 = vmatpush1.msra.mxu0 0.0
        %1750 = vmatprep.subr.mxu0 0.0
        %1751 = vmatpush1.msra.mxu0 0.0
        %1752 = vmatprep.subr.mxu0 0.0
        %1753 = vmatpush1.msra.mxu0 0.0
        %1754 = vmatprep.subr.mxu0 0.0
        %1755 = vmatpush1.msra.mxu0 0.0
        %1756 = vmatprep.subr.mxu0 0.0
        %1757 = vmatpush1.msra.mxu0 0.0
        %1758 = vmatprep.subr.mxu0 0.0
        %1759 = vmatpush1.msra.mxu0 0.0
        %1760 = vmatprep.subr.mxu0 0.0
        %1761 = vmatpush1.msra.mxu0 0.0
        %1762 = vmatprep.subr.mxu0 0.0
        %1763 = vmatpush1.msra.mxu0 0.0
        %1764 = vmatprep.subr.mxu0 0.0
        %1765 = vmatpush1.msra.mxu0 0.0
        %1766 = vmatprep.subr.mxu0 0.0
        %1767 = vmatpush1.msra.mxu0 0.0
        %1768 = vmatprep.subr.mxu0 0.0
        %1769 = vmatpush1.msra.mxu0 0.0
        %1770 = vmatprep.subr.mxu0 0.0
        %1771 = vmatpush1.msra.mxu0 0.0
        %1772 = vmatprep.subr.mxu0 0.0
        %1773 = vmatpush1.msra.mxu0 0.0
        %1774 = vmatprep.subr.mxu0 0.0
        %1775 = vmatpush1.msra.mxu0 0.0
        %1776 = vmatprep.subr.mxu0 0.0
        %1777 = vmatpush1.msra.mxu0 0.0
        %1778 = vmatprep.subr.mxu0 0.0
        %1779 = vmatpush1.msra.mxu0 0.0
        %1780 = vmatprep.subr.mxu0 0.0
        %1781 = vmatpush1.msra.mxu0 0.0
        %1782 = vmatprep.subr.mxu0 0.0
        %1783 = vmatpush1.msra.mxu0 0.0
        %1784 = vmatprep.subr.mxu0 0.0
        %1785 = vmatpush1.msra.mxu0 0.0
        %1786 = vmatprep.subr.mxu0 0.0
        %1787 = vmatpush1.msra.mxu0 0.0
        %1788 = vmatprep.subr.mxu0 0.0
        %1789 = vmatpush1.msra.mxu0 0.0
        %1790 = vmatprep.mubr.f32.mxu0 0.0
        %v1791 = vand.u32 %v1438, 4294901760
        %v1792 = vsub.f32 %v1438, %v1791
        %v1793 = vand.u32 %v1792, 4294901760
        %1794 = vmatmul.mubr.f32.gmra.mrb[0].mxu0 %v1793
        %v1795 = vpop.f32.mrb[0].mxu0
        %v1796 = vadd.f32 %v1710, %v1795
        %v1797 = vpop.f32.mrb[0].mxu0
        %v1798 = vadd.f32 %v1712, %v1797
        %1799 = vmatprep.mubr.f32.mxu0 0.0
        %v1800 = vand.u32 %v1441, 4294901760
        %v1801 = vsub.f32 %v1441, %v1800
        %v1802 = vand.u32 %v1801, 4294901760
        %1803 = vmatmul.mubr.f32.gmra.mrb[0].mxu0 %v1802
        %v1804 = vpop.f32.mrb[0].mxu0
        %v1805 = vadd.f32 %v1718, %v1804
        %v1806 = vpop.f32.mrb[0].mxu0
        %v1807 = vadd.f32 %v1720, %v1806
        %1808 = vdwg.mxu0
        %v1809 = vand.u32 %v1425, 4294901760
        %v1810 = vsub.f32 %v1425, %v1809
        %v1811 = vand.u32 %v1810, 4294901760
        %1812 = vmatprep.subr.mxu0 %v1811
        %v1813 = vand.u32 %v1431, 4294901760
        %v1814 = vsub.f32 %v1431, %v1813
        %v1815 = vand.u32 %v1814, 4294901760
        %1816 = vmatpush1.msra.mxu0 %v1815
        %v1817 = vand.u32 %v1429, 4294901760
        %v1818 = vsub.f32 %v1429, %v1817
        %v1819 = vand.u32 %v1818, 4294901760
        %1820 = vmatprep.subr.mxu0 %v1819
        %v1821 = vand.u32 %v1432, 4294901760
        %v1822 = vsub.f32 %v1432, %v1821
        %v1823 = vand.u32 %v1822, 4294901760
        %1824 = vmatpush1.msra.mxu0 %v1823
        %1825 = vmatprep.subr.mxu0 0.0
        %1826 = vmatpush1.msra.mxu0 0.0
        %1827 = vmatprep.subr.mxu0 0.0
        %1828 = vmatpush1.msra.mxu0 0.0
        %1829 = vmatprep.subr.mxu0 0.0
        %1830 = vmatpush1.msra.mxu0 0.0
        %1831 = vmatprep.subr.mxu0 0.0
        %1832 = vmatpush1.msra.mxu0 0.0
        %1833 = vmatprep.subr.mxu0 0.0
        %1834 = vmatpush1.msra.mxu0 0.0
        %1835 = vmatprep.subr.mxu0 0.0
        %1836 = vmatpush1.msra.mxu0 0.0
        %1837 = vmatprep.subr.mxu0 0.0
        %1838 = vmatpush1.msra.mxu0 0.0
        %1839 = vmatprep.subr.mxu0 0.0
        %1840 = vmatpush1.msra.mxu0 0.0
        %1841 = vmatprep.subr.mxu0 0.0
        %1842 = vmatpush1.msra.mxu0 0.0
        %1843 = vmatprep.subr.mxu0 0.0
        %1844 = vmatpush1.msra.mxu0 0.0
        %1845 = vmatprep.subr.mxu0 0.0
        %1846 = vmatpush1.msra.mxu0 0.0
        %1847 = vmatprep.subr.mxu0 0.0
        %1848 = vmatpush1.msra.mxu0 0.0
        %1849 = vmatprep.subr.mxu0 0.0
        %1850 = vmatpush1.msra.mxu0 0.0
        %1851 = vmatprep.subr.mxu0 0.0
        %1852 = vmatpush1.msra.mxu0 0.0
        %1853 = vmatprep.subr.mxu0 0.0
        %1854 = vmatpush1.msra.mxu0 0.0
        %1855 = vmatprep.subr.mxu0 0.0
        %1856 = vmatpush1.msra.mxu0 0.0
        %1857 = vmatprep.subr.mxu0 0.0
        %1858 = vmatpush1.msra.mxu0 0.0
        %1859 = vmatprep.subr.mxu0 0.0
        %1860 = vmatpush1.msra.mxu0 0.0
        %1861 = vmatprep.subr.mxu0 0.0
        %1862 = vmatpush1.msra.mxu0 0.0
        %1863 = vmatprep.subr.mxu0 0.0
        %1864 = vmatpush1.msra.mxu0 0.0
        %1865 = vmatprep.subr.mxu0 0.0
        %1866 = vmatpush1.msra.mxu0 0.0
        %1867 = vmatprep.subr.mxu0 0.0
        %1868 = vmatpush1.msra.mxu0 0.0
        %1869 = vmatprep.subr.mxu0 0.0
        %1870 = vmatpush1.msra.mxu0 0.0
        %1871 = vmatprep.subr.mxu0 0.0
        %1872 = vmatpush1.msra.mxu0 0.0
        %1873 = vmatprep.subr.mxu0 0.0
        %1874 = vmatpush1.msra.mxu0 0.0
        %1875 = vmatprep.subr.mxu0 0.0
        %1876 = vmatpush1.msra.mxu0 0.0
        %1877 = vmatprep.subr.mxu0 0.0
        %1878 = vmatpush1.msra.mxu0 0.0
        %1879 = vmatprep.subr.mxu0 0.0
        %1880 = vmatpush1.msra.mxu0 0.0
        %1881 = vmatprep.subr.mxu0 0.0
        %1882 = vmatpush1.msra.mxu0 0.0
        %1883 = vmatprep.subr.mxu0 0.0
        %1884 = vmatpush1.msra.mxu0 0.0
        %1885 = vmatprep.mubr.f32.mxu0 0.0
        %v1886 = vand.u32 %v1438, 4294901760
        %1887 = vmatmul.mubr.f32.gmra.mrb[0].mxu0 %v1886
        %v1888 = vpop.f32.mrb[0].mxu0
        %v1889 = vadd.f32 %v1796, %v1888
        %v1890 = vpop.f32.mrb[0].mxu0
        %v1891 = vadd.f32 %v1798, %v1890
        %1892 = vmatprep.mubr.f32.mxu0 0.0
        %v1893 = vand.u32 %v1441, 4294901760
        %1894 = vmatmul.mubr.f32.gmra.mrb[0].mxu0 %v1893
        %v1895 = vpop.f32.mrb[0].mxu0
        %v1896 = vadd.f32 %v1805, %v1895
        %v1897 = vpop.f32.mrb[0].mxu0
        %v1898 = vadd.f32 %v1807, %v1897
        %1899 = vdwg.mxu0
        %v1900 = vand.u32 %v1425, 4294901760
        %1901 = vmatprep.subr.mxu0 %v1900
        %v1902 = vand.u32 %v1431, 4294901760
        %1903 = vmatpush1.msra.mxu0 %v1902
        %v1904 = vand.u32 %v1429, 4294901760
        %1905 = vmatprep.subr.mxu0 %v1904
        %v1906 = vand.u32 %v1432, 4294901760
        %1907 = vmatpush1.msra.mxu0 %v1906
        %1908 = vmatprep.subr.mxu0 0.0
        %1909 = vmatpush1.msra.mxu0 0.0
        %1910 = vmatprep.subr.mxu0 0.0
        %1911 = vmatpush1.msra.mxu0 0.0
        %1912 = vmatprep.subr.mxu0 0.0
        %1913 = vmatpush1.msra.mxu0 0.0
        %1914 = vmatprep.subr.mxu0 0.0
        %1915 = vmatpush1.msra.mxu0 0.0
        %1916 = vmatprep.subr.mxu0 0.0
        %1917 = vmatpush1.msra.mxu0 0.0
        %1918 = vmatprep.subr.mxu0 0.0
        %1919 = vmatpush1.msra.mxu0 0.0
        %1920 = vmatprep.subr.mxu0 0.0
        %1921 = vmatpush1.msra.mxu0 0.0
        %1922 = vmatprep.subr.mxu0 0.0
        %1923 = vmatpush1.msra.mxu0 0.0
        %1924 = vmatprep.subr.mxu0 0.0
        %1925 = vmatpush1.msra.mxu0 0.0
        %1926 = vmatprep.subr.mxu0 0.0
        %1927 = vmatpush1.msra.mxu0 0.0
        %1928 = vmatprep.subr.mxu0 0.0
        %1929 = vmatpush1.msra.mxu0 0.0
        %1930 = vmatprep.subr.mxu0 0.0
        %1931 = vmatpush1.msra.mxu0 0.0
        %1932 = vmatprep.subr.mxu0 0.0
        %1933 = vmatpush1.msra.mxu0 0.0
        %1934 = vmatprep.subr.mxu0 0.0
        %1935 = vmatpush1.msra.mxu0 0.0
        %1936 = vmatprep.subr.mxu0 0.0
        %1937 = vmatpush1.msra.mxu0 0.0
        %1938 = vmatprep.subr.mxu0 0.0
        %1939 = vmatpush1.msra.mxu0 0.0
        %1940 = vmatprep.subr.mxu0 0.0
        %1941 = vmatpush1.msra.mxu0 0.0
        %1942 = vmatprep.subr.mxu0 0.0
        %1943 = vmatpush1.msra.mxu0 0.0
        %1944 = vmatprep.subr.mxu0 0.0
        %1945 = vmatpush1.msra.mxu0 0.0
        %1946 = vmatprep.subr.mxu0 0.0
        %1947 = vmatpush1.msra.mxu0 0.0
        %1948 = vmatprep.subr.mxu0 0.0
        %1949 = vmatpush1.msra.mxu0 0.0
        %1950 = vmatprep.subr.mxu0 0.0
        %1951 = vmatpush1.msra.mxu0 0.0
        %1952 = vmatprep.subr.mxu0 0.0
        %1953 = vmatpush1.msra.mxu0 0.0
        %1954 = vmatprep.subr.mxu0 0.0
        %1955 = vmatpush1.msra.mxu0 0.0
        %1956 = vmatprep.subr.mxu0 0.0
        %1957 = vmatpush1.msra.mxu0 0.0
        %1958 = vmatprep.subr.mxu0 0.0
        %1959 = vmatpush1.msra.mxu0 0.0
        %1960 = vmatprep.subr.mxu0 0.0
        %1961 = vmatpush1.msra.mxu0 0.0
        %1962 = vmatprep.subr.mxu0 0.0
        %1963 = vmatpush1.msra.mxu0 0.0
        %1964 = vmatprep.subr.mxu0 0.0
        %1965 = vmatpush1.msra.mxu0 0.0
        %1966 = vmatprep.subr.mxu0 0.0
        %1967 = vmatpush1.msra.mxu0 0.0
        %1968 = vmatprep.mubr.f32.mxu0 0.0
        %v1969 = vand.u32 %v1438, 4294901760
        %1970 = vmatmul.mubr.f32.gmra.mrb[0].mxu0 %v1969
        %v1971 = vpop.f32.mrb[0].mxu0
        %v1972 = vadd.f32 %v1889, %v1971
        %v1973 = vpop.f32.mrb[0].mxu0
        %v1974 = vadd.f32 %v1891, %v1973
        %1975 = vmatprep.mubr.f32.mxu0 0.0
        %v1976 = vand.u32 %v1441, 4294901760
        %1977 = vmatmul.mubr.f32.gmra.mrb[0].mxu0 %v1976
        %v1978 = vpop.f32.mrb[0].mxu0
        %v1979 = vadd.f32 %v1896, %v1978
        %v1980 = vpop.f32.mrb[0].mxu0
        %v1981 = vadd.f32 %v1898, %v1980
        %1982 = vdwg.mxu0
        %v1983 = vadd.f32 %v1381, %v1972
        %v1984 = vadd.f32 %v1383, %v1974
        %v1985 = vadd.f32 %v1388, %v1979
        %v1986 = vadd.f32 %v1390, %v1981
        %1987 = vrot.lane.b32.xlu0 %v264, 24
        %v1988 = vpop.permute.xlu0 %1987
        %1989 = vrot.lane.b32.xlu0 %v268, 24
        %v1990 = vpop.permute.xlu0 %1989
        %vm1991 = vcmask 195584
        %v1992 = vsel %vm1991, %v1988, %v1990
        %v1995 = vmul.f32 %v254, %v1988
        %v1996 = vmul.f32 %v257, %v1992
        %v1997 = vmul.f32 %v255, %v1988
        %v1998 = vmul.f32 %v258, %v1992
        %s1999 = scalar_lea.vmem [#allocation5], 48
        %v2000 = vld [vmem:[%s1999] sm:$0xff]
        %v2001 = vld [vmem:[%s1999 + $0x8] sm:$0xff]
        %2006 = vrot.lane.b32.xlu0 %v1995, 104
        %v2007 = vpop.permute.xlu0 %2006
        %2008 = vrot.lane.b32.xlu0 %v1996, 104
        %v2009 = vpop.permute.xlu0 %2008
        %2010 = vrot.lane.b32.xlu0 %v1997, 104
        %v2011 = vpop.permute.xlu0 %2010
        %2012 = vrot.lane.b32.xlu0 %v1998, 104
        %v2013 = vpop.permute.xlu0 %2012
        %vm2014 = vcmask 850944
        %v2015 = vsel %vm2014, %v2007, %v2009
        %v2016 = vsel %vm2014, %v2011, %v2013
        %v2022 = vsel %vm299, %v2000, 0
        %v2025 = vsel %vm299, %v2001, 0
        %v2027 = vand.u32 %v2009, 4294901760
        %2028 = vmatprep.subr.mxu0 %v2027
        %v2029 = vand.u32 %v2015, 4294901760
        %2030 = vmatpush1.msra.mxu0 %v2029
        %v2031 = vand.u32 %v2013, 4294901760
        %2032 = vmatprep.subr.mxu0 %v2031
        %v2033 = vand.u32 %v2016, 4294901760
        %2034 = vmatpush1.msra.mxu0 %v2033
        %2035 = vmatprep.subr.mxu0 0.0
        %2036 = vmatpush1.msra.mxu0 0.0
        %2037 = vmatprep.subr.mxu0 0.0
        %2038 = vmatpush1.msra.mxu0 0.0
        %2039 = vmatprep.subr.mxu0 0.0
        %2040 = vmatpush1.msra.mxu0 0.0
        %2041 = vmatprep.subr.mxu0 0.0
        %2042 = vmatpush1.msra.mxu0 0.0
        %2043 = vmatprep.subr.mxu0 0.0
        %2044 = vmatpush1.msra.mxu0 0.0
        %2045 = vmatprep.subr.mxu0 0.0
        %2046 = vmatpush1.msra.mxu0 0.0
        %2047 = vmatprep.subr.mxu0 0.0
        %2048 = vmatpush1.msra.mxu0 0.0
        %2049 = vmatprep.subr.mxu0 0.0
        %2050 = vmatpush1.msra.mxu0 0.0
        %2051 = vmatprep.subr.mxu0 0.0
        %2052 = vmatpush1.msra.mxu0 0.0
        %2053 = vmatprep.subr.mxu0 0.0
        %2054 = vmatpush1.msra.mxu0 0.0
        %2055 = vmatprep.subr.mxu0 0.0
        %2056 = vmatpush1.msra.mxu0 0.0
        %2057 = vmatprep.subr.mxu0 0.0
        %2058 = vmatpush1.msra.mxu0 0.0
        %2059 = vmatprep.subr.mxu0 0.0
        %2060 = vmatpush1.msra.mxu0 0.0
        %2061 = vmatprep.subr.mxu0 0.0
        %2062 = vmatpush1.msra.mxu0 0.0
        %2063 = vmatprep.subr.mxu0 0.0
        %2064 = vmatpush1.msra.mxu0 0.0
        %2065 = vmatprep.subr.mxu0 0.0
        %2066 = vmatpush1.msra.mxu0 0.0
        %2067 = vmatprep.subr.mxu0 0.0
        %2068 = vmatpush1.msra.mxu0 0.0
        %2069 = vmatprep.subr.mxu0 0.0
        %2070 = vmatpush1.msra.mxu0 0.0
        %2071 = vmatprep.subr.mxu0 0.0
        %2072 = vmatpush1.msra.mxu0 0.0
        %2073 = vmatprep.subr.mxu0 0.0
        %2074 = vmatpush1.msra.mxu0 0.0
        %2075 = vmatprep.subr.mxu0 0.0
        %2076 = vmatpush1.msra.mxu0 0.0
        %2077 = vmatprep.subr.mxu0 0.0
        %2078 = vmatpush1.msra.mxu0 0.0
        %2079 = vmatprep.subr.mxu0 0.0
        %2080 = vmatpush1.msra.mxu0 0.0
        %2081 = vmatprep.subr.mxu0 0.0
        %2082 = vmatpush1.msra.mxu0 0.0
        %2083 = vmatprep.subr.mxu0 0.0
        %2084 = vmatpush1.msra.mxu0 0.0
        %2085 = vmatprep.subr.mxu0 0.0
        %2086 = vmatpush1.msra.mxu0 0.0
        %2087 = vmatprep.subr.mxu0 0.0
        %2088 = vmatpush1.msra.mxu0 0.0
        %2089 = vmatprep.subr.mxu0 0.0
        %2090 = vmatpush1.msra.mxu0 0.0
        %2091 = vmatprep.subr.mxu0 0.0
        %2092 = vmatpush1.msra.mxu0 0.0
        %2093 = vmatprep.subr.mxu0 0.0
        %2094 = vmatpush1.msra.mxu0 0.0
        %2095 = vmatprep.mubr.f32.mxu0 0.0
        %v2096 = vand.u32 %v2022, 4294901760
        %v2097 = vsub.f32 %v2022, %v2096
        %v2098 = vand.u32 %v2097, 4294901760
        %v2099 = vsub.f32 %v2097, %v2098
        %v2100 = vand.u32 %v2099, 4294901760
        %2101 = vmatmul.mubr.f32.gmra.mrb[0].mxu0 %v2100
        %v2102 = vpop.f32.mrb[0].mxu0
        %v2103 = vadd.f32 0.0, %v2102
        %v2104 = vpop.f32.mrb[0].mxu0
        %v2105 = vadd.f32 0.0, %v2104
        %2106 = vmatprep.mubr.f32.mxu0 0.0
        %v2107 = vand.u32 %v2025, 4294901760
        %v2108 = vsub.f32 %v2025, %v2107
        %v2109 = vand.u32 %v2108, 4294901760
        %v2110 = vsub.f32 %v2108, %v2109
        %v2111 = vand.u32 %v2110, 4294901760
        %2112 = vmatmul.mubr.f32.gmra.mrb[0].mxu0 %v2111
        %v2113 = vpop.f32.mrb[0].mxu0
        %v2114 = vadd.f32 0.0, %v2113
        %v2115 = vpop.f32.mrb[0].mxu0
        %v2116 = vadd.f32 0.0, %v2115
        %2117 = vdwg.mxu0
        %v2118 = vand.u32 %v2009, 4294901760
        %v2119 = vsub.f32 %v2009, %v2118
        %v2120 = vand.u32 %v2119, 4294901760
        %v2121 = vsub.f32 %v2119, %v2120
        %v2122 = vand.u32 %v2121, 4294901760
        %2123 = vmatprep.subr.mxu0 %v2122
        %v2124 = vand.u32 %v2015, 4294901760
        %v2125 = vsub.f32 %v2015, %v2124
        %v2126 = vand.u32 %v2125, 4294901760
        %v2127 = vsub.f32 %v2125, %v2126
        %v2128 = vand.u32 %v2127, 4294901760
        %2129 = vmatpush1.msra.mxu0 %v2128
        %v2130 = vand.u32 %v2013, 4294901760
        %v2131 = vsub.f32 %v2013, %v2130
        %v2132 = vand.u32 %v2131, 4294901760
        %v2133 = vsub.f32 %v2131, %v2132
        %v2134 = vand.u32 %v2133, 4294901760
        %2135 = vmatprep.subr.mxu0 %v2134
        %v2136 = vand.u32 %v2016, 4294901760
        %v2137 = vsub.f32 %v2016, %v2136
        %v2138 = vand.u32 %v2137, 4294901760
        %v2139 = vsub.f32 %v2137, %v2138
        %v2140 = vand.u32 %v2139, 4294901760
        %2141 = vmatpush1.msra.mxu0 %v2140
        %2142 = vmatprep.subr.mxu0 0.0
        %2143 = vmatpush1.msra.mxu0 0.0
        %2144 = vmatprep.subr.mxu0 0.0
        %2145 = vmatpush1.msra.mxu0 0.0
        %2146 = vmatprep.subr.mxu0 0.0
        %2147 = vmatpush1.msra.mxu0 0.0
        %2148 = vmatprep.subr.mxu0 0.0
        %2149 = vmatpush1.msra.mxu0 0.0
        %2150 = vmatprep.subr.mxu0 0.0
        %2151 = vmatpush1.msra.mxu0 0.0
        %2152 = vmatprep.subr.mxu0 0.0
        %2153 = vmatpush1.msra.mxu0 0.0
        %2154 = vmatprep.subr.mxu0 0.0
        %2155 = vmatpush1.msra.mxu0 0.0
        %2156 = vmatprep.subr.mxu0 0.0
        %2157 = vmatpush1.msra.mxu0 0.0
        %2158 = vmatprep.subr.mxu0 0.0
        %2159 = vmatpush1.msra.mxu0 0.0
        %2160 = vmatprep.subr.mxu0 0.0
        %2161 = vmatpush1.msra.mxu0 0.0
        %2162 = vmatprep.subr.mxu0 0.0
        %2163 = vmatpush1.msra.mxu0 0.0
        %2164 = vmatprep.subr.mxu0 0.0
        %2165 = vmatpush1.msra.mxu0 0.0
        %2166 = vmatprep.subr.mxu0 0.0
        %2167 = vmatpush1.msra.mxu0 0.0
        %2168 = vmatprep.subr.mxu0 0.0
        %2169 = vmatpush1.msra.mxu0 0.0
        %2170 = vmatprep.subr.mxu0 0.0
        %2171 = vmatpush1.msra.mxu0 0.0
        %2172 = vmatprep.subr.mxu0 0.0
        %2173 = vmatpush1.msra.mxu0 0.0
        %2174 = vmatprep.subr.mxu0 0.0
        %2175 = vmatpush1.msra.mxu0 0.0
        %2176 = vmatprep.subr.mxu0 0.0
        %2177 = vmatpush1.msra.mxu0 0.0
        %2178 = vmatprep.subr.mxu0 0.0
        %2179 = vmatpush1.msra.mxu0 0.0
        %2180 = vmatprep.subr.mxu0 0.0
        %2181 = vmatpush1.msra.mxu0 0.0
        %2182 = vmatprep.subr.mxu0 0.0
        %2183 = vmatpush1.msra.mxu0 0.0
        %2184 = vmatprep.subr.mxu0 0.0
        %2185 = vmatpush1.msra.mxu0 0.0
        %2186 = vmatprep.subr.mxu0 0.0
        %2187 = vmatpush1.msra.mxu0 0.0
        %2188 = vmatprep.subr.mxu0 0.0
        %2189 = vmatpush1.msra.mxu0 0.0
        %2190 = vmatprep.subr.mxu0 0.0
        %2191 = vmatpush1.msra.mxu0 0.0
        %2192 = vmatprep.subr.mxu0 0.0
        %2193 = vmatpush1.msra.mxu0 0.0
        %2194 = vmatprep.subr.mxu0 0.0
        %2195 = vmatpush1.msra.mxu0 0.0
        %2196 = vmatprep.subr.mxu0 0.0
        %2197 = vmatpush1.msra.mxu0 0.0
        %2198 = vmatprep.subr.mxu0 0.0
        %2199 = vmatpush1.msra.mxu0 0.0
        %2200 = vmatprep.subr.mxu0 0.0
        %2201 = vmatpush1.msra.mxu0 0.0
        %2202 = vmatprep.mubr.f32.mxu0 0.0
        %v2203 = vand.u32 %v2022, 4294901760
        %2204 = vmatmul.mubr.f32.gmra.mrb[0].mxu0 %v2203
        %v2205 = vpop.f32.mrb[0].mxu0
        %v2206 = vadd.f32 %v2103, %v2205
        %v2207 = vpop.f32.mrb[0].mxu0
        %v2208 = vadd.f32 %v2105, %v2207
        %2209 = vmatprep.mubr.f32.mxu0 0.0
        %v2210 = vand.u32 %v2025, 4294901760
        %2211 = vmatmul.mubr.f32.gmra.mrb[0].mxu0 %v2210
        %v2212 = vpop.f32.mrb[0].mxu0
        %v2213 = vadd.f32 %v2114, %v2212
        %v2214 = vpop.f32.mrb[0].mxu0
        %v2215 = vadd.f32 %v2116, %v2214
        %2216 = vdwg.mxu0
        %v2217 = vand.u32 %v2009, 4294901760
        %v2218 = vsub.f32 %v2009, %v2217
        %2219 = vmatprep.subr.mxu0 %v2218
        %v2220 = vand.u32 %v2015, 4294901760
        %v2221 = vsub.f32 %v2015, %v2220
        %2222 = vmatpush1.msra.mxu0 %v2221
        %v2223 = vand.u32 %v2013, 4294901760
        %v2224 = vsub.f32 %v2013, %v2223
        %2225 = vmatprep.subr.mxu0 %v2224
        %v2226 = vand.u32 %v2016, 4294901760
        %v2227 = vsub.f32 %v2016, %v2226
        %2228 = vmatpush1.msra.mxu0 %v2227
        %2229 = vmatprep.subr.mxu0 0.0
        %2230 = vmatpush1.msra.mxu0 0.0
        %2231 = vmatprep.subr.mxu0 0.0
        %2232 = vmatpush1.msra.mxu0 0.0
        %2233 = vmatprep.subr.mxu0 0.0
        %2234 = vmatpush1.msra.mxu0 0.0
        %2235 = vmatprep.subr.mxu0 0.0
        %2236 = vmatpush1.msra.mxu0 0.0
        %2237 = vmatprep.subr.mxu0 0.0
        %2238 = vmatpush1.msra.mxu0 0.0
        %2239 = vmatprep.subr.mxu0 0.0
        %2240 = vmatpush1.msra.mxu0 0.0
        %2241 = vmatprep.subr.mxu0 0.0
        %2242 = vmatpush1.msra.mxu0 0.0
        %2243 = vmatprep.subr.mxu0 0.0
        %2244 = vmatpush1.msra.mxu0 0.0
        %2245 = vmatprep.subr.mxu0 0.0
        %2246 = vmatpush1.msra.mxu0 0.0
        %2247 = vmatprep.subr.mxu0 0.0
        %2248 = vmatpush1.msra.mxu0 0.0
        %2249 = vmatprep.subr.mxu0 0.0
        %2250 = vmatpush1.msra.mxu0 0.0
        %2251 = vmatprep.subr.mxu0 0.0
        %2252 = vmatpush1.msra.mxu0 0.0
        %2253 = vmatprep.subr.mxu0 0.0
        %2254 = vmatpush1.msra.mxu0 0.0
        %2255 = vmatprep.subr.mxu0 0.0
        %2256 = vmatpush1.msra.mxu0 0.0
        %2257 = vmatprep.subr.mxu0 0.0
        %2258 = vmatpush1.msra.mxu0 0.0
        %2259 = vmatprep.subr.mxu0 0.0
        %2260 = vmatpush1.msra.mxu0 0.0
        %2261 = vmatprep.subr.mxu0 0.0
        %2262 = vmatpush1.msra.mxu0 0.0
        %2263 = vmatprep.subr.mxu0 0.0
        %2264 = vmatpush1.msra.mxu0 0.0
        %2265 = vmatprep.subr.mxu0 0.0
        %2266 = vmatpush1.msra.mxu0 0.0
        %2267 = vmatprep.subr.mxu0 0.0
        %2268 = vmatpush1.msra.mxu0 0.0
        %2269 = vmatprep.subr.mxu0 0.0
        %2270 = vmatpush1.msra.mxu0 0.0
        %2271 = vmatprep.subr.mxu0 0.0
        %2272 = vmatpush1.msra.mxu0 0.0
        %2273 = vmatprep.subr.mxu0 0.0
        %2274 = vmatpush1.msra.mxu0 0.0
        %2275 = vmatprep.subr.mxu0 0.0
        %2276 = vmatpush1.msra.mxu0 0.0
        %2277 = vmatprep.subr.mxu0 0.0
        %2278 = vmatpush1.msra.mxu0 0.0
        %2279 = vmatprep.subr.mxu0 0.0
        %2280 = vmatpush1.msra.mxu0 0.0
        %2281 = vmatprep.subr.mxu0 0.0
        %2282 = vmatpush1.msra.mxu0 0.0
        %2283 = vmatprep.subr.mxu0 0.0
        %2284 = vmatpush1.msra.mxu0 0.0
        %2285 = vmatprep.subr.mxu0 0.0
        %2286 = vmatpush1.msra.mxu0 0.0
        %2287 = vmatprep.subr.mxu0 0.0
        %2288 = vmatpush1.msra.mxu0 0.0
        %2289 = vmatprep.mubr.f32.mxu0 0.0
        %v2290 = vand.u32 %v2022, 4294901760
        %v2291 = vsub.f32 %v2022, %v2290
        %2292 = vmatmul.mubr.f32.gmra.mrb[0].mxu0 %v2291
        %v2293 = vpop.f32.mrb[0].mxu0
        %v2294 = vadd.f32 %v2206, %v2293
        %v2295 = vpop.f32.mrb[0].mxu0
        %v2296 = vadd.f32 %v2208, %v2295
        %2297 = vmatprep.mubr.f32.mxu0 0.0
        %v2298 = vand.u32 %v2025, 4294901760
        %v2299 = vsub.f32 %v2025, %v2298
        %2300 = vmatmul.mubr.f32.gmra.mrb[0].mxu0 %v2299
        %v2301 = vpop.f32.mrb[0].mxu0
        %v2302 = vadd.f32 %v2213, %v2301
        %v2303 = vpop.f32.mrb[0].mxu0
        %v2304 = vadd.f32 %v2215, %v2303
        %2305 = vdwg.mxu0
        %v2306 = vand.u32 %v2009, 4294901760
        %2307 = vmatprep.subr.mxu0 %v2306
        %v2308 = vand.u32 %v2015, 4294901760
        %2309 = vmatpush1.msra.mxu0 %v2308
        %v2310 = vand.u32 %v2013, 4294901760
        %2311 = vmatprep.subr.mxu0 %v2310
        %v2312 = vand.u32 %v2016, 4294901760
        %2313 = vmatpush1.msra.mxu0 %v2312
        %2314 = vmatprep.subr.mxu0 0.0
        %2315 = vmatpush1.msra.mxu0 0.0
        %2316 = vmatprep.subr.mxu0 0.0
        %2317 = vmatpush1.msra.mxu0 0.0
        %2318 = vmatprep.subr.mxu0 0.0
        %2319 = vmatpush1.msra.mxu0 0.0
        %2320 = vmatprep.subr.mxu0 0.0
        %2321 = vmatpush1.msra.mxu0 0.0
        %2322 = vmatprep.subr.mxu0 0.0
        %2323 = vmatpush1.msra.mxu0 0.0
        %2324 = vmatprep.subr.mxu0 0.0
        %2325 = vmatpush1.msra.mxu0 0.0
        %2326 = vmatprep.subr.mxu0 0.0
        %2327 = vmatpush1.msra.mxu0 0.0
        %2328 = vmatprep.subr.mxu0 0.0
        %2329 = vmatpush1.msra.mxu0 0.0
        %2330 = vmatprep.subr.mxu0 0.0
        %2331 = vmatpush1.msra.mxu0 0.0
        %2332 = vmatprep.subr.mxu0 0.0
        %2333 = vmatpush1.msra.mxu0 0.0
        %2334 = vmatprep.subr.mxu0 0.0
        %2335 = vmatpush1.msra.mxu0 0.0
        %2336 = vmatprep.subr.mxu0 0.0
        %2337 = vmatpush1.msra.mxu0 0.0
        %2338 = vmatprep.subr.mxu0 0.0
        %2339 = vmatpush1.msra.mxu0 0.0
        %2340 = vmatprep.subr.mxu0 0.0
        %2341 = vmatpush1.msra.mxu0 0.0
        %2342 = vmatprep.subr.mxu0 0.0
        %2343 = vmatpush1.msra.mxu0 0.0
        %2344 = vmatprep.subr.mxu0 0.0
        %2345 = vmatpush1.msra.mxu0 0.0
        %2346 = vmatprep.subr.mxu0 0.0
        %2347 = vmatpush1.msra.mxu0 0.0
        %2348 = vmatprep.subr.mxu0 0.0
        %2349 = vmatpush1.msra.mxu0 0.0
        %2350 = vmatprep.subr.mxu0 0.0
        %2351 = vmatpush1.msra.mxu0 0.0
        %2352 = vmatprep.subr.mxu0 0.0
        %2353 = vmatpush1.msra.mxu0 0.0
        %2354 = vmatprep.subr.mxu0 0.0
        %2355 = vmatpush1.msra.mxu0 0.0
        %2356 = vmatprep.subr.mxu0 0.0
        %2357 = vmatpush1.msra.mxu0 0.0
        %2358 = vmatprep.subr.mxu0 0.0
        %2359 = vmatpush1.msra.mxu0 0.0
        %2360 = vmatprep.subr.mxu0 0.0
        %2361 = vmatpush1.msra.mxu0 0.0
        %2362 = vmatprep.subr.mxu0 0.0
        %2363 = vmatpush1.msra.mxu0 0.0
        %2364 = vmatprep.subr.mxu0 0.0
        %2365 = vmatpush1.msra.mxu0 0.0
        %2366 = vmatprep.subr.mxu0 0.0
        %2367 = vmatpush1.msra.mxu0 0.0
        %2368 = vmatprep.subr.mxu0 0.0
        %2369 = vmatpush1.msra.mxu0 0.0
        %2370 = vmatprep.subr.mxu0 0.0
        %2371 = vmatpush1.msra.mxu0 0.0
        %2372 = vmatprep.subr.mxu0 0.0
        %2373 = vmatpush1.msra.mxu0 0.0
        %2374 = vmatprep.mubr.f32.mxu0 0.0
        %v2375 = vand.u32 %v2022, 4294901760
        %v2376 = vsub.f32 %v2022, %v2375
        %v2377 = vand.u32 %v2376, 4294901760
        %2378 = vmatmul.mubr.f32.gmra.mrb[0].mxu0 %v2377
        %v2379 = vpop.f32.mrb[0].mxu0
        %v2380 = vadd.f32 %v2294, %v2379
        %v2381 = vpop.f32.mrb[0].mxu0
        %v2382 = vadd.f32 %v2296, %v2381
        %2383 = vmatprep.mubr.f32.mxu0 0.0
        %v2384 = vand.u32 %v2025, 4294901760
        %v2385 = vsub.f32 %v2025, %v2384
        %v2386 = vand.u32 %v2385, 4294901760
        %2387 = vmatmul.mubr.f32.gmra.mrb[0].mxu0 %v2386
        %v2388 = vpop.f32.mrb[0].mxu0
        %v2389 = vadd.f32 %v2302, %v2388
        %v2390 = vpop.f32.mrb[0].mxu0
        %v2391 = vadd.f32 %v2304, %v2390
        %2392 = vdwg.mxu0
        %v2393 = vand.u32 %v2009, 4294901760
        %v2394 = vsub.f32 %v2009, %v2393
        %v2395 = vand.u32 %v2394, 4294901760
        %2396 = vmatprep.subr.mxu0 %v2395
        %v2397 = vand.u32 %v2015, 4294901760
        %v2398 = vsub.f32 %v2015, %v2397
        %v2399 = vand.u32 %v2398, 4294901760
        %2400 = vmatpush1.msra.mxu0 %v2399
        %v2401 = vand.u32 %v2013, 4294901760
        %v2402 = vsub.f32 %v2013, %v2401
        %v2403 = vand.u32 %v2402, 4294901760
        %2404 = vmatprep.subr.mxu0 %v2403
        %v2405 = vand.u32 %v2016, 4294901760
        %v2406 = vsub.f32 %v2016, %v2405
        %v2407 = vand.u32 %v2406, 4294901760
        %2408 = vmatpush1.msra.mxu0 %v2407
        %2409 = vmatprep.subr.mxu0 0.0
        %2410 = vmatpush1.msra.mxu0 0.0
        %2411 = vmatprep.subr.mxu0 0.0
        %2412 = vmatpush1.msra.mxu0 0.0
        %2413 = vmatprep.subr.mxu0 0.0
        %2414 = vmatpush1.msra.mxu0 0.0
        %2415 = vmatprep.subr.mxu0 0.0
        %2416 = vmatpush1.msra.mxu0 0.0
        %2417 = vmatprep.subr.mxu0 0.0
        %2418 = vmatpush1.msra.mxu0 0.0
        %2419 = vmatprep.subr.mxu0 0.0
        %2420 = vmatpush1.msra.mxu0 0.0
        %2421 = vmatprep.subr.mxu0 0.0
        %2422 = vmatpush1.msra.mxu0 0.0
        %2423 = vmatprep.subr.mxu0 0.0
        %2424 = vmatpush1.msra.mxu0 0.0
        %2425 = vmatprep.subr.mxu0 0.0
        %2426 = vmatpush1.msra.mxu0 0.0
        %2427 = vmatprep.subr.mxu0 0.0
        %2428 = vmatpush1.msra.mxu0 0.0
        %2429 = vmatprep.subr.mxu0 0.0
        %2430 = vmatpush1.msra.mxu0 0.0
        %2431 = vmatprep.subr.mxu0 0.0
        %2432 = vmatpush1.msra.mxu0 0.0
        %2433 = vmatprep.subr.mxu0 0.0
        %2434 = vmatpush1.msra.mxu0 0.0
        %2435 = vmatprep.subr.mxu0 0.0
        %2436 = vmatpush1.msra.mxu0 0.0
        %2437 = vmatprep.subr.mxu0 0.0
        %2438 = vmatpush1.msra.mxu0 0.0
        %2439 = vmatprep.subr.mxu0 0.0
        %2440 = vmatpush1.msra.mxu0 0.0
        %2441 = vmatprep.subr.mxu0 0.0
        %2442 = vmatpush1.msra.mxu0 0.0
        %2443 = vmatprep.subr.mxu0 0.0
        %2444 = vmatpush1.msra.mxu0 0.0
        %2445 = vmatprep.subr.mxu0 0.0
        %2446 = vmatpush1.msra.mxu0 0.0
        %2447 = vmatprep.subr.mxu0 0.0
        %2448 = vmatpush1.msra.mxu0 0.0
        %2449 = vmatprep.subr.mxu0 0.0
        %2450 = vmatpush1.msra.mxu0 0.0
        %2451 = vmatprep.subr.mxu0 0.0
        %2452 = vmatpush1.msra.mxu0 0.0
        %2453 = vmatprep.subr.mxu0 0.0
        %2454 = vmatpush1.msra.mxu0 0.0
        %2455 = vmatprep.subr.mxu0 0.0
        %2456 = vmatpush1.msra.mxu0 0.0
        %2457 = vmatprep.subr.mxu0 0.0
        %2458 = vmatpush1.msra.mxu0 0.0
        %2459 = vmatprep.subr.mxu0 0.0
        %2460 = vmatpush1.msra.mxu0 0.0
        %2461 = vmatprep.subr.mxu0 0.0
        %2462 = vmatpush1.msra.mxu0 0.0
        %2463 = vmatprep.subr.mxu0 0.0
        %2464 = vmatpush1.msra.mxu0 0.0
        %2465 = vmatprep.subr.mxu0 0.0
        %2466 = vmatpush1.msra.mxu0 0.0
        %2467 = vmatprep.subr.mxu0 0.0
        %2468 = vmatpush1.msra.mxu0 0.0
        %2469 = vmatprep.mubr.f32.mxu0 0.0
        %v2470 = vand.u32 %v2022, 4294901760
        %2471 = vmatmul.mubr.f32.gmra.mrb[0].mxu0 %v2470
        %v2472 = vpop.f32.mrb[0].mxu0
        %v2473 = vadd.f32 %v2380, %v2472
        %v2474 = vpop.f32.mrb[0].mxu0
        %v2475 = vadd.f32 %v2382, %v2474
        %2476 = vmatprep.mubr.f32.mxu0 0.0
        %v2477 = vand.u32 %v2025, 4294901760
        %2478 = vmatmul.mubr.f32.gmra.mrb[0].mxu0 %v2477
        %v2479 = vpop.f32.mrb[0].mxu0
        %v2480 = vadd.f32 %v2389, %v2479
        %v2481 = vpop.f32.mrb[0].mxu0
        %v2482 = vadd.f32 %v2391, %v2481
        %2483 = vdwg.mxu0
        %v2484 = vand.u32 %v2009, 4294901760
        %2485 = vmatprep.subr.mxu0 %v2484
        %v2486 = vand.u32 %v2015, 4294901760
        %2487 = vmatpush1.msra.mxu0 %v2486
        %v2488 = vand.u32 %v2013, 4294901760
        %2489 = vmatprep.subr.mxu0 %v2488
        %v2490 = vand.u32 %v2016, 4294901760
        %2491 = vmatpush1.msra.mxu0 %v2490
        %2492 = vmatprep.subr.mxu0 0.0
        %2493 = vmatpush1.msra.mxu0 0.0
        %2494 = vmatprep.subr.mxu0 0.0
        %2495 = vmatpush1.msra.mxu0 0.0
        %2496 = vmatprep.subr.mxu0 0.0
        %2497 = vmatpush1.msra.mxu0 0.0
        %2498 = vmatprep.subr.mxu0 0.0
        %2499 = vmatpush1.msra.mxu0 0.0
        %2500 = vmatprep.subr.mxu0 0.0
        %2501 = vmatpush1.msra.mxu0 0.0
        %2502 = vmatprep.subr.mxu0 0.0
        %2503 = vmatpush1.msra.mxu0 0.0
        %2504 = vmatprep.subr.mxu0 0.0
        %2505 = vmatpush1.msra.mxu0 0.0
        %2506 = vmatprep.subr.mxu0 0.0
        %2507 = vmatpush1.msra.mxu0 0.0
        %2508 = vmatprep.subr.mxu0 0.0
        %2509 = vmatpush1.msra.mxu0 0.0
        %2510 = vmatprep.subr.mxu0 0.0
        %2511 = vmatpush1.msra.mxu0 0.0
        %2512 = vmatprep.subr.mxu0 0.0
        %2513 = vmatpush1.msra.mxu0 0.0
        %2514 = vmatprep.subr.mxu0 0.0
        %2515 = vmatpush1.msra.mxu0 0.0
        %2516 = vmatprep.subr.mxu0 0.0
        %2517 = vmatpush1.msra.mxu0 0.0
        %2518 = vmatprep.subr.mxu0 0.0
        %2519 = vmatpush1.msra.mxu0 0.0
        %2520 = vmatprep.subr.mxu0 0.0
        %2521 = vmatpush1.msra.mxu0 0.0
        %2522 = vmatprep.subr.mxu0 0.0
        %2523 = vmatpush1.msra.mxu0 0.0
        %2524 = vmatprep.subr.mxu0 0.0
        %2525 = vmatpush1.msra.mxu0 0.0
        %2526 = vmatprep.subr.mxu0 0.0
        %2527 = vmatpush1.msra.mxu0 0.0
        %2528 = vmatprep.subr.mxu0 0.0
        %2529 = vmatpush1.msra.mxu0 0.0
        %2530 = vmatprep.subr.mxu0 0.0
        %2531 = vmatpush1.msra.mxu0 0.0
        %2532 = vmatprep.subr.mxu0 0.0
        %2533 = vmatpush1.msra.mxu0 0.0
        %2534 = vmatprep.subr.mxu0 0.0
        %2535 = vmatpush1.msra.mxu0 0.0
        %2536 = vmatprep.subr.mxu0 0.0
        %2537 = vmatpush1.msra.mxu0 0.0
        %2538 = vmatprep.subr.mxu0 0.0
        %2539 = vmatpush1.msra.mxu0 0.0
        %2540 = vmatprep.subr.mxu0 0.0
        %2541 = vmatpush1.msra.mxu0 0.0
        %2542 = vmatprep.subr.mxu0 0.0
        %2543 = vmatpush1.msra.mxu0 0.0
        %2544 = vmatprep.subr.mxu0 0.0
        %2545 = vmatpush1.msra.mxu0 0.0
        %2546 = vmatprep.subr.mxu0 0.0
        %2547 = vmatpush1.msra.mxu0 0.0
        %2548 = vmatprep.subr.mxu0 0.0
        %2549 = vmatpush1.msra.mxu0 0.0
        %2550 = vmatprep.subr.mxu0 0.0
        %2551 = vmatpush1.msra.mxu0 0.0
        %2552 = vmatprep.mubr.f32.mxu0 0.0
        %v2553 = vand.u32 %v2022, 4294901760
        %2554 = vmatmul.mubr.f32.gmra.mrb[0].mxu0 %v2553
        %v2555 = vpop.f32.mrb[0].mxu0
        %v2556 = vadd.f32 %v2473, %v2555
        %v2557 = vpop.f32.mrb[0].mxu0
        %v2558 = vadd.f32 %v2475, %v2557
        %2559 = vmatprep.mubr.f32.mxu0 0.0
        %v2560 = vand.u32 %v2025, 4294901760
        %2561 = vmatmul.mubr.f32.gmra.mrb[0].mxu0 %v2560
        %v2562 = vpop.f32.mrb[0].mxu0
        %v2563 = vadd.f32 %v2480, %v2562
        %v2564 = vpop.f32.mrb[0].mxu0
        %v2565 = vadd.f32 %v2482, %v2564
        %2566 = vdwg.mxu0
        %v2567 = vadd.f32 %v1983, %v2556
        %v2568 = vadd.f32 %v1984, %v2558
        %v2569 = vadd.f32 %v1985, %v2563
        %v2570 = vadd.f32 %v1986, %v2565
        %s2571 = scalar_lea.vmem [#allocation5], 64
        %v2572 = vld [vmem:[%s2571] sm:$0xff]
        %v2573 = vld [vmem:[%s2571 + $0x8] sm:$0xff]
        %2574 = vrot.lane.b32.xlu0 %v254, 103
        %v2575 = vpop.permute.xlu0 %2574
        %2576 = vrot.lane.b32.xlu0 %v257, 103
        %v2577 = vpop.permute.xlu0 %2576
        %2578 = vrot.lane.b32.xlu0 %v255, 103
        %v2579 = vpop.permute.xlu0 %2578
        %2580 = vrot.lane.b32.xlu0 %v258, 103
        %v2581 = vpop.permute.xlu0 %2580
        %vm2582 = vcmask 842752
        %v2583 = vsel %vm2582, %v2575, %v2577
        %v2584 = vsel %vm2582, %v2579, %v2581
        %v2590 = vsel %vm299, %v2572, 0
        %v2593 = vsel %vm299, %v2573, 0
        %v2595 = vand.u32 %v2577, 4294901760
        %2596 = vmatprep.subr.mxu0 %v2595
        %v2597 = vand.u32 %v2583, 4294901760
        %2598 = vmatpush1.msra.mxu0 %v2597
        %v2599 = vand.u32 %v2581, 4294901760
        %2600 = vmatprep.subr.mxu0 %v2599
        %v2601 = vand.u32 %v2584, 4294901760
        %2602 = vmatpush1.msra.mxu0 %v2601
        %2603 = vmatprep.subr.mxu0 0.0
        %2604 = vmatpush1.msra.mxu0 0.0
        %2605 = vmatprep.subr.mxu0 0.0
        %2606 = vmatpush1.msra.mxu0 0.0
        %2607 = vmatprep.subr.mxu0 0.0
        %2608 = vmatpush1.msra.mxu0 0.0
        %2609 = vmatprep.subr.mxu0 0.0
        %2610 = vmatpush1.msra.mxu0 0.0
        %2611 = vmatprep.subr.mxu0 0.0
        %2612 = vmatpush1.msra.mxu0 0.0
        %2613 = vmatprep.subr.mxu0 0.0
        %2614 = vmatpush1.msra.mxu0 0.0
        %2615 = vmatprep.subr.mxu0 0.0
        %2616 = vmatpush1.msra.mxu0 0.0
        %2617 = vmatprep.subr.mxu0 0.0
        %2618 = vmatpush1.msra.mxu0 0.0
        %2619 = vmatprep.subr.mxu0 0.0
        %2620 = vmatpush1.msra.mxu0 0.0
        %2621 = vmatprep.subr.mxu0 0.0
        %2622 = vmatpush1.msra.mxu0 0.0
        %2623 = vmatprep.subr.mxu0 0.0
        %2624 = vmatpush1.msra.mxu0 0.0
        %2625 = vmatprep.subr.mxu0 0.0
        %2626 = vmatpush1.msra.mxu0 0.0
        %2627 = vmatprep.subr.mxu0 0.0
        %2628 = vmatpush1.msra.mxu0 0.0
        %2629 = vmatprep.subr.mxu0 0.0
        %2630 = vmatpush1.msra.mxu0 0.0
        %2631 = vmatprep.subr.mxu0 0.0
        %2632 = vmatpush1.msra.mxu0 0.0
        %2633 = vmatprep.subr.mxu0 0.0
        %2634 = vmatpush1.msra.mxu0 0.0
        %2635 = vmatprep.subr.mxu0 0.0
        %2636 = vmatpush1.msra.mxu0 0.0
        %2637 = vmatprep.subr.mxu0 0.0
        %2638 = vmatpush1.msra.mxu0 0.0
        %2639 = vmatprep.subr.mxu0 0.0
        %2640 = vmatpush1.msra.mxu0 0.0
        %2641 = vmatprep.subr.mxu0 0.0
        %2642 = vmatpush1.msra.mxu0 0.0
        %2643 = vmatprep.subr.mxu0 0.0
        %2644 = vmatpush1.msra.mxu0 0.0
        %2645 = vmatprep.subr.mxu0 0.0
        %2646 = vmatpush1.msra.mxu0 0.0
        %2647 = vmatprep.subr.mxu0 0.0
        %2648 = vmatpush1.msra.mxu0 0.0
        %2649 = vmatprep.subr.mxu0 0.0
        %2650 = vmatpush1.msra.mxu0 0.0
        %2651 = vmatprep.subr.mxu0 0.0
        %2652 = vmatpush1.msra.mxu0 0.0
        %2653 = vmatprep.subr.mxu0 0.0
        %2654 = vmatpush1.msra.mxu0 0.0
        %2655 = vmatprep.subr.mxu0 0.0
        %2656 = vmatpush1.msra.mxu0 0.0
        %2657 = vmatprep.subr.mxu0 0.0
        %2658 = vmatpush1.msra.mxu0 0.0
        %2659 = vmatprep.subr.mxu0 0.0
        %2660 = vmatpush1.msra.mxu0 0.0
        %2661 = vmatprep.subr.mxu0 0.0
        %2662 = vmatpush1.msra.mxu0 0.0
        %2663 = vmatprep.mubr.f32.mxu0 0.0
        %v2664 = vand.u32 %v2590, 4294901760
        %v2665 = vsub.f32 %v2590, %v2664
        %v2666 = vand.u32 %v2665, 4294901760
        %v2667 = vsub.f32 %v2665, %v2666
        %v2668 = vand.u32 %v2667, 4294901760
        %2669 = vmatmul.mubr.f32.gmra.mrb[0].mxu0 %v2668
        %v2670 = vpop.f32.mrb[0].mxu0
        %v2671 = vadd.f32 0.0, %v2670
        %v2672 = vpop.f32.mrb[0].mxu0
        %v2673 = vadd.f32 0.0, %v2672
        %2674 = vmatprep.mubr.f32.mxu0 0.0
        %v2675 = vand.u32 %v2593, 4294901760
        %v2676 = vsub.f32 %v2593, %v2675
        %v2677 = vand.u32 %v2676, 4294901760
        %v2678 = vsub.f32 %v2676, %v2677
        %v2679 = vand.u32 %v2678, 4294901760
        %2680 = vmatmul.mubr.f32.gmra.mrb[0].mxu0 %v2679
        %v2681 = vpop.f32.mrb[0].mxu0
        %v2682 = vadd.f32 0.0, %v2681
        %v2683 = vpop.f32.mrb[0].mxu0
        %v2684 = vadd.f32 0.0, %v2683
        %2685 = vdwg.mxu0
        %v2686 = vand.u32 %v2577, 4294901760
        %v2687 = vsub.f32 %v2577, %v2686
        %v2688 = vand.u32 %v2687, 4294901760
        %v2689 = vsub.f32 %v2687, %v2688
        %v2690 = vand.u32 %v2689, 4294901760
        %2691 = vmatprep.subr.mxu0 %v2690
        %v2692 = vand.u32 %v2583, 4294901760
        %v2693 = vsub.f32 %v2583, %v2692
        %v2694 = vand.u32 %v2693, 4294901760
        %v2695 = vsub.f32 %v2693, %v2694
        %v2696 = vand.u32 %v2695, 4294901760
        %2697 = vmatpush1.msra.mxu0 %v2696
        %v2698 = vand.u32 %v2581, 4294901760
        %v2699 = vsub.f32 %v2581, %v2698
        %v2700 = vand.u32 %v2699, 4294901760
        %v2701 = vsub.f32 %v2699, %v2700
        %v2702 = vand.u32 %v2701, 4294901760
        %2703 = vmatprep.subr.mxu0 %v2702
        %v2704 = vand.u32 %v2584, 4294901760
        %v2705 = vsub.f32 %v2584, %v2704
        %v2706 = vand.u32 %v2705, 4294901760
        %v2707 = vsub.f32 %v2705, %v2706
        %v2708 = vand.u32 %v2707, 4294901760
        %2709 = vmatpush1.msra.mxu0 %v2708
        %2710 = vmatprep.subr.mxu0 0.0
        %2711 = vmatpush1.msra.mxu0 0.0
        %2712 = vmatprep.subr.mxu0 0.0
        %2713 = vmatpush1.msra.mxu0 0.0
        %2714 = vmatprep.subr.mxu0 0.0
        %2715 = vmatpush1.msra.mxu0 0.0
        %2716 = vmatprep.subr.mxu0 0.0
        %2717 = vmatpush1.msra.mxu0 0.0
        %2718 = vmatprep.subr.mxu0 0.0
        %2719 = vmatpush1.msra.mxu0 0.0
        %2720 = vmatprep.subr.mxu0 0.0
        %2721 = vmatpush1.msra.mxu0 0.0
        %2722 = vmatprep.subr.mxu0 0.0
        %2723 = vmatpush1.msra.mxu0 0.0
        %2724 = vmatprep.subr.mxu0 0.0
        %2725 = vmatpush1.msra.mxu0 0.0
        %2726 = vmatprep.subr.mxu0 0.0
        %2727 = vmatpush1.msra.mxu0 0.0
        %2728 = vmatprep.subr.mxu0 0.0
        %2729 = vmatpush1.msra.mxu0 0.0
        %2730 = vmatprep.subr.mxu0 0.0
        %2731 = vmatpush1.msra.mxu0 0.0
        %2732 = vmatprep.subr.mxu0 0.0
        %2733 = vmatpush1.msra.mxu0 0.0
        %2734 = vmatprep.subr.mxu0 0.0
        %2735 = vmatpush1.msra.mxu0 0.0
        %2736 = vmatprep.subr.mxu0 0.0
        %2737 = vmatpush1.msra.mxu0 0.0
        %2738 = vmatprep.subr.mxu0 0.0
        %2739 = vmatpush1.msra.mxu0 0.0
        %2740 = vmatprep.subr.mxu0 0.0
        %2741 = vmatpush1.msra.mxu0 0.0
        %2742 = vmatprep.subr.mxu0 0.0
        %2743 = vmatpush1.msra.mxu0 0.0
        %2744 = vmatprep.subr.mxu0 0.0
        %2745 = vmatpush1.msra.mxu0 0.0
        %2746 = vmatprep.subr.mxu0 0.0
        %2747 = vmatpush1.msra.mxu0 0.0
        %2748 = vmatprep.subr.mxu0 0.0
        %2749 = vmatpush1.msra.mxu0 0.0
        %2750 = vmatprep.subr.mxu0 0.0
        %2751 = vmatpush1.msra.mxu0 0.0
        %2752 = vmatprep.subr.mxu0 0.0
        %2753 = vmatpush1.msra.mxu0 0.0
        %2754 = vmatprep.subr.mxu0 0.0
        %2755 = vmatpush1.msra.mxu0 0.0
        %2756 = vmatprep.subr.mxu0 0.0
        %2757 = vmatpush1.msra.mxu0 0.0
        %2758 = vmatprep.subr.mxu0 0.0
        %2759 = vmatpush1.msra.mxu0 0.0
        %2760 = vmatprep.subr.mxu0 0.0
        %2761 = vmatpush1.msra.mxu0 0.0
        %2762 = vmatprep.subr.mxu0 0.0
        %2763 = vmatpush1.msra.mxu0 0.0
        %2764 = vmatprep.subr.mxu0 0.0
        %2765 = vmatpush1.msra.mxu0 0.0
        %2766 = vmatprep.subr.mxu0 0.0
        %2767 = vmatpush1.msra.mxu0 0.0
        %2768 = vmatprep.subr.mxu0 0.0
        %2769 = vmatpush1.msra.mxu0 0.0
        %2770 = vmatprep.mubr.f32.mxu0 0.0
        %v2771 = vand.u32 %v2590, 4294901760
        %2772 = vmatmul.mubr.f32.gmra.mrb[0].mxu0 %v2771
        %v2773 = vpop.f32.mrb[0].mxu0
        %v2774 = vadd.f32 %v2671, %v2773
        %v2775 = vpop.f32.mrb[0].mxu0
        %v2776 = vadd.f32 %v2673, %v2775
        %2777 = vmatprep.mubr.f32.mxu0 0.0
        %v2778 = vand.u32 %v2593, 4294901760
        %2779 = vmatmul.mubr.f32.gmra.mrb[0].mxu0 %v2778
        %v2780 = vpop.f32.mrb[0].mxu0
        %v2781 = vadd.f32 %v2682, %v2780
        %v2782 = vpop.f32.mrb[0].mxu0
        %v2783 = vadd.f32 %v2684, %v2782
        %2784 = vdwg.mxu0
        %v2785 = vand.u32 %v2577, 4294901760
        %v2786 = vsub.f32 %v2577, %v2785
        %2787 = vmatprep.subr.mxu0 %v2786
        %v2788 = vand.u32 %v2583, 4294901760
        %v2789 = vsub.f32 %v2583, %v2788
        %2790 = vmatpush1.msra.mxu0 %v2789
        %v2791 = vand.u32 %v2581, 4294901760
        %v2792 = vsub.f32 %v2581, %v2791
        %2793 = vmatprep.subr.mxu0 %v2792
        %v2794 = vand.u32 %v2584, 4294901760
        %v2795 = vsub.f32 %v2584, %v2794
        %2796 = vmatpush1.msra.mxu0 %v2795
        %2797 = vmatprep.subr.mxu0 0.0
        %2798 = vmatpush1.msra.mxu0 0.0
        %2799 = vmatprep.subr.mxu0 0.0
        %2800 = vmatpush1.msra.mxu0 0.0
        %2801 = vmatprep.subr.mxu0 0.0
        %2802 = vmatpush1.msra.mxu0 0.0
        %2803 = vmatprep.subr.mxu0 0.0
        %2804 = vmatpush1.msra.mxu0 0.0
        %2805 = vmatprep.subr.mxu0 0.0
        %2806 = vmatpush1.msra.mxu0 0.0
        %2807 = vmatprep.subr.mxu0 0.0
        %2808 = vmatpush1.msra.mxu0 0.0
        %2809 = vmatprep.subr.mxu0 0.0
        %2810 = vmatpush1.msra.mxu0 0.0
        %2811 = vmatprep.subr.mxu0 0.0
        %2812 = vmatpush1.msra.mxu0 0.0
        %2813 = vmatprep.subr.mxu0 0.0
        %2814 = vmatpush1.msra.mxu0 0.0
        %2815 = vmatprep.subr.mxu0 0.0
        %2816 = vmatpush1.msra.mxu0 0.0
        %2817 = vmatprep.subr.mxu0 0.0
        %2818 = vmatpush1.msra.mxu0 0.0
        %2819 = vmatprep.subr.mxu0 0.0
        %2820 = vmatpush1.msra.mxu0 0.0
        %2821 = vmatprep.subr.mxu0 0.0
        %2822 = vmatpush1.msra.mxu0 0.0
        %2823 = vmatprep.subr.mxu0 0.0
        %2824 = vmatpush1.msra.mxu0 0.0
        %2825 = vmatprep.subr.mxu0 0.0
        %2826 = vmatpush1.msra.mxu0 0.0
        %2827 = vmatprep.subr.mxu0 0.0
        %2828 = vmatpush1.msra.mxu0 0.0
        %2829 = vmatprep.subr.mxu0 0.0
        %2830 = vmatpush1.msra.mxu0 0.0
        %2831 = vmatprep.subr.mxu0 0.0
        %2832 = vmatpush1.msra.mxu0 0.0
        %2833 = vmatprep.subr.mxu0 0.0
        %2834 = vmatpush1.msra.mxu0 0.0
        %2835 = vmatprep.subr.mxu0 0.0
        %2836 = vmatpush1.msra.mxu0 0.0
        %2837 = vmatprep.subr.mxu0 0.0
        %2838 = vmatpush1.msra.mxu0 0.0
        %2839 = vmatprep.subr.mxu0 0.0
        %2840 = vmatpush1.msra.mxu0 0.0
        %2841 = vmatprep.subr.mxu0 0.0
        %2842 = vmatpush1.msra.mxu0 0.0
        %2843 = vmatprep.subr.mxu0 0.0
        %2844 = vmatpush1.msra.mxu0 0.0
        %2845 = vmatprep.subr.mxu0 0.0
        %2846 = vmatpush1.msra.mxu0 0.0
        %2847 = vmatprep.subr.mxu0 0.0
        %2848 = vmatpush1.msra.mxu0 0.0
        %2849 = vmatprep.subr.mxu0 0.0
        %2850 = vmatpush1.msra.mxu0 0.0
        %2851 = vmatprep.subr.mxu0 0.0
        %2852 = vmatpush1.msra.mxu0 0.0
        %2853 = vmatprep.subr.mxu0 0.0
        %2854 = vmatpush1.msra.mxu0 0.0
        %2855 = vmatprep.subr.mxu0 0.0
        %2856 = vmatpush1.msra.mxu0 0.0
        %2857 = vmatprep.mubr.f32.mxu0 0.0
        %v2858 = vand.u32 %v2590, 4294901760
        %v2859 = vsub.f32 %v2590, %v2858
        %2860 = vmatmul.mubr.f32.gmra.mrb[0].mxu0 %v2859
        %v2861 = vpop.f32.mrb[0].mxu0
        %v2862 = vadd.f32 %v2774, %v2861
        %v2863 = vpop.f32.mrb[0].mxu0
        %v2864 = vadd.f32 %v2776, %v2863
        %2865 = vmatprep.mubr.f32.mxu0 0.0
        %v2866 = vand.u32 %v2593, 4294901760
        %v2867 = vsub.f32 %v2593, %v2866
        %2868 = vmatmul.mubr.f32.gmra.mrb[0].mxu0 %v2867
        %v2869 = vpop.f32.mrb[0].mxu0
        %v2870 = vadd.f32 %v2781, %v2869
        %v2871 = vpop.f32.mrb[0].mxu0
        %v2872 = vadd.f32 %v2783, %v2871
        %2873 = vdwg.mxu0
        %v2874 = vand.u32 %v2577, 4294901760
        %2875 = vmatprep.subr.mxu0 %v2874
        %v2876 = vand.u32 %v2583, 4294901760
        %2877 = vmatpush1.msra.mxu0 %v2876
        %v2878 = vand.u32 %v2581, 4294901760
        %2879 = vmatprep.subr.mxu0 %v2878
        %v2880 = vand.u32 %v2584, 4294901760
        %2881 = vmatpush1.msra.mxu0 %v2880
        %2882 = vmatprep.subr.mxu0 0.0
        %2883 = vmatpush1.msra.mxu0 0.0
        %2884 = vmatprep.subr.mxu0 0.0
        %2885 = vmatpush1.msra.mxu0 0.0
        %2886 = vmatprep.subr.mxu0 0.0
        %2887 = vmatpush1.msra.mxu0 0.0
        %2888 = vmatprep.subr.mxu0 0.0
        %2889 = vmatpush1.msra.mxu0 0.0
        %2890 = vmatprep.subr.mxu0 0.0
        %2891 = vmatpush1.msra.mxu0 0.0
        %2892 = vmatprep.subr.mxu0 0.0
        %2893 = vmatpush1.msra.mxu0 0.0
        %2894 = vmatprep.subr.mxu0 0.0
        %2895 = vmatpush1.msra.mxu0 0.0
        %2896 = vmatprep.subr.mxu0 0.0
        %2897 = vmatpush1.msra.mxu0 0.0
        %2898 = vmatprep.subr.mxu0 0.0
        %2899 = vmatpush1.msra.mxu0 0.0
        %2900 = vmatprep.subr.mxu0 0.0
        %2901 = vmatpush1.msra.mxu0 0.0
        %2902 = vmatprep.subr.mxu0 0.0
        %2903 = vmatpush1.msra.mxu0 0.0
        %2904 = vmatprep.subr.mxu0 0.0
        %2905 = vmatpush1.msra.mxu0 0.0
        %2906 = vmatprep.subr.mxu0 0.0
        %2907 = vmatpush1.msra.mxu0 0.0
        %2908 = vmatprep.subr.mxu0 0.0
        %2909 = vmatpush1.msra.mxu0 0.0
        %2910 = vmatprep.subr.mxu0 0.0
        %2911 = vmatpush1.msra.mxu0 0.0
        %2912 = vmatprep.subr.mxu0 0.0
        %2913 = vmatpush1.msra.mxu0 0.0
        %2914 = vmatprep.subr.mxu0 0.0
        %2915 = vmatpush1.msra.mxu0 0.0
        %2916 = vmatprep.subr.mxu0 0.0
        %2917 = vmatpush1.msra.mxu0 0.0
        %2918 = vmatprep.subr.mxu0 0.0
        %2919 = vmatpush1.msra.mxu0 0.0
        %2920 = vmatprep.subr.mxu0 0.0
        %2921 = vmatpush1.msra.mxu0 0.0
        %2922 = vmatprep.subr.mxu0 0.0
        %2923 = vmatpush1.msra.mxu0 0.0
        %2924 = vmatprep.subr.mxu0 0.0
        %2925 = vmatpush1.msra.mxu0 0.0
        %2926 = vmatprep.subr.mxu0 0.0
        %2927 = vmatpush1.msra.mxu0 0.0
        %2928 = vmatprep.subr.mxu0 0.0
        %2929 = vmatpush1.msra.mxu0 0.0
        %2930 = vmatprep.subr.mxu0 0.0
        %2931 = vmatpush1.msra.mxu0 0.0
        %2932 = vmatprep.subr.mxu0 0.0
        %2933 = vmatpush1.msra.mxu0 0.0
        %2934 = vmatprep.subr.mxu0 0.0
        %2935 = vmatpush1.msra.mxu0 0.0
        %2936 = vmatprep.subr.mxu0 0.0
        %2937 = vmatpush1.msra.mxu0 0.0
        %2938 = vmatprep.subr.mxu0 0.0
        %2939 = vmatpush1.msra.mxu0 0.0
        %2940 = vmatprep.subr.mxu0 0.0
        %2941 = vmatpush1.msra.mxu0 0.0
        %2942 = vmatprep.mubr.f32.mxu0 0.0
        %v2943 = vand.u32 %v2590, 4294901760
        %v2944 = vsub.f32 %v2590, %v2943
        %v2945 = vand.u32 %v2944, 4294901760
        %2946 = vmatmul.mubr.f32.gmra.mrb[0].mxu0 %v2945
        %v2947 = vpop.f32.mrb[0].mxu0
        %v2948 = vadd.f32 %v2862, %v2947
        %v2949 = vpop.f32.mrb[0].mxu0
        %v2950 = vadd.f32 %v2864, %v2949
        %2951 = vmatprep.mubr.f32.mxu0 0.0
        %v2952 = vand.u32 %v2593, 4294901760
        %v2953 = vsub.f32 %v2593, %v2952
        %v2954 = vand.u32 %v2953, 4294901760
        %2955 = vmatmul.mubr.f32.gmra.mrb[0].mxu0 %v2954
        %v2956 = vpop.f32.mrb[0].mxu0
        %v2957 = vadd.f32 %v2870, %v2956
        %v2958 = vpop.f32.mrb[0].mxu0
        %v2959 = vadd.f32 %v2872, %v2958
        %2960 = vdwg.mxu0
        %v2961 = vand.u32 %v2577, 4294901760
        %v2962 = vsub.f32 %v2577, %v2961
        %v2963 = vand.u32 %v2962, 4294901760
        %2964 = vmatprep.subr.mxu0 %v2963
        %v2965 = vand.u32 %v2583, 4294901760
        %v2966 = vsub.f32 %v2583, %v2965
        %v2967 = vand.u32 %v2966, 4294901760
        %2968 = vmatpush1.msra.mxu0 %v2967
        %v2969 = vand.u32 %v2581, 4294901760
        %v2970 = vsub.f32 %v2581, %v2969
        %v2971 = vand.u32 %v2970, 4294901760
        %2972 = vmatprep.subr.mxu0 %v2971
        %v2973 = vand.u32 %v2584, 4294901760
        %v2974 = vsub.f32 %v2584, %v2973
        %v2975 = vand.u32 %v2974, 4294901760
        %2976 = vmatpush1.msra.mxu0 %v2975
        %2977 = vmatprep.subr.mxu0 0.0
        %2978 = vmatpush1.msra.mxu0 0.0
        %2979 = vmatprep.subr.mxu0 0.0
        %2980 = vmatpush1.msra.mxu0 0.0
        %2981 = vmatprep.subr.mxu0 0.0
        %2982 = vmatpush1.msra.mxu0 0.0
        %2983 = vmatprep.subr.mxu0 0.0
        %2984 = vmatpush1.msra.mxu0 0.0
        %2985 = vmatprep.subr.mxu0 0.0
        %2986 = vmatpush1.msra.mxu0 0.0
        %2987 = vmatprep.subr.mxu0 0.0
        %2988 = vmatpush1.msra.mxu0 0.0
        %2989 = vmatprep.subr.mxu0 0.0
        %2990 = vmatpush1.msra.mxu0 0.0
        %2991 = vmatprep.subr.mxu0 0.0
        %2992 = vmatpush1.msra.mxu0 0.0
        %2993 = vmatprep.subr.mxu0 0.0
        %2994 = vmatpush1.msra.mxu0 0.0
        %2995 = vmatprep.subr.mxu0 0.0
        %2996 = vmatpush1.msra.mxu0 0.0
        %2997 = vmatprep.subr.mxu0 0.0
        %2998 = vmatpush1.msra.mxu0 0.0
        %2999 = vmatprep.subr.mxu0 0.0
        %3000 = vmatpush1.msra.mxu0 0.0
        %3001 = vmatprep.subr.mxu0 0.0
        %3002 = vmatpush1.msra.mxu0 0.0
        %3003 = vmatprep.subr.mxu0 0.0
        %3004 = vmatpush1.msra.mxu0 0.0
        %3005 = vmatprep.subr.mxu0 0.0
        %3006 = vmatpush1.msra.mxu0 0.0
        %3007 = vmatprep.subr.mxu0 0.0
        %3008 = vmatpush1.msra.mxu0 0.0
        %3009 = vmatprep.subr.mxu0 0.0
        %3010 = vmatpush1.msra.mxu0 0.0
        %3011 = vmatprep.subr.mxu0 0.0
        %3012 = vmatpush1.msra.mxu0 0.0
        %3013 = vmatprep.subr.mxu0 0.0
        %3014 = vmatpush1.msra.mxu0 0.0
        %3015 = vmatprep.subr.mxu0 0.0
        %3016 = vmatpush1.msra.mxu0 0.0
        %3017 = vmatprep.subr.mxu0 0.0
        %3018 = vmatpush1.msra.mxu0 0.0
        %3019 = vmatprep.subr.mxu0 0.0
        %3020 = vmatpush1.msra.mxu0 0.0
        %3021 = vmatprep.subr.mxu0 0.0
        %3022 = vmatpush1.msra.mxu0 0.0
        %3023 = vmatprep.subr.mxu0 0.0
        %3024 = vmatpush1.msra.mxu0 0.0
        %3025 = vmatprep.subr.mxu0 0.0
        %3026 = vmatpush1.msra.mxu0 0.0
        %3027 = vmatprep.subr.mxu0 0.0
        %3028 = vmatpush1.msra.mxu0 0.0
        %3029 = vmatprep.subr.mxu0 0.0
        %3030 = vmatpush1.msra.mxu0 0.0
        %3031 = vmatprep.subr.mxu0 0.0
        %3032 = vmatpush1.msra.mxu0 0.0
        %3033 = vmatprep.subr.mxu0 0.0
        %3034 = vmatpush1.msra.mxu0 0.0
        %3035 = vmatprep.subr.mxu0 0.0
        %3036 = vmatpush1.msra.mxu0 0.0
        %3037 = vmatprep.mubr.f32.mxu0 0.0
        %v3038 = vand.u32 %v2590, 4294901760
        %3039 = vmatmul.mubr.f32.gmra.mrb[0].mxu0 %v3038
        %v3040 = vpop.f32.mrb[0].mxu0
        %v3041 = vadd.f32 %v2948, %v3040
        %v3042 = vpop.f32.mrb[0].mxu0
        %v3043 = vadd.f32 %v2950, %v3042
        %3044 = vmatprep.mubr.f32.mxu0 0.0
        %v3045 = vand.u32 %v2593, 4294901760
        %3046 = vmatmul.mubr.f32.gmra.mrb[0].mxu0 %v3045
        %v3047 = vpop.f32.mrb[0].mxu0
        %v3048 = vadd.f32 %v2957, %v3047
        %v3049 = vpop.f32.mrb[0].mxu0
        %v3050 = vadd.f32 %v2959, %v3049
        %3051 = vdwg.mxu0
        %v3052 = vand.u32 %v2577, 4294901760
        %3053 = vmatprep.subr.mxu0 %v3052
        %v3054 = vand.u32 %v2583, 4294901760
        %3055 = vmatpush1.msra.mxu0 %v3054
        %v3056 = vand.u32 %v2581, 4294901760
        %3057 = vmatprep.subr.mxu0 %v3056
        %v3058 = vand.u32 %v2584, 4294901760
        %3059 = vmatpush1.msra.mxu0 %v3058
        %3060 = vmatprep.subr.mxu0 0.0
        %3061 = vmatpush1.msra.mxu0 0.0
        %3062 = vmatprep.subr.mxu0 0.0
        %3063 = vmatpush1.msra.mxu0 0.0
        %3064 = vmatprep.subr.mxu0 0.0
        %3065 = vmatpush1.msra.mxu0 0.0
        %3066 = vmatprep.subr.mxu0 0.0
        %3067 = vmatpush1.msra.mxu0 0.0
        %3068 = vmatprep.subr.mxu0 0.0
        %3069 = vmatpush1.msra.mxu0 0.0
        %3070 = vmatprep.subr.mxu0 0.0
        %3071 = vmatpush1.msra.mxu0 0.0
        %3072 = vmatprep.subr.mxu0 0.0
        %3073 = vmatpush1.msra.mxu0 0.0
        %3074 = vmatprep.subr.mxu0 0.0
        %3075 = vmatpush1.msra.mxu0 0.0
        %3076 = vmatprep.subr.mxu0 0.0
        %3077 = vmatpush1.msra.mxu0 0.0
        %3078 = vmatprep.subr.mxu0 0.0
        %3079 = vmatpush1.msra.mxu0 0.0
        %3080 = vmatprep.subr.mxu0 0.0
        %3081 = vmatpush1.msra.mxu0 0.0
        %3082 = vmatprep.subr.mxu0 0.0
        %3083 = vmatpush1.msra.mxu0 0.0
        %3084 = vmatprep.subr.mxu0 0.0
        %3085 = vmatpush1.msra.mxu0 0.0
        %3086 = vmatprep.subr.mxu0 0.0
        %3087 = vmatpush1.msra.mxu0 0.0
        %3088 = vmatprep.subr.mxu0 0.0
        %3089 = vmatpush1.msra.mxu0 0.0
        %3090 = vmatprep.subr.mxu0 0.0
        %3091 = vmatpush1.msra.mxu0 0.0
        %3092 = vmatprep.subr.mxu0 0.0
        %3093 = vmatpush1.msra.mxu0 0.0
        %3094 = vmatprep.subr.mxu0 0.0
        %3095 = vmatpush1.msra.mxu0 0.0
        %3096 = vmatprep.subr.mxu0 0.0
        %3097 = vmatpush1.msra.mxu0 0.0
        %3098 = vmatprep.subr.mxu0 0.0
        %3099 = vmatpush1.msra.mxu0 0.0
        %3100 = vmatprep.subr.mxu0 0.0
        %3101 = vmatpush1.msra.mxu0 0.0
        %3102 = vmatprep.subr.mxu0 0.0
        %3103 = vmatpush1.msra.mxu0 0.0
        %3104 = vmatprep.subr.mxu0 0.0
        %3105 = vmatpush1.msra.mxu0 0.0
        %3106 = vmatprep.subr.mxu0 0.0
        %3107 = vmatpush1.msra.mxu0 0.0
        %3108 = vmatprep.subr.mxu0 0.0
        %3109 = vmatpush1.msra.mxu0 0.0
        %3110 = vmatprep.subr.mxu0 0.0
        %3111 = vmatpush1.msra.mxu0 0.0
        %3112 = vmatprep.subr.mxu0 0.0
        %3113 = vmatpush1.msra.mxu0 0.0
        %3114 = vmatprep.subr.mxu0 0.0
        %3115 = vmatpush1.msra.mxu0 0.0
        %3116 = vmatprep.subr.mxu0 0.0
        %3117 = vmatpush1.msra.mxu0 0.0
        %3118 = vmatprep.subr.mxu0 0.0
        %3119 = vmatpush1.msra.mxu0 0.0
        %3120 = vmatprep.mubr.f32.mxu0 0.0
        %v3121 = vand.u32 %v2590, 4294901760
        %3122 = vmatmul.mubr.f32.gmra.mrb[0].mxu0 %v3121
        %v3123 = vpop.f32.mrb[0].mxu0
        %v3124 = vadd.f32 %v3041, %v3123
        %v3125 = vpop.f32.mrb[0].mxu0
        %v3126 = vadd.f32 %v3043, %v3125
        %3127 = vmatprep.mubr.f32.mxu0 0.0
        %v3128 = vand.u32 %v2593, 4294901760
        %3129 = vmatmul.mubr.f32.gmra.mrb[0].mxu0 %v3128
        %v3130 = vpop.f32.mrb[0].mxu0
        %v3131 = vadd.f32 %v3048, %v3130
        %v3132 = vpop.f32.mrb[0].mxu0
        %v3133 = vadd.f32 %v3050, %v3132
        %3134 = vdwg.mxu0
        %v3135 = vadd.f32 %v2567, %v3124
        %v3136 = vadd.f32 %v2568, %v3126
        %v3137 = vadd.f32 %v2569, %v3131
        %v3138 = vadd.f32 %v2570, %v3133
        %3139 = vrot.lane.b32.xlu0 %v1398, 26
        %v3140 = vpop.permute.xlu0 %3139
        %3141 = vrot.lane.b32.xlu0 %v1402, 26
        %v3142 = vpop.permute.xlu0 %3141
        %vm3143 = vcmask 211968
        %v3144 = vsel %vm3143, %v3140, %v3142
        %v3147 = vmul.f32 %v254, %v3140
        %v3148 = vmul.f32 %v257, %v3144
        %v3149 = vmul.f32 %v255, %v3140
        %v3150 = vmul.f32 %v258, %v3144
        %s3151 = scalar_lea.vmem [#allocation5], 80
        %v3152 = vld [vmem:[%s3151] sm:$0xff]
        %v3153 = vld [vmem:[%s3151 + $0x8] sm:$0xff]
        %3158 = vrot.lane.b32.xlu0 %v3147, 102
        %v3159 = vpop.permute.xlu0 %3158
        %3160 = vrot.lane.b32.xlu0 %v3148, 102
        %v3161 = vpop.permute.xlu0 %3160
        %3162 = vrot.lane.b32.xlu0 %v3149, 102
        %v3163 = vpop.permute.xlu0 %3162
        %3164 = vrot.lane.b32.xlu0 %v3150, 102
        %v3165 = vpop.permute.xlu0 %3164
        %vm3166 = vcmask 834560
        %v3167 = vsel %vm3166, %v3159, %v3161
        %v3168 = vsel %vm3166, %v3163, %v3165
        %v3174 = vsel %vm299, %v3152, 0
        %v3177 = vsel %vm299, %v3153, 0
        %v3179 = vand.u32 %v3161, 4294901760
        %3180 = vmatprep.subr.mxu0 %v3179
        %v3181 = vand.u32 %v3167, 4294901760
        %3182 = vmatpush1.msra.mxu0 %v3181
        %v3183 = vand.u32 %v3165, 4294901760
        %3184 = vmatprep.subr.mxu0 %v3183
        %v3185 = vand.u32 %v3168, 4294901760
        %3186 = vmatpush1.msra.mxu0 %v3185
        %3187 = vmatprep.subr.mxu0 0.0
        %3188 = vmatpush1.msra.mxu0 0.0
        %3189 = vmatprep.subr.mxu0 0.0
        %3190 = vmatpush1.msra.mxu0 0.0
        %3191 = vmatprep.subr.mxu0 0.0
        %3192 = vmatpush1.msra.mxu0 0.0
        %3193 = vmatprep.subr.mxu0 0.0
        %3194 = vmatpush1.msra.mxu0 0.0
        %3195 = vmatprep.subr.mxu0 0.0
        %3196 = vmatpush1.msra.mxu0 0.0
        %3197 = vmatprep.subr.mxu0 0.0
        %3198 = vmatpush1.msra.mxu0 0.0
        %3199 = vmatprep.subr.mxu0 0.0
        %3200 = vmatpush1.msra.mxu0 0.0
        %3201 = vmatprep.subr.mxu0 0.0
        %3202 = vmatpush1.msra.mxu0 0.0
        %3203 = vmatprep.subr.mxu0 0.0
        %3204 = vmatpush1.msra.mxu0 0.0
        %3205 = vmatprep.subr.mxu0 0.0
        %3206 = vmatpush1.msra.mxu0 0.0
        %3207 = vmatprep.subr.mxu0 0.0
        %3208 = vmatpush1.msra.mxu0 0.0
        %3209 = vmatprep.subr.mxu0 0.0
        %3210 = vmatpush1.msra.mxu0 0.0
        %3211 = vmatprep.subr.mxu0 0.0
        %3212 = vmatpush1.msra.mxu0 0.0
        %3213 = vmatprep.subr.mxu0 0.0
        %3214 = vmatpush1.msra.mxu0 0.0
        %3215 = vmatprep.subr.mxu0 0.0
        %3216 = vmatpush1.msra.mxu0 0.0
        %3217 = vmatprep.subr.mxu0 0.0
        %3218 = vmatpush1.msra.mxu0 0.0
        %3219 = vmatprep.subr.mxu0 0.0
        %3220 = vmatpush1.msra.mxu0 0.0
        %3221 = vmatprep.subr.mxu0 0.0
        %3222 = vmatpush1.msra.mxu0 0.0
        %3223 = vmatprep.subr.mxu0 0.0
        %3224 = vmatpush1.msra.mxu0 0.0
        %3225 = vmatprep.subr.mxu0 0.0
        %3226 = vmatpush1.msra.mxu0 0.0
        %3227 = vmatprep.subr.mxu0 0.0
        %3228 = vmatpush1.msra.mxu0 0.0
        %3229 = vmatprep.subr.mxu0 0.0
        %3230 = vmatpush1.msra.mxu0 0.0
        %3231 = vmatprep.subr.mxu0 0.0
        %3232 = vmatpush1.msra.mxu0 0.0
        %3233 = vmatprep.subr.mxu0 0.0
        %3234 = vmatpush1.msra.mxu0 0.0
        %3235 = vmatprep.subr.mxu0 0.0
        %3236 = vmatpush1.msra.mxu0 0.0
        %3237 = vmatprep.subr.mxu0 0.0
        %3238 = vmatpush1.msra.mxu0 0.0
        %3239 = vmatprep.subr.mxu0 0.0
        %3240 = vmatpush1.msra.mxu0 0.0
        %3241 = vmatprep.subr.mxu0 0.0
        %3242 = vmatpush1.msra.mxu0 0.0
        %3243 = vmatprep.subr.mxu0 0.0
        %3244 = vmatpush1.msra.mxu0 0.0
        %3245 = vmatprep.subr.mxu0 0.0
        %3246 = vmatpush1.msra.mxu0 0.0
        %3247 = vmatprep.mubr.f32.mxu0 0.0
        %v3248 = vand.u32 %v3174, 4294901760
        %v3249 = vsub.f32 %v3174, %v3248
        %v3250 = vand.u32 %v3249, 4294901760
        %v3251 = vsub.f32 %v3249, %v3250
        %v3252 = vand.u32 %v3251, 4294901760
        %3253 = vmatmul.mubr.f32.gmra.mrb[0].mxu0 %v3252
        %v3254 = vpop.f32.mrb[0].mxu0
        %v3255 = vadd.f32 0.0, %v3254
        %v3256 = vpop.f32.mrb[0].mxu0
        %v3257 = vadd.f32 0.0, %v3256
        %3258 = vmatprep.mubr.f32.mxu0 0.0
        %v3259 = vand.u32 %v3177, 4294901760
        %v3260 = vsub.f32 %v3177, %v3259
        %v3261 = vand.u32 %v3260, 4294901760
        %v3262 = vsub.f32 %v3260, %v3261
        %v3263 = vand.u32 %v3262, 4294901760
        %3264 = vmatmul.mubr.f32.gmra.mrb[0].mxu0 %v3263
        %v3265 = vpop.f32.mrb[0].mxu0
        %v3266 = vadd.f32 0.0, %v3265
        %v3267 = vpop.f32.mrb[0].mxu0
        %v3268 = vadd.f32 0.0, %v3267
        %3269 = vdwg.mxu0
        %v3270 = vand.u32 %v3161, 4294901760
        %v3271 = vsub.f32 %v3161, %v3270
        %v3272 = vand.u32 %v3271, 4294901760
        %v3273 = vsub.f32 %v3271, %v3272
        %v3274 = vand.u32 %v3273, 4294901760
        %3275 = vmatprep.subr.mxu0 %v3274
        %v3276 = vand.u32 %v3167, 4294901760
        %v3277 = vsub.f32 %v3167, %v3276
        %v3278 = vand.u32 %v3277, 4294901760
        %v3279 = vsub.f32 %v3277, %v3278
        %v3280 = vand.u32 %v3279, 4294901760
        %3281 = vmatpush1.msra.mxu0 %v3280
        %v3282 = vand.u32 %v3165, 4294901760
        %v3283 = vsub.f32 %v3165, %v3282
        %v3284 = vand.u32 %v3283, 4294901760
        %v3285 = vsub.f32 %v3283, %v3284
        %v3286 = vand.u32 %v3285, 4294901760
        %3287 = vmatprep.subr.mxu0 %v3286
        %v3288 = vand.u32 %v3168, 4294901760
        %v3289 = vsub.f32 %v3168, %v3288
        %v3290 = vand.u32 %v3289, 4294901760
        %v3291 = vsub.f32 %v3289, %v3290
        %v3292 = vand.u32 %v3291, 4294901760
        %3293 = vmatpush1.msra.mxu0 %v3292
        %3294 = vmatprep.subr.mxu0 0.0
        %3295 = vmatpush1.msra.mxu0 0.0
        %3296 = vmatprep.subr.mxu0 0.0
        %3297 = vmatpush1.msra.mxu0 0.0
        %3298 = vmatprep.subr.mxu0 0.0
        %3299 = vmatpush1.msra.mxu0 0.0
        %3300 = vmatprep.subr.mxu0 0.0
        %3301 = vmatpush1.msra.mxu0 0.0
        %3302 = vmatprep.subr.mxu0 0.0
        %3303 = vmatpush1.msra.mxu0 0.0
        %3304 = vmatprep.subr.mxu0 0.0
        %3305 = vmatpush1.msra.mxu0 0.0
        %3306 = vmatprep.subr.mxu0 0.0
        %3307 = vmatpush1.msra.mxu0 0.0
        %3308 = vmatprep.subr.mxu0 0.0
        %3309 = vmatpush1.msra.mxu0 0.0
        %3310 = vmatprep.subr.mxu0 0.0
        %3311 = vmatpush1.msra.mxu0 0.0
        %3312 = vmatprep.subr.mxu0 0.0
        %3313 = vmatpush1.msra.mxu0 0.0
        %3314 = vmatprep.subr.mxu0 0.0
        %3315 = vmatpush1.msra.mxu0 0.0
        %3316 = vmatprep.subr.mxu0 0.0
        %3317 = vmatpush1.msra.mxu0 0.0
        %3318 = vmatprep.subr.mxu0 0.0
        %3319 = vmatpush1.msra.mxu0 0.0
        %3320 = vmatprep.subr.mxu0 0.0
        %3321 = vmatpush1.msra.mxu0 0.0
        %3322 = vmatprep.subr.mxu0 0.0
        %3323 = vmatpush1.msra.mxu0 0.0
        %3324 = vmatprep.subr.mxu0 0.0
        %3325 = vmatpush1.msra.mxu0 0.0
        %3326 = vmatprep.subr.mxu0 0.0
        %3327 = vmatpush1.msra.mxu0 0.0
        %3328 = vmatprep.subr.mxu0 0.0
        %3329 = vmatpush1.msra.mxu0 0.0
        %3330 = vmatprep.subr.mxu0 0.0
        %3331 = vmatpush1.msra.mxu0 0.0
        %3332 = vmatprep.subr.mxu0 0.0
        %3333 = vmatpush1.msra.mxu0 0.0
        %3334 = vmatprep.subr.mxu0 0.0
        %3335 = vmatpush1.msra.mxu0 0.0
        %3336 = vmatprep.subr.mxu0 0.0
        %3337 = vmatpush1.msra.mxu0 0.0
        %3338 = vmatprep.subr.mxu0 0.0
        %3339 = vmatpush1.msra.mxu0 0.0
        %3340 = vmatprep.subr.mxu0 0.0
        %3341 = vmatpush1.msra.mxu0 0.0
        %3342 = vmatprep.subr.mxu0 0.0
        %3343 = vmatpush1.msra.mxu0 0.0
        %3344 = vmatprep.subr.mxu0 0.0
        %3345 = vmatpush1.msra.mxu0 0.0
        %3346 = vmatprep.subr.mxu0 0.0
        %3347 = vmatpush1.msra.mxu0 0.0
        %3348 = vmatprep.subr.mxu0 0.0
        %3349 = vmatpush1.msra.mxu0 0.0
        %3350 = vmatprep.subr.mxu0 0.0
        %3351 = vmatpush1.msra.mxu0 0.0
        %3352 = vmatprep.subr.mxu0 0.0
        %3353 = vmatpush1.msra.mxu0 0.0
        %3354 = vmatprep.mubr.f32.mxu0 0.0
        %v3355 = vand.u32 %v3174, 4294901760
        %3356 = vmatmul.mubr.f32.gmra.mrb[0].mxu0 %v3355
        %v3357 = vpop.f32.mrb[0].mxu0
        %v3358 = vadd.f32 %v3255, %v3357
        %v3359 = vpop.f32.mrb[0].mxu0
        %v3360 = vadd.f32 %v3257, %v3359
        %3361 = vmatprep.mubr.f32.mxu0 0.0
        %v3362 = vand.u32 %v3177, 4294901760
        %3363 = vmatmul.mubr.f32.gmra.mrb[0].mxu0 %v3362
        %v3364 = vpop.f32.mrb[0].mxu0
        %v3365 = vadd.f32 %v3266, %v3364
        %v3366 = vpop.f32.mrb[0].mxu0
        %v3367 = vadd.f32 %v3268, %v3366
        %3368 = vdwg.mxu0
        %v3369 = vand.u32 %v3161, 4294901760
        %v3370 = vsub.f32 %v3161, %v3369
        %3371 = vmatprep.subr.mxu0 %v3370
        %v3372 = vand.u32 %v3167, 4294901760
        %v3373 = vsub.f32 %v3167, %v3372
        %3374 = vmatpush1.msra.mxu0 %v3373
        %v3375 = vand.u32 %v3165, 4294901760
        %v3376 = vsub.f32 %v3165, %v3375
        %3377 = vmatprep.subr.mxu0 %v3376
        %v3378 = vand.u32 %v3168, 4294901760
        %v3379 = vsub.f32 %v3168, %v3378
        %3380 = vmatpush1.msra.mxu0 %v3379
        %3381 = vmatprep.subr.mxu0 0.0
        %3382 = vmatpush1.msra.mxu0 0.0
        %3383 = vmatprep.subr.mxu0 0.0
        %3384 = vmatpush1.msra.mxu0 0.0
        %3385 = vmatprep.subr.mxu0 0.0
        %3386 = vmatpush1.msra.mxu0 0.0
        %3387 = vmatprep.subr.mxu0 0.0
        %3388 = vmatpush1.msra.mxu0 0.0
        %3389 = vmatprep.subr.mxu0 0.0
        %3390 = vmatpush1.msra.mxu0 0.0
        %3391 = vmatprep.subr.mxu0 0.0
        %3392 = vmatpush1.msra.mxu0 0.0
        %3393 = vmatprep.subr.mxu0 0.0
        %3394 = vmatpush1.msra.mxu0 0.0
        %3395 = vmatprep.subr.mxu0 0.0
        %3396 = vmatpush1.msra.mxu0 0.0
        %3397 = vmatprep.subr.mxu0 0.0
        %3398 = vmatpush1.msra.mxu0 0.0
        %3399 = vmatprep.subr.mxu0 0.0
        %3400 = vmatpush1.msra.mxu0 0.0
        %3401 = vmatprep.subr.mxu0 0.0
        %3402 = vmatpush1.msra.mxu0 0.0
        %3403 = vmatprep.subr.mxu0 0.0
        %3404 = vmatpush1.msra.mxu0 0.0
        %3405 = vmatprep.subr.mxu0 0.0
        %3406 = vmatpush1.msra.mxu0 0.0
        %3407 = vmatprep.subr.mxu0 0.0
        %3408 = vmatpush1.msra.mxu0 0.0
        %3409 = vmatprep.subr.mxu0 0.0
        %3410 = vmatpush1.msra.mxu0 0.0
        %3411 = vmatprep.subr.mxu0 0.0
        %3412 = vmatpush1.msra.mxu0 0.0
        %3413 = vmatprep.subr.mxu0 0.0
        %3414 = vmatpush1.msra.mxu0 0.0
        %3415 = vmatprep.subr.mxu0 0.0
        %3416 = vmatpush1.msra.mxu0 0.0
        %3417 = vmatprep.subr.mxu0 0.0
        %3418 = vmatpush1.msra.mxu0 0.0
        %3419 = vmatprep.subr.mxu0 0.0
        %3420 = vmatpush1.msra.mxu0 0.0
        %3421 = vmatprep.subr.mxu0 0.0
        %3422 = vmatpush1.msra.mxu0 0.0
        %3423 = vmatprep.subr.mxu0 0.0
        %3424 = vmatpush1.msra.mxu0 0.0
        %3425 = vmatprep.subr.mxu0 0.0
        %3426 = vmatpush1.msra.mxu0 0.0
        %3427 = vmatprep.subr.mxu0 0.0
        %3428 = vmatpush1.msra.mxu0 0.0
        %3429 = vmatprep.subr.mxu0 0.0
        %3430 = vmatpush1.msra.mxu0 0.0
        %3431 = vmatprep.subr.mxu0 0.0
        %3432 = vmatpush1.msra.mxu0 0.0
        %3433 = vmatprep.subr.mxu0 0.0
        %3434 = vmatpush1.msra.mxu0 0.0
        %3435 = vmatprep.subr.mxu0 0.0
        %3436 = vmatpush1.msra.mxu0 0.0
        %3437 = vmatprep.subr.mxu0 0.0
        %3438 = vmatpush1.msra.mxu0 0.0
        %3439 = vmatprep.subr.mxu0 0.0
        %3440 = vmatpush1.msra.mxu0 0.0
        %3441 = vmatprep.mubr.f32.mxu0 0.0
        %v3442 = vand.u32 %v3174, 4294901760
        %v3443 = vsub.f32 %v3174, %v3442
        %3444 = vmatmul.mubr.f32.gmra.mrb[0].mxu0 %v3443
        %v3445 = vpop.f32.mrb[0].mxu0
        %v3446 = vadd.f32 %v3358, %v3445
        %v3447 = vpop.f32.mrb[0].mxu0
        %v3448 = vadd.f32 %v3360, %v3447
        %3449 = vmatprep.mubr.f32.mxu0 0.0
        %v3450 = vand.u32 %v3177, 4294901760
        %v3451 = vsub.f32 %v3177, %v3450
        %3452 = vmatmul.mubr.f32.gmra.mrb[0].mxu0 %v3451
        %v3453 = vpop.f32.mrb[0].mxu0
        %v3454 = vadd.f32 %v3365, %v3453
        %v3455 = vpop.f32.mrb[0].mxu0
        %v3456 = vadd.f32 %v3367, %v3455
        %3457 = vdwg.mxu0
        %v3458 = vand.u32 %v3161, 4294901760
        %3459 = vmatprep.subr.mxu0 %v3458
        %v3460 = vand.u32 %v3167, 4294901760
        %3461 = vmatpush1.msra.mxu0 %v3460
        %v3462 = vand.u32 %v3165, 4294901760
        %3463 = vmatprep.subr.mxu0 %v3462
        %v3464 = vand.u32 %v3168, 4294901760
        %3465 = vmatpush1.msra.mxu0 %v3464
        %3466 = vmatprep.subr.mxu0 0.0
        %3467 = vmatpush1.msra.mxu0 0.0
        %3468 = vmatprep.subr.mxu0 0.0
        %3469 = vmatpush1.msra.mxu0 0.0
        %3470 = vmatprep.subr.mxu0 0.0
        %3471 = vmatpush1.msra.mxu0 0.0
        %3472 = vmatprep.subr.mxu0 0.0
        %3473 = vmatpush1.msra.mxu0 0.0
        %3474 = vmatprep.subr.mxu0 0.0
        %3475 = vmatpush1.msra.mxu0 0.0
        %3476 = vmatprep.subr.mxu0 0.0
        %3477 = vmatpush1.msra.mxu0 0.0
        %3478 = vmatprep.subr.mxu0 0.0
        %3479 = vmatpush1.msra.mxu0 0.0
        %3480 = vmatprep.subr.mxu0 0.0
        %3481 = vmatpush1.msra.mxu0 0.0
        %3482 = vmatprep.subr.mxu0 0.0
        %3483 = vmatpush1.msra.mxu0 0.0
        %3484 = vmatprep.subr.mxu0 0.0
        %3485 = vmatpush1.msra.mxu0 0.0
        %3486 = vmatprep.subr.mxu0 0.0
        %3487 = vmatpush1.msra.mxu0 0.0
        %3488 = vmatprep.subr.mxu0 0.0
        %3489 = vmatpush1.msra.mxu0 0.0
        %3490 = vmatprep.subr.mxu0 0.0
        %3491 = vmatpush1.msra.mxu0 0.0
        %3492 = vmatprep.subr.mxu0 0.0
        %3493 = vmatpush1.msra.mxu0 0.0
        %3494 = vmatprep.subr.mxu0 0.0
        %3495 = vmatpush1.msra.mxu0 0.0
        %3496 = vmatprep.subr.mxu0 0.0
        %3497 = vmatpush1.msra.mxu0 0.0
        %3498 = vmatprep.subr.mxu0 0.0
        %3499 = vmatpush1.msra.mxu0 0.0
        %3500 = vmatprep.subr.mxu0 0.0
        %3501 = vmatpush1.msra.mxu0 0.0
        %3502 = vmatprep.subr.mxu0 0.0
        %3503 = vmatpush1.msra.mxu0 0.0
        %3504 = vmatprep.subr.mxu0 0.0
        %3505 = vmatpush1.msra.mxu0 0.0
        %3506 = vmatprep.subr.mxu0 0.0
        %3507 = vmatpush1.msra.mxu0 0.0
        %3508 = vmatprep.subr.mxu0 0.0
        %3509 = vmatpush1.msra.mxu0 0.0
        %3510 = vmatprep.subr.mxu0 0.0
        %3511 = vmatpush1.msra.mxu0 0.0
        %3512 = vmatprep.subr.mxu0 0.0
        %3513 = vmatpush1.msra.mxu0 0.0
        %3514 = vmatprep.subr.mxu0 0.0
        %3515 = vmatpush1.msra.mxu0 0.0
        %3516 = vmatprep.subr.mxu0 0.0
        %3517 = vmatpush1.msra.mxu0 0.0
        %3518 = vmatprep.subr.mxu0 0.0
        %3519 = vmatpush1.msra.mxu0 0.0
        %3520 = vmatprep.subr.mxu0 0.0
        %3521 = vmatpush1.msra.mxu0 0.0
        %3522 = vmatprep.subr.mxu0 0.0
        %3523 = vmatpush1.msra.mxu0 0.0
        %3524 = vmatprep.subr.mxu0 0.0
        %3525 = vmatpush1.msra.mxu0 0.0
        %3526 = vmatprep.mubr.f32.mxu0 0.0
        %v3527 = vand.u32 %v3174, 4294901760
        %v3528 = vsub.f32 %v3174, %v3527
        %v3529 = vand.u32 %v3528, 4294901760
        %3530 = vmatmul.mubr.f32.gmra.mrb[0].mxu0 %v3529
        %v3531 = vpop.f32.mrb[0].mxu0
        %v3532 = vadd.f32 %v3446, %v3531
        %v3533 = vpop.f32.mrb[0].mxu0
        %v3534 = vadd.f32 %v3448, %v3533
        %3535 = vmatprep.mubr.f32.mxu0 0.0
        %v3536 = vand.u32 %v3177, 4294901760
        %v3537 = vsub.f32 %v3177, %v3536
        %v3538 = vand.u32 %v3537, 4294901760
        %3539 = vmatmul.mubr.f32.gmra.mrb[0].mxu0 %v3538
        %v3540 = vpop.f32.mrb[0].mxu0
        %v3541 = vadd.f32 %v3454, %v3540
        %v3542 = vpop.f32.mrb[0].mxu0
        %v3543 = vadd.f32 %v3456, %v3542
        %3544 = vdwg.mxu0
        %v3545 = vand.u32 %v3161, 4294901760
        %v3546 = vsub.f32 %v3161, %v3545
        %v3547 = vand.u32 %v3546, 4294901760
        %3548 = vmatprep.subr.mxu0 %v3547
        %v3549 = vand.u32 %v3167, 4294901760
        %v3550 = vsub.f32 %v3167, %v3549
        %v3551 = vand.u32 %v3550, 4294901760
        %3552 = vmatpush1.msra.mxu0 %v3551
        %v3553 = vand.u32 %v3165, 4294901760
        %v3554 = vsub.f32 %v3165, %v3553
        %v3555 = vand.u32 %v3554, 4294901760
        %3556 = vmatprep.subr.mxu0 %v3555
        %v3557 = vand.u32 %v3168, 4294901760
        %v3558 = vsub.f32 %v3168, %v3557
        %v3559 = vand.u32 %v3558, 4294901760
        %3560 = vmatpush1.msra.mxu0 %v3559
        %3561 = vmatprep.subr.mxu0 0.0
        %3562 = vmatpush1.msra.mxu0 0.0
        %3563 = vmatprep.subr.mxu0 0.0
        %3564 = vmatpush1.msra.mxu0 0.0
        %3565 = vmatprep.subr.mxu0 0.0
        %3566 = vmatpush1.msra.mxu0 0.0
        %3567 = vmatprep.subr.mxu0 0.0
        %3568 = vmatpush1.msra.mxu0 0.0
        %3569 = vmatprep.subr.mxu0 0.0
        %3570 = vmatpush1.msra.mxu0 0.0
        %3571 = vmatprep.subr.mxu0 0.0
        %3572 = vmatpush1.msra.mxu0 0.0
        %3573 = vmatprep.subr.mxu0 0.0
        %3574 = vmatpush1.msra.mxu0 0.0
        %3575 = vmatprep.subr.mxu0 0.0
        %3576 = vmatpush1.msra.mxu0 0.0
        %3577 = vmatprep.subr.mxu0 0.0
        %3578 = vmatpush1.msra.mxu0 0.0
        %3579 = vmatprep.subr.mxu0 0.0
        %3580 = vmatpush1.msra.mxu0 0.0
        %3581 = vmatprep.subr.mxu0 0.0
        %3582 = vmatpush1.msra.mxu0 0.0
        %3583 = vmatprep.subr.mxu0 0.0
        %3584 = vmatpush1.msra.mxu0 0.0
        %3585 = vmatprep.subr.mxu0 0.0
        %3586 = vmatpush1.msra.mxu0 0.0
        %3587 = vmatprep.subr.mxu0 0.0
        %3588 = vmatpush1.msra.mxu0 0.0
        %3589 = vmatprep.subr.mxu0 0.0
        %3590 = vmatpush1.msra.mxu0 0.0
        %3591 = vmatprep.subr.mxu0 0.0
        %3592 = vmatpush1.msra.mxu0 0.0
        %3593 = vmatprep.subr.mxu0 0.0
        %3594 = vmatpush1.msra.mxu0 0.0
        %3595 = vmatprep.subr.mxu0 0.0
        %3596 = vmatpush1.msra.mxu0 0.0
        %3597 = vmatprep.subr.mxu0 0.0
        %3598 = vmatpush1.msra.mxu0 0.0
        %3599 = vmatprep.subr.mxu0 0.0
        %3600 = vmatpush1.msra.mxu0 0.0
        %3601 = vmatprep.subr.mxu0 0.0
        %3602 = vmatpush1.msra.mxu0 0.0
        %3603 = vmatprep.subr.mxu0 0.0
        %3604 = vmatpush1.msra.mxu0 0.0
        %3605 = vmatprep.subr.mxu0 0.0
        %3606 = vmatpush1.msra.mxu0 0.0
        %3607 = vmatprep.subr.mxu0 0.0
        %3608 = vmatpush1.msra.mxu0 0.0
        %3609 = vmatprep.subr.mxu0 0.0
        %3610 = vmatpush1.msra.mxu0 0.0
        %3611 = vmatprep.subr.mxu0 0.0
        %3612 = vmatpush1.msra.mxu0 0.0
        %3613 = vmatprep.subr.mxu0 0.0
        %3614 = vmatpush1.msra.mxu0 0.0
        %3615 = vmatprep.subr.mxu0 0.0
        %3616 = vmatpush1.msra.mxu0 0.0
        %3617 = vmatprep.subr.mxu0 0.0
        %3618 = vmatpush1.msra.mxu0 0.0
        %3619 = vmatprep.subr.mxu0 0.0
        %3620 = vmatpush1.msra.mxu0 0.0
        %3621 = vmatprep.mubr.f32.mxu0 0.0
        %v3622 = vand.u32 %v3174, 4294901760
        %3623 = vmatmul.mubr.f32.gmra.mrb[0].mxu0 %v3622
        %v3624 = vpop.f32.mrb[0].mxu0
        %v3625 = vadd.f32 %v3532, %v3624
        %v3626 = vpop.f32.mrb[0].mxu0
        %v3627 = vadd.f32 %v3534, %v3626
        %3628 = vmatprep.mubr.f32.mxu0 0.0
        %v3629 = vand.u32 %v3177, 4294901760
        %3630 = vmatmul.mubr.f32.gmra.mrb[0].mxu0 %v3629
        %v3631 = vpop.f32.mrb[0].mxu0
        %v3632 = vadd.f32 %v3541, %v3631
        %v3633 = vpop.f32.mrb[0].mxu0
        %v3634 = vadd.f32 %v3543, %v3633
        %3635 = vdwg.mxu0
        %v3636 = vand.u32 %v3161, 4294901760
        %3637 = vmatprep.subr.mxu0 %v3636
        %v3638 = vand.u32 %v3167, 4294901760
        %3639 = vmatpush1.msra.mxu0 %v3638
        %v3640 = vand.u32 %v3165, 4294901760
        %3641 = vmatprep.subr.mxu0 %v3640
        %v3642 = vand.u32 %v3168, 4294901760
        %3643 = vmatpush1.msra.mxu0 %v3642
        %3644 = vmatprep.subr.mxu0 0.0
        %3645 = vmatpush1.msra.mxu0 0.0
        %3646 = vmatprep.subr.mxu0 0.0
        %3647 = vmatpush1.msra.mxu0 0.0
        %3648 = vmatprep.subr.mxu0 0.0
        %3649 = vmatpush1.msra.mxu0 0.0
        %3650 = vmatprep.subr.mxu0 0.0
        %3651 = vmatpush1.msra.mxu0 0.0
        %3652 = vmatprep.subr.mxu0 0.0
        %3653 = vmatpush1.msra.mxu0 0.0
        %3654 = vmatprep.subr.mxu0 0.0
        %3655 = vmatpush1.msra.mxu0 0.0
        %3656 = vmatprep.subr.mxu0 0.0
        %3657 = vmatpush1.msra.mxu0 0.0
        %3658 = vmatprep.subr.mxu0 0.0
        %3659 = vmatpush1.msra.mxu0 0.0
        %3660 = vmatprep.subr.mxu0 0.0
        %3661 = vmatpush1.msra.mxu0 0.0
        %3662 = vmatprep.subr.mxu0 0.0
        %3663 = vmatpush1.msra.mxu0 0.0
        %3664 = vmatprep.subr.mxu0 0.0
        %3665 = vmatpush1.msra.mxu0 0.0
        %3666 = vmatprep.subr.mxu0 0.0
        %3667 = vmatpush1.msra.mxu0 0.0
        %3668 = vmatprep.subr.mxu0 0.0
        %3669 = vmatpush1.msra.mxu0 0.0
        %3670 = vmatprep.subr.mxu0 0.0
        %3671 = vmatpush1.msra.mxu0 0.0
        %3672 = vmatprep.subr.mxu0 0.0
        %3673 = vmatpush1.msra.mxu0 0.0
        %3674 = vmatprep.subr.mxu0 0.0
        %3675 = vmatpush1.msra.mxu0 0.0
        %3676 = vmatprep.subr.mxu0 0.0
        %3677 = vmatpush1.msra.mxu0 0.0
        %3678 = vmatprep.subr.mxu0 0.0
        %3679 = vmatpush1.msra.mxu0 0.0
        %3680 = vmatprep.subr.mxu0 0.0
        %3681 = vmatpush1.msra.mxu0 0.0
        %3682 = vmatprep.subr.mxu0 0.0
        %3683 = vmatpush1.msra.mxu0 0.0
        %3684 = vmatprep.subr.mxu0 0.0
        %3685 = vmatpush1.msra.mxu0 0.0
        %3686 = vmatprep.subr.mxu0 0.0
        %3687 = vmatpush1.msra.mxu0 0.0
        %3688 = vmatprep.subr.mxu0 0.0
        %3689 = vmatpush1.msra.mxu0 0.0
        %3690 = vmatprep.subr.mxu0 0.0
        %3691 = vmatpush1.msra.mxu0 0.0
        %3692 = vmatprep.subr.mxu0 0.0
        %3693 = vmatpush1.msra.mxu0 0.0
        %3694 = vmatprep.subr.mxu0 0.0
        %3695 = vmatpush1.msra.mxu0 0.0
        %3696 = vmatprep.subr.mxu0 0.0
        %3697 = vmatpush1.msra.mxu0 0.0
        %3698 = vmatprep.subr.mxu0 0.0
        %3699 = vmatpush1.msra.mxu0 0.0
        %3700 = vmatprep.subr.mxu0 0.0
        %3701 = vmatpush1.msra.mxu0 0.0
        %3702 = vmatprep.subr.mxu0 0.0
        %3703 = vmatpush1.msra.mxu0 0.0
        %3704 = vmatprep.mubr.f32.mxu0 0.0
        %v3705 = vand.u32 %v3174, 4294901760
        %3706 = vmatmul.mubr.f32.gmra.mrb[0].mxu0 %v3705
        %v3707 = vpop.f32.mrb[0].mxu0
        %v3708 = vadd.f32 %v3625, %v3707
        %v3709 = vpop.f32.mrb[0].mxu0
        %v3710 = vadd.f32 %v3627, %v3709
        %3711 = vmatprep.mubr.f32.mxu0 0.0
        %v3712 = vand.u32 %v3177, 4294901760
        %3713 = vmatmul.mubr.f32.gmra.mrb[0].mxu0 %v3712
        %v3714 = vpop.f32.mrb[0].mxu0
        %v3715 = vadd.f32 %v3632, %v3714
        %v3716 = vpop.f32.mrb[0].mxu0
        %v3717 = vadd.f32 %v3634, %v3716
        %3718 = vdwg.mxu0
        %v3719 = vadd.f32 %v3135, %v3708
        %v3720 = vadd.f32 %v3136, %v3710
        %v3721 = vadd.f32 %v3137, %v3715
        %v3722 = vadd.f32 %v3138, %v3717
        %3723 = vrot.lane.b32.xlu0 %v264, 48
        %v3724 = vpop.permute.xlu0 %3723
        %3725 = vrot.lane.b32.xlu0 %v268, 48
        %v3726 = vpop.permute.xlu0 %3725
        %vm3727 = vcmask 392192
        %v3728 = vsel %vm3727, %v3724, %v3726
        %v3731 = vmul.f32 %v254, %v3724
        %v3732 = vmul.f32 %v257, %v3728
        %v3733 = vmul.f32 %v255, %v3724
        %v3734 = vmul.f32 %v258, %v3728
        %s3735 = scalar_lea.vmem [#allocation5], 96
        %v3736 = vld [vmem:[%s3735] sm:$0xff]
        %v3737 = vld [vmem:[%s3735 + $0x8] sm:$0xff]
        %3742 = vrot.lane.b32.xlu0 %v3731, 80
        %v3743 = vpop.permute.xlu0 %3742
        %3744 = vrot.lane.b32.xlu0 %v3732, 80
        %v3745 = vpop.permute.xlu0 %3744
        %3746 = vrot.lane.b32.xlu0 %v3733, 80
        %v3747 = vpop.permute.xlu0 %3746
        %3748 = vrot.lane.b32.xlu0 %v3734, 80
        %v3749 = vpop.permute.xlu0 %3748
        %vm3750 = vcmask 654336
        %v3751 = vsel %vm3750, %v3743, %v3745
        %v3752 = vsel %vm3750, %v3747, %v3749
        %v3758 = vsel %vm299, %v3736, 0
        %v3761 = vsel %vm299, %v3737, 0
        %v3763 = vand.u32 %v3745, 4294901760
        %3764 = vmatprep.subr.mxu0 %v3763
        %v3765 = vand.u32 %v3751, 4294901760
        %3766 = vmatpush1.msra.mxu0 %v3765
        %v3767 = vand.u32 %v3749, 4294901760
        %3768 = vmatprep.subr.mxu0 %v3767
        %v3769 = vand.u32 %v3752, 4294901760
        %3770 = vmatpush1.msra.mxu0 %v3769
        %3771 = vmatprep.subr.mxu0 0.0
        %3772 = vmatpush1.msra.mxu0 0.0
        %3773 = vmatprep.subr.mxu0 0.0
        %3774 = vmatpush1.msra.mxu0 0.0
        %3775 = vmatprep.subr.mxu0 0.0
        %3776 = vmatpush1.msra.mxu0 0.0
        %3777 = vmatprep.subr.mxu0 0.0
        %3778 = vmatpush1.msra.mxu0 0.0
        %3779 = vmatprep.subr.mxu0 0.0
        %3780 = vmatpush1.msra.mxu0 0.0
        %3781 = vmatprep.subr.mxu0 0.0
        %3782 = vmatpush1.msra.mxu0 0.0
        %3783 = vmatprep.subr.mxu0 0.0
        %3784 = vmatpush1.msra.mxu0 0.0
        %3785 = vmatprep.subr.mxu0 0.0
        %3786 = vmatpush1.msra.mxu0 0.0
        %3787 = vmatprep.subr.mxu0 0.0
        %3788 = vmatpush1.msra.mxu0 0.0
        %3789 = vmatprep.subr.mxu0 0.0
        %3790 = vmatpush1.msra.mxu0 0.0
        %3791 = vmatprep.subr.mxu0 0.0
        %3792 = vmatpush1.msra.mxu0 0.0
        %3793 = vmatprep.subr.mxu0 0.0
        %3794 = vmatpush1.msra.mxu0 0.0
        %3795 = vmatprep.subr.mxu0 0.0
        %3796 = vmatpush1.msra.mxu0 0.0
        %3797 = vmatprep.subr.mxu0 0.0
        %3798 = vmatpush1.msra.mxu0 0.0
        %3799 = vmatprep.subr.mxu0 0.0
        %3800 = vmatpush1.msra.mxu0 0.0
        %3801 = vmatprep.subr.mxu0 0.0
        %3802 = vmatpush1.msra.mxu0 0.0
        %3803 = vmatprep.subr.mxu0 0.0
        %3804 = vmatpush1.msra.mxu0 0.0
        %3805 = vmatprep.subr.mxu0 0.0
        %3806 = vmatpush1.msra.mxu0 0.0
        %3807 = vmatprep.subr.mxu0 0.0
        %3808 = vmatpush1.msra.mxu0 0.0
        %3809 = vmatprep.subr.mxu0 0.0
        %3810 = vmatpush1.msra.mxu0 0.0
        %3811 = vmatprep.subr.mxu0 0.0
        %3812 = vmatpush1.msra.mxu0 0.0
        %3813 = vmatprep.subr.mxu0 0.0
        %3814 = vmatpush1.msra.mxu0 0.0
        %3815 = vmatprep.subr.mxu0 0.0
        %3816 = vmatpush1.msra.mxu0 0.0
        %3817 = vmatprep.subr.mxu0 0.0
        %3818 = vmatpush1.msra.mxu0 0.0
        %3819 = vmatprep.subr.mxu0 0.0
        %3820 = vmatpush1.msra.mxu0 0.0
        %3821 = vmatprep.subr.mxu0 0.0
        %3822 = vmatpush1.msra.mxu0 0.0
        %3823 = vmatprep.subr.mxu0 0.0
        %3824 = vmatpush1.msra.mxu0 0.0
        %3825 = vmatprep.subr.mxu0 0.0
        %3826 = vmatpush1.msra.mxu0 0.0
        %3827 = vmatprep.subr.mxu0 0.0
        %3828 = vmatpush1.msra.mxu0 0.0
        %3829 = vmatprep.subr.mxu0 0.0
        %3830 = vmatpush1.msra.mxu0 0.0
        %3831 = vmatprep.mubr.f32.mxu0 0.0
        %v3832 = vand.u32 %v3758, 4294901760
        %v3833 = vsub.f32 %v3758, %v3832
        %v3834 = vand.u32 %v3833, 4294901760
        %v3835 = vsub.f32 %v3833, %v3834
        %v3836 = vand.u32 %v3835, 4294901760
        %3837 = vmatmul.mubr.f32.gmra.mrb[0].mxu0 %v3836
        %v3838 = vpop.f32.mrb[0].mxu0
        %v3839 = vadd.f32 0.0, %v3838
        %v3840 = vpop.f32.mrb[0].mxu0
        %v3841 = vadd.f32 0.0, %v3840
        %3842 = vmatprep.mubr.f32.mxu0 0.0
        %v3843 = vand.u32 %v3761, 4294901760
        %v3844 = vsub.f32 %v3761, %v3843
        %v3845 = vand.u32 %v3844, 4294901760
        %v3846 = vsub.f32 %v3844, %v3845
        %v3847 = vand.u32 %v3846, 4294901760
        %3848 = vmatmul.mubr.f32.gmra.mrb[0].mxu0 %v3847
        %v3849 = vpop.f32.mrb[0].mxu0
        %v3850 = vadd.f32 0.0, %v3849
        %v3851 = vpop.f32.mrb[0].mxu0
        %v3852 = vadd.f32 0.0, %v3851
        %3853 = vdwg.mxu0
        %v3854 = vand.u32 %v3745, 4294901760
        %v3855 = vsub.f32 %v3745, %v3854
        %v3856 = vand.u32 %v3855, 4294901760
        %v3857 = vsub.f32 %v3855, %v3856
        %v3858 = vand.u32 %v3857, 4294901760
        %3859 = vmatprep.subr.mxu0 %v3858
        %v3860 = vand.u32 %v3751, 4294901760
        %v3861 = vsub.f32 %v3751, %v3860
        %v3862 = vand.u32 %v3861, 4294901760
        %v3863 = vsub.f32 %v3861, %v3862
        %v3864 = vand.u32 %v3863, 4294901760
        %3865 = vmatpush1.msra.mxu0 %v3864
        %v3866 = vand.u32 %v3749, 4294901760
        %v3867 = vsub.f32 %v3749, %v3866
        %v3868 = vand.u32 %v3867, 4294901760
        %v3869 = vsub.f32 %v3867, %v3868
        %v3870 = vand.u32 %v3869, 4294901760
        %3871 = vmatprep.subr.mxu0 %v3870
        %v3872 = vand.u32 %v3752, 4294901760
        %v3873 = vsub.f32 %v3752, %v3872
        %v3874 = vand.u32 %v3873, 4294901760
        %v3875 = vsub.f32 %v3873, %v3874
        %v3876 = vand.u32 %v3875, 4294901760
        %3877 = vmatpush1.msra.mxu0 %v3876
        %3878 = vmatprep.subr.mxu0 0.0
        %3879 = vmatpush1.msra.mxu0 0.0
        %3880 = vmatprep.subr.mxu0 0.0
        %3881 = vmatpush1.msra.mxu0 0.0
        %3882 = vmatprep.subr.mxu0 0.0
        %3883 = vmatpush1.msra.mxu0 0.0
        %3884 = vmatprep.subr.mxu0 0.0
        %3885 = vmatpush1.msra.mxu0 0.0
        %3886 = vmatprep.subr.mxu0 0.0
        %3887 = vmatpush1.msra.mxu0 0.0
        %3888 = vmatprep.subr.mxu0 0.0
        %3889 = vmatpush1.msra.mxu0 0.0
        %3890 = vmatprep.subr.mxu0 0.0
        %3891 = vmatpush1.msra.mxu0 0.0
        %3892 = vmatprep.subr.mxu0 0.0
        %3893 = vmatpush1.msra.mxu0 0.0
        %3894 = vmatprep.subr.mxu0 0.0
        %3895 = vmatpush1.msra.mxu0 0.0
        %3896 = vmatprep.subr.mxu0 0.0
        %3897 = vmatpush1.msra.mxu0 0.0
        %3898 = vmatprep.subr.mxu0 0.0
        %3899 = vmatpush1.msra.mxu0 0.0
        %3900 = vmatprep.subr.mxu0 0.0
        %3901 = vmatpush1.msra.mxu0 0.0
        %3902 = vmatprep.subr.mxu0 0.0
        %3903 = vmatpush1.msra.mxu0 0.0
        %3904 = vmatprep.subr.mxu0 0.0
        %3905 = vmatpush1.msra.mxu0 0.0
        %3906 = vmatprep.subr.mxu0 0.0
        %3907 = vmatpush1.msra.mxu0 0.0
        %3908 = vmatprep.subr.mxu0 0.0
        %3909 = vmatpush1.msra.mxu0 0.0
        %3910 = vmatprep.subr.mxu0 0.0
        %3911 = vmatpush1.msra.mxu0 0.0
        %3912 = vmatprep.subr.mxu0 0.0
        %3913 = vmatpush1.msra.mxu0 0.0
        %3914 = vmatprep.subr.mxu0 0.0
        %3915 = vmatpush1.msra.mxu0 0.0
        %3916 = vmatprep.subr.mxu0 0.0
        %3917 = vmatpush1.msra.mxu0 0.0
        %3918 = vmatprep.subr.mxu0 0.0
        %3919 = vmatpush1.msra.mxu0 0.0
        %3920 = vmatprep.subr.mxu0 0.0
        %3921 = vmatpush1.msra.mxu0 0.0
        %3922 = vmatprep.subr.mxu0 0.0
        %3923 = vmatpush1.msra.mxu0 0.0
        %3924 = vmatprep.subr.mxu0 0.0
        %3925 = vmatpush1.msra.mxu0 0.0
        %3926 = vmatprep.subr.mxu0 0.0
        %3927 = vmatpush1.msra.mxu0 0.0
        %3928 = vmatprep.subr.mxu0 0.0
        %3929 = vmatpush1.msra.mxu0 0.0
        %3930 = vmatprep.subr.mxu0 0.0
        %3931 = vmatpush1.msra.mxu0 0.0
        %3932 = vmatprep.subr.mxu0 0.0
        %3933 = vmatpush1.msra.mxu0 0.0
        %3934 = vmatprep.subr.mxu0 0.0
        %3935 = vmatpush1.msra.mxu0 0.0
        %3936 = vmatprep.subr.mxu0 0.0
        %3937 = vmatpush1.msra.mxu0 0.0
        %3938 = vmatprep.mubr.f32.mxu0 0.0
        %v3939 = vand.u32 %v3758, 4294901760
        %3940 = vmatmul.mubr.f32.gmra.mrb[0].mxu0 %v3939
        %v3941 = vpop.f32.mrb[0].mxu0
        %v3942 = vadd.f32 %v3839, %v3941
        %v3943 = vpop.f32.mrb[0].mxu0
        %v3944 = vadd.f32 %v3841, %v3943
        %3945 = vmatprep.mubr.f32.mxu0 0.0
        %v3946 = vand.u32 %v3761, 4294901760
        %3947 = vmatmul.mubr.f32.gmra.mrb[0].mxu0 %v3946
        %v3948 = vpop.f32.mrb[0].mxu0
        %v3949 = vadd.f32 %v3850, %v3948
        %v3950 = vpop.f32.mrb[0].mxu0
        %v3951 = vadd.f32 %v3852, %v3950
        %3952 = vdwg.mxu0
        %v3953 = vand.u32 %v3745, 4294901760
        %v3954 = vsub.f32 %v3745, %v3953
        %3955 = vmatprep.subr.mxu0 %v3954
        %v3956 = vand.u32 %v3751, 4294901760
        %v3957 = vsub.f32 %v3751, %v3956
        %3958 = vmatpush1.msra.mxu0 %v3957
        %v3959 = vand.u32 %v3749, 4294901760
        %v3960 = vsub.f32 %v3749, %v3959
        %3961 = vmatprep.subr.mxu0 %v3960
        %v3962 = vand.u32 %v3752, 4294901760
        %v3963 = vsub.f32 %v3752, %v3962
        %3964 = vmatpush1.msra.mxu0 %v3963
        %3965 = vmatprep.subr.mxu0 0.0
        %3966 = vmatpush1.msra.mxu0 0.0
        %3967 = vmatprep.subr.mxu0 0.0
        %3968 = vmatpush1.msra.mxu0 0.0
        %3969 = vmatprep.subr.mxu0 0.0
        %3970 = vmatpush1.msra.mxu0 0.0
        %3971 = vmatprep.subr.mxu0 0.0
        %3972 = vmatpush1.msra.mxu0 0.0
        %3973 = vmatprep.subr.mxu0 0.0
        %3974 = vmatpush1.msra.mxu0 0.0
        %3975 = vmatprep.subr.mxu0 0.0
        %3976 = vmatpush1.msra.mxu0 0.0
        %3977 = vmatprep.subr.mxu0 0.0
        %3978 = vmatpush1.msra.mxu0 0.0
        %3979 = vmatprep.subr.mxu0 0.0
        %3980 = vmatpush1.msra.mxu0 0.0
        %3981 = vmatprep.subr.mxu0 0.0
        %3982 = vmatpush1.msra.mxu0 0.0
        %3983 = vmatprep.subr.mxu0 0.0
        %3984 = vmatpush1.msra.mxu0 0.0
        %3985 = vmatprep.subr.mxu0 0.0
        %3986 = vmatpush1.msra.mxu0 0.0
        %3987 = vmatprep.subr.mxu0 0.0
        %3988 = vmatpush1.msra.mxu0 0.0
        %3989 = vmatprep.subr.mxu0 0.0
        %3990 = vmatpush1.msra.mxu0 0.0
        %3991 = vmatprep.subr.mxu0 0.0
        %3992 = vmatpush1.msra.mxu0 0.0
        %3993 = vmatprep.subr.mxu0 0.0
        %3994 = vmatpush1.msra.mxu0 0.0
        %3995 = vmatprep.subr.mxu0 0.0
        %3996 = vmatpush1.msra.mxu0 0.0
        %3997 = vmatprep.subr.mxu0 0.0
        %3998 = vmatpush1.msra.mxu0 0.0
        %3999 = vmatprep.subr.mxu0 0.0
        %4000 = vmatpush1.msra.mxu0 0.0
        %4001 = vmatprep.subr.mxu0 0.0
        %4002 = vmatpush1.msra.mxu0 0.0
        %4003 = vmatprep.subr.mxu0 0.0
        %4004 = vmatpush1.msra.mxu0 0.0
        %4005 = vmatprep.subr.mxu0 0.0
        %4006 = vmatpush1.msra.mxu0 0.0
        %4007 = vmatprep.subr.mxu0 0.0
        %4008 = vmatpush1.msra.mxu0 0.0
        %4009 = vmatprep.subr.mxu0 0.0
        %4010 = vmatpush1.msra.mxu0 0.0
        %4011 = vmatprep.subr.mxu0 0.0
        %4012 = vmatpush1.msra.mxu0 0.0
        %4013 = vmatprep.subr.mxu0 0.0
        %4014 = vmatpush1.msra.mxu0 0.0
        %4015 = vmatprep.subr.mxu0 0.0
        %4016 = vmatpush1.msra.mxu0 0.0
        %4017 = vmatprep.subr.mxu0 0.0
        %4018 = vmatpush1.msra.mxu0 0.0
        %4019 = vmatprep.subr.mxu0 0.0
        %4020 = vmatpush1.msra.mxu0 0.0
        %4021 = vmatprep.subr.mxu0 0.0
        %4022 = vmatpush1.msra.mxu0 0.0
        %4023 = vmatprep.subr.mxu0 0.0
        %4024 = vmatpush1.msra.mxu0 0.0
        %4025 = vmatprep.mubr.f32.mxu0 0.0
        %v4026 = vand.u32 %v3758, 4294901760
        %v4027 = vsub.f32 %v3758, %v4026
        %4028 = vmatmul.mubr.f32.gmra.mrb[0].mxu0 %v4027
        %v4029 = vpop.f32.mrb[0].mxu0
        %v4030 = vadd.f32 %v3942, %v4029
        %v4031 = vpop.f32.mrb[0].mxu0
        %v4032 = vadd.f32 %v3944, %v4031
        %4033 = vmatprep.mubr.f32.mxu0 0.0
        %v4034 = vand.u32 %v3761, 4294901760
        %v4035 = vsub.f32 %v3761, %v4034
        %4036 = vmatmul.mubr.f32.gmra.mrb[0].mxu0 %v4035
        %v4037 = vpop.f32.mrb[0].mxu0
        %v4038 = vadd.f32 %v3949, %v4037
        %v4039 = vpop.f32.mrb[0].mxu0
        %v4040 = vadd.f32 %v3951, %v4039
        %4041 = vdwg.mxu0
        %v4042 = vand.u32 %v3745, 4294901760
        %4043 = vmatprep.subr.mxu0 %v4042
        %v4044 = vand.u32 %v3751, 4294901760
        %4045 = vmatpush1.msra.mxu0 %v4044
        %v4046 = vand.u32 %v3749, 4294901760
        %4047 = vmatprep.subr.mxu0 %v4046
        %v4048 = vand.u32 %v3752, 4294901760
        %4049 = vmatpush1.msra.mxu0 %v4048
        %4050 = vmatprep.subr.mxu0 0.0
        %4051 = vmatpush1.msra.mxu0 0.0
        %4052 = vmatprep.subr.mxu0 0.0
        %4053 = vmatpush1.msra.mxu0 0.0
        %4054 = vmatprep.subr.mxu0 0.0
        %4055 = vmatpush1.msra.mxu0 0.0
        %4056 = vmatprep.subr.mxu0 0.0
        %4057 = vmatpush1.msra.mxu0 0.0
        %4058 = vmatprep.subr.mxu0 0.0
        %4059 = vmatpush1.msra.mxu0 0.0
        %4060 = vmatprep.subr.mxu0 0.0
        %4061 = vmatpush1.msra.mxu0 0.0
        %4062 = vmatprep.subr.mxu0 0.0
        %4063 = vmatpush1.msra.mxu0 0.0
        %4064 = vmatprep.subr.mxu0 0.0
        %4065 = vmatpush1.msra.mxu0 0.0
        %4066 = vmatprep.subr.mxu0 0.0
        %4067 = vmatpush1.msra.mxu0 0.0
        %4068 = vmatprep.subr.mxu0 0.0
        %4069 = vmatpush1.msra.mxu0 0.0
        %4070 = vmatprep.subr.mxu0 0.0
        %4071 = vmatpush1.msra.mxu0 0.0
        %4072 = vmatprep.subr.mxu0 0.0
        %4073 = vmatpush1.msra.mxu0 0.0
        %4074 = vmatprep.subr.mxu0 0.0
        %4075 = vmatpush1.msra.mxu0 0.0
        %4076 = vmatprep.subr.mxu0 0.0
        %4077 = vmatpush1.msra.mxu0 0.0
        %4078 = vmatprep.subr.mxu0 0.0
        %4079 = vmatpush1.msra.mxu0 0.0
        %4080 = vmatprep.subr.mxu0 0.0
        %4081 = vmatpush1.msra.mxu0 0.0
        %4082 = vmatprep.subr.mxu0 0.0
        %4083 = vmatpush1.msra.mxu0 0.0
        %4084 = vmatprep.subr.mxu0 0.0
        %4085 = vmatpush1.msra.mxu0 0.0
        %4086 = vmatprep.subr.mxu0 0.0
        %4087 = vmatpush1.msra.mxu0 0.0
        %4088 = vmatprep.subr.mxu0 0.0
        %4089 = vmatpush1.msra.mxu0 0.0
        %4090 = vmatprep.subr.mxu0 0.0
        %4091 = vmatpush1.msra.mxu0 0.0
        %4092 = vmatprep.subr.mxu0 0.0
        %4093 = vmatpush1.msra.mxu0 0.0
        %4094 = vmatprep.subr.mxu0 0.0
        %4095 = vmatpush1.msra.mxu0 0.0
        %4096 = vmatprep.subr.mxu0 0.0
        %4097 = vmatpush1.msra.mxu0 0.0
        %4098 = vmatprep.subr.mxu0 0.0
        %4099 = vmatpush1.msra.mxu0 0.0
        %4100 = vmatprep.subr.mxu0 0.0
        %4101 = vmatpush1.msra.mxu0 0.0
        %4102 = vmatprep.subr.mxu0 0.0
        %4103 = vmatpush1.msra.mxu0 0.0
        %4104 = vmatprep.subr.mxu0 0.0
        %4105 = vmatpush1.msra.mxu0 0.0
        %4106 = vmatprep.subr.mxu0 0.0
        %4107 = vmatpush1.msra.mxu0 0.0
        %4108 = vmatprep.subr.mxu0 0.0
        %4109 = vmatpush1.msra.mxu0 0.0
        %4110 = vmatprep.mubr.f32.mxu0 0.0
        %v4111 = vand.u32 %v3758, 4294901760
        %v4112 = vsub.f32 %v3758, %v4111
        %v4113 = vand.u32 %v4112, 4294901760
        %4114 = vmatmul.mubr.f32.gmra.mrb[0].mxu0 %v4113
        %v4115 = vpop.f32.mrb[0].mxu0
        %v4116 = vadd.f32 %v4030, %v4115
        %v4117 = vpop.f32.mrb[0].mxu0
        %v4118 = vadd.f32 %v4032, %v4117
        %4119 = vmatprep.mubr.f32.mxu0 0.0
        %v4120 = vand.u32 %v3761, 4294901760
        %v4121 = vsub.f32 %v3761, %v4120
        %v4122 = vand.u32 %v4121, 4294901760
        %4123 = vmatmul.mubr.f32.gmra.mrb[0].mxu0 %v4122
        %v4124 = vpop.f32.mrb[0].mxu0
        %v4125 = vadd.f32 %v4038, %v4124
        %v4126 = vpop.f32.mrb[0].mxu0
        %v4127 = vadd.f32 %v4040, %v4126
        %4128 = vdwg.mxu0
        %v4129 = vand.u32 %v3745, 4294901760
        %v4130 = vsub.f32 %v3745, %v4129
        %v4131 = vand.u32 %v4130, 4294901760
        %4132 = vmatprep.subr.mxu0 %v4131
        %v4133 = vand.u32 %v3751, 4294901760
        %v4134 = vsub.f32 %v3751, %v4133
        %v4135 = vand.u32 %v4134, 4294901760
        %4136 = vmatpush1.msra.mxu0 %v4135
        %v4137 = vand.u32 %v3749, 4294901760
        %v4138 = vsub.f32 %v3749, %v4137
        %v4139 = vand.u32 %v4138, 4294901760
        %4140 = vmatprep.subr.mxu0 %v4139
        %v4141 = vand.u32 %v3752, 4294901760
        %v4142 = vsub.f32 %v3752, %v4141
        %v4143 = vand.u32 %v4142, 4294901760
        %4144 = vmatpush1.msra.mxu0 %v4143
        %4145 = vmatprep.subr.mxu0 0.0
        %4146 = vmatpush1.msra.mxu0 0.0
        %4147 = vmatprep.subr.mxu0 0.0
        %4148 = vmatpush1.msra.mxu0 0.0
        %4149 = vmatprep.subr.mxu0 0.0
        %4150 = vmatpush1.msra.mxu0 0.0
        %4151 = vmatprep.subr.mxu0 0.0
        %4152 = vmatpush1.msra.mxu0 0.0
        %4153 = vmatprep.subr.mxu0 0.0
        %4154 = vmatpush1.msra.mxu0 0.0
        %4155 = vmatprep.subr.mxu0 0.0
        %4156 = vmatpush1.msra.mxu0 0.0
        %4157 = vmatprep.subr.mxu0 0.0
        %4158 = vmatpush1.msra.mxu0 0.0
        %4159 = vmatprep.subr.mxu0 0.0
        %4160 = vmatpush1.msra.mxu0 0.0
        %4161 = vmatprep.subr.mxu0 0.0
        %4162 = vmatpush1.msra.mxu0 0.0
        %4163 = vmatprep.subr.mxu0 0.0
        %4164 = vmatpush1.msra.mxu0 0.0
        %4165 = vmatprep.subr.mxu0 0.0
        %4166 = vmatpush1.msra.mxu0 0.0
        %4167 = vmatprep.subr.mxu0 0.0
        %4168 = vmatpush1.msra.mxu0 0.0
        %4169 = vmatprep.subr.mxu0 0.0
        %4170 = vmatpush1.msra.mxu0 0.0
        %4171 = vmatprep.subr.mxu0 0.0
        %4172 = vmatpush1.msra.mxu0 0.0
        %4173 = vmatprep.subr.mxu0 0.0
        %4174 = vmatpush1.msra.mxu0 0.0
        %4175 = vmatprep.subr.mxu0 0.0
        %4176 = vmatpush1.msra.mxu0 0.0
        %4177 = vmatprep.subr.mxu0 0.0
        %4178 = vmatpush1.msra.mxu0 0.0
        %4179 = vmatprep.subr.mxu0 0.0
        %4180 = vmatpush1.msra.mxu0 0.0
        %4181 = vmatprep.subr.mxu0 0.0
        %4182 = vmatpush1.msra.mxu0 0.0
        %4183 = vmatprep.subr.mxu0 0.0
        %4184 = vmatpush1.msra.mxu0 0.0
        %4185 = vmatprep.subr.mxu0 0.0
        %4186 = vmatpush1.msra.mxu0 0.0
        %4187 = vmatprep.subr.mxu0 0.0
        %4188 = vmatpush1.msra.mxu0 0.0
        %4189 = vmatprep.subr.mxu0 0.0
        %4190 = vmatpush1.msra.mxu0 0.0
        %4191 = vmatprep.subr.mxu0 0.0
        %4192 = vmatpush1.msra.mxu0 0.0
        %4193 = vmatprep.subr.mxu0 0.0
        %4194 = vmatpush1.msra.mxu0 0.0
        %4195 = vmatprep.subr.mxu0 0.0
        %4196 = vmatpush1.msra.mxu0 0.0
        %4197 = vmatprep.subr.mxu0 0.0
        %4198 = vmatpush1.msra.mxu0 0.0
        %4199 = vmatprep.subr.mxu0 0.0
        %4200 = vmatpush1.msra.mxu0 0.0
        %4201 = vmatprep.subr.mxu0 0.0
        %4202 = vmatpush1.msra.mxu0 0.0
        %4203 = vmatprep.subr.mxu0 0.0
        %4204 = vmatpush1.msra.mxu0 0.0
        %4205 = vmatprep.mubr.f32.mxu0 0.0
        %v4206 = vand.u32 %v3758, 4294901760
        %4207 = vmatmul.mubr.f32.gmra.mrb[0].mxu0 %v4206
        %v4208 = vpop.f32.mrb[0].mxu0
        %v4209 = vadd.f32 %v4116, %v4208
        %v4210 = vpop.f32.mrb[0].mxu0
        %v4211 = vadd.f32 %v4118, %v4210
        %4212 = vmatprep.mubr.f32.mxu0 0.0
        %v4213 = vand.u32 %v3761, 4294901760
        %4214 = vmatmul.mubr.f32.gmra.mrb[0].mxu0 %v4213
        %v4215 = vpop.f32.mrb[0].mxu0
        %v4216 = vadd.f32 %v4125, %v4215
        %v4217 = vpop.f32.mrb[0].mxu0
        %v4218 = vadd.f32 %v4127, %v4217
        %4219 = vdwg.mxu0
        %v4220 = vand.u32 %v3745, 4294901760
        %4221 = vmatprep.subr.mxu0 %v4220
        %v4222 = vand.u32 %v3751, 4294901760
        %4223 = vmatpush1.msra.mxu0 %v4222
        %v4224 = vand.u32 %v3749, 4294901760
        %4225 = vmatprep.subr.mxu0 %v4224
        %v4226 = vand.u32 %v3752, 4294901760
        %4227 = vmatpush1.msra.mxu0 %v4226
        %4228 = vmatprep.subr.mxu0 0.0
        %4229 = vmatpush1.msra.mxu0 0.0
        %4230 = vmatprep.subr.mxu0 0.0
        %4231 = vmatpush1.msra.mxu0 0.0
        %4232 = vmatprep.subr.mxu0 0.0
        %4233 = vmatpush1.msra.mxu0 0.0
        %4234 = vmatprep.subr.mxu0 0.0
        %4235 = vmatpush1.msra.mxu0 0.0
        %4236 = vmatprep.subr.mxu0 0.0
        %4237 = vmatpush1.msra.mxu0 0.0
        %4238 = vmatprep.subr.mxu0 0.0
        %4239 = vmatpush1.msra.mxu0 0.0
        %4240 = vmatprep.subr.mxu0 0.0
        %4241 = vmatpush1.msra.mxu0 0.0
        %4242 = vmatprep.subr.mxu0 0.0
        %4243 = vmatpush1.msra.mxu0 0.0
        %4244 = vmatprep.subr.mxu0 0.0
        %4245 = vmatpush1.msra.mxu0 0.0
        %4246 = vmatprep.subr.mxu0 0.0
        %4247 = vmatpush1.msra.mxu0 0.0
        %4248 = vmatprep.subr.mxu0 0.0
        %4249 = vmatpush1.msra.mxu0 0.0
        %4250 = vmatprep.subr.mxu0 0.0
        %4251 = vmatpush1.msra.mxu0 0.0
        %4252 = vmatprep.subr.mxu0 0.0
        %4253 = vmatpush1.msra.mxu0 0.0
        %4254 = vmatprep.subr.mxu0 0.0
        %4255 = vmatpush1.msra.mxu0 0.0
        %4256 = vmatprep.subr.mxu0 0.0
        %4257 = vmatpush1.msra.mxu0 0.0
        %4258 = vmatprep.subr.mxu0 0.0
        %4259 = vmatpush1.msra.mxu0 0.0
        %4260 = vmatprep.subr.mxu0 0.0
        %4261 = vmatpush1.msra.mxu0 0.0
        %4262 = vmatprep.subr.mxu0 0.0
        %4263 = vmatpush1.msra.mxu0 0.0
        %4264 = vmatprep.subr.mxu0 0.0
        %4265 = vmatpush1.msra.mxu0 0.0
        %4266 = vmatprep.subr.mxu0 0.0
        %4267 = vmatpush1.msra.mxu0 0.0
        %4268 = vmatprep.subr.mxu0 0.0
        %4269 = vmatpush1.msra.mxu0 0.0
        %4270 = vmatprep.subr.mxu0 0.0
        %4271 = vmatpush1.msra.mxu0 0.0
        %4272 = vmatprep.subr.mxu0 0.0
        %4273 = vmatpush1.msra.mxu0 0.0
        %4274 = vmatprep.subr.mxu0 0.0
        %4275 = vmatpush1.msra.mxu0 0.0
        %4276 = vmatprep.subr.mxu0 0.0
        %4277 = vmatpush1.msra.mxu0 0.0
        %4278 = vmatprep.subr.mxu0 0.0
        %4279 = vmatpush1.msra.mxu0 0.0
        %4280 = vmatprep.subr.mxu0 0.0
        %4281 = vmatpush1.msra.mxu0 0.0
        %4282 = vmatprep.subr.mxu0 0.0
        %4283 = vmatpush1.msra.mxu0 0.0
        %4284 = vmatprep.subr.mxu0 0.0
        %4285 = vmatpush1.msra.mxu0 0.0
        %4286 = vmatprep.subr.mxu0 0.0
        %4287 = vmatpush1.msra.mxu0 0.0
        %4288 = vmatprep.mubr.f32.mxu0 0.0
        %v4289 = vand.u32 %v3758, 4294901760
        %4290 = vmatmul.mubr.f32.gmra.mrb[0].mxu0 %v4289
        %v4291 = vpop.f32.mrb[0].mxu0
        %v4292 = vadd.f32 %v4209, %v4291
        %v4293 = vpop.f32.mrb[0].mxu0
        %v4294 = vadd.f32 %v4211, %v4293
        %4295 = vmatprep.mubr.f32.mxu0 0.0
        %v4296 = vand.u32 %v3761, 4294901760
        %4297 = vmatmul.mubr.f32.gmra.mrb[0].mxu0 %v4296
        %v4298 = vpop.f32.mrb[0].mxu0
        %v4299 = vadd.f32 %v4216, %v4298
        %v4300 = vpop.f32.mrb[0].mxu0
        %v4301 = vadd.f32 %v4218, %v4300
        %4302 = vdwg.mxu0
        %v4303 = vadd.f32 %v3719, %v4292
        %v4304 = vadd.f32 %v3720, %v4294
        %v4305 = vadd.f32 %v3721, %v4299
        %v4306 = vadd.f32 %v3722, %v4301
        %s4307 = scalar_lea.vmem [#allocation5], 112
        %v4308 = vld [vmem:[%s4307] sm:$0xff]
        %v4309 = vld [vmem:[%s4307 + $0x8] sm:$0xff]
        %4310 = vrot.lane.b32.xlu0 %v254, 79
        %v4311 = vpop.permute.xlu0 %4310
        %4312 = vrot.lane.b32.xlu0 %v257, 79
        %v4313 = vpop.permute.xlu0 %4312
        %4314 = vrot.lane.b32.xlu0 %v255, 79
        %v4315 = vpop.permute.xlu0 %4314
        %4316 = vrot.lane.b32.xlu0 %v258, 79
        %v4317 = vpop.permute.xlu0 %4316
        %vm4318 = vcmask 646144
        %v4319 = vsel %vm4318, %v4311, %v4313
        %v4320 = vsel %vm4318, %v4315, %v4317
        %v4326 = vsel %vm299, %v4308, 0
        %v4329 = vsel %vm299, %v4309, 0
        %v4331 = vand.u32 %v4313, 4294901760
        %4332 = vmatprep.subr.mxu0 %v4331
        %v4333 = vand.u32 %v4319, 4294901760
        %4334 = vmatpush1.msra.mxu0 %v4333
        %v4335 = vand.u32 %v4317, 4294901760
        %4336 = vmatprep.subr.mxu0 %v4335
        %v4337 = vand.u32 %v4320, 4294901760
        %4338 = vmatpush1.msra.mxu0 %v4337
        %4339 = vmatprep.subr.mxu0 0.0
        %4340 = vmatpush1.msra.mxu0 0.0
        %4341 = vmatprep.subr.mxu0 0.0
        %4342 = vmatpush1.msra.mxu0 0.0
        %4343 = vmatprep.subr.mxu0 0.0
        %4344 = vmatpush1.msra.mxu0 0.0
        %4345 = vmatprep.subr.mxu0 0.0
        %4346 = vmatpush1.msra.mxu0 0.0
        %4347 = vmatprep.subr.mxu0 0.0
        %4348 = vmatpush1.msra.mxu0 0.0
        %4349 = vmatprep.subr.mxu0 0.0
        %4350 = vmatpush1.msra.mxu0 0.0
        %4351 = vmatprep.subr.mxu0 0.0
        %4352 = vmatpush1.msra.mxu0 0.0
        %4353 = vmatprep.subr.mxu0 0.0
        %4354 = vmatpush1.msra.mxu0 0.0
        %4355 = vmatprep.subr.mxu0 0.0
        %4356 = vmatpush1.msra.mxu0 0.0
        %4357 = vmatprep.subr.mxu0 0.0
        %4358 = vmatpush1.msra.mxu0 0.0
        %4359 = vmatprep.subr.mxu0 0.0
        %4360 = vmatpush1.msra.mxu0 0.0
        %4361 = vmatprep.subr.mxu0 0.0
        %4362 = vmatpush1.msra.mxu0 0.0
        %4363 = vmatprep.subr.mxu0 0.0
        %4364 = vmatpush1.msra.mxu0 0.0
        %4365 = vmatprep.subr.mxu0 0.0
        %4366 = vmatpush1.msra.mxu0 0.0
        %4367 = vmatprep.subr.mxu0 0.0
        %4368 = vmatpush1.msra.mxu0 0.0
        %4369 = vmatprep.subr.mxu0 0.0
        %4370 = vmatpush1.msra.mxu0 0.0
        %4371 = vmatprep.subr.mxu0 0.0
        %4372 = vmatpush1.msra.mxu0 0.0
        %4373 = vmatprep.subr.mxu0 0.0
        %4374 = vmatpush1.msra.mxu0 0.0
        %4375 = vmatprep.subr.mxu0 0.0
        %4376 = vmatpush1.msra.mxu0 0.0
        %4377 = vmatprep.subr.mxu0 0.0
        %4378 = vmatpush1.msra.mxu0 0.0
        %4379 = vmatprep.subr.mxu0 0.0
        %4380 = vmatpush1.msra.mxu0 0.0
        %4381 = vmatprep.subr.mxu0 0.0
        %4382 = vmatpush1.msra.mxu0 0.0
        %4383 = vmatprep.subr.mxu0 0.0
        %4384 = vmatpush1.msra.mxu0 0.0
        %4385 = vmatprep.subr.mxu0 0.0
        %4386 = vmatpush1.msra.mxu0 0.0
        %4387 = vmatprep.subr.mxu0 0.0
        %4388 = vmatpush1.msra.mxu0 0.0
        %4389 = vmatprep.subr.mxu0 0.0
        %4390 = vmatpush1.msra.mxu0 0.0
        %4391 = vmatprep.subr.mxu0 0.0
        %4392 = vmatpush1.msra.mxu0 0.0
        %4393 = vmatprep.subr.mxu0 0.0
        %4394 = vmatpush1.msra.mxu0 0.0
        %4395 = vmatprep.subr.mxu0 0.0
        %4396 = vmatpush1.msra.mxu0 0.0
        %4397 = vmatprep.subr.mxu0 0.0
        %4398 = vmatpush1.msra.mxu0 0.0
        %4399 = vmatprep.mubr.f32.mxu0 0.0
        %v4400 = vand.u32 %v4326, 4294901760
        %v4401 = vsub.f32 %v4326, %v4400
        %v4402 = vand.u32 %v4401, 4294901760
        %v4403 = vsub.f32 %v4401, %v4402
        %v4404 = vand.u32 %v4403, 4294901760
        %4405 = vmatmul.mubr.f32.gmra.mrb[0].mxu0 %v4404
        %v4406 = vpop.f32.mrb[0].mxu0
        %v4407 = vadd.f32 0.0, %v4406
        %v4408 = vpop.f32.mrb[0].mxu0
        %v4409 = vadd.f32 0.0, %v4408
        %4410 = vmatprep.mubr.f32.mxu0 0.0
        %v4411 = vand.u32 %v4329, 4294901760
        %v4412 = vsub.f32 %v4329, %v4411
        %v4413 = vand.u32 %v4412, 4294901760
        %v4414 = vsub.f32 %v4412, %v4413
        %v4415 = vand.u32 %v4414, 4294901760
        %4416 = vmatmul.mubr.f32.gmra.mrb[0].mxu0 %v4415
        %v4417 = vpop.f32.mrb[0].mxu0
        %v4418 = vadd.f32 0.0, %v4417
        %v4419 = vpop.f32.mrb[0].mxu0
        %v4420 = vadd.f32 0.0, %v4419
        %4421 = vdwg.mxu0
        %v4422 = vand.u32 %v4313, 4294901760
        %v4423 = vsub.f32 %v4313, %v4422
        %v4424 = vand.u32 %v4423, 4294901760
        %v4425 = vsub.f32 %v4423, %v4424
        %v4426 = vand.u32 %v4425, 4294901760
        %4427 = vmatprep.subr.mxu0 %v4426
        %v4428 = vand.u32 %v4319, 4294901760
        %v4429 = vsub.f32 %v4319, %v4428
        %v4430 = vand.u32 %v4429, 4294901760
        %v4431 = vsub.f32 %v4429, %v4430
        %v4432 = vand.u32 %v4431, 4294901760
        %4433 = vmatpush1.msra.mxu0 %v4432
        %v4434 = vand.u32 %v4317, 4294901760
        %v4435 = vsub.f32 %v4317, %v4434
        %v4436 = vand.u32 %v4435, 4294901760
        %v4437 = vsub.f32 %v4435, %v4436
        %v4438 = vand.u32 %v4437, 4294901760
        %4439 = vmatprep.subr.mxu0 %v4438
        %v4440 = vand.u32 %v4320, 4294901760
        %v4441 = vsub.f32 %v4320, %v4440
        %v4442 = vand.u32 %v4441, 4294901760
        %v4443 = vsub.f32 %v4441, %v4442
        %v4444 = vand.u32 %v4443, 4294901760
        %4445 = vmatpush1.msra.mxu0 %v4444
        %4446 = vmatprep.subr.mxu0 0.0
        %4447 = vmatpush1.msra.mxu0 0.0
        %4448 = vmatprep.subr.mxu0 0.0
        %4449 = vmatpush1.msra.mxu0 0.0
        %4450 = vmatprep.subr.mxu0 0.0
        %4451 = vmatpush1.msra.mxu0 0.0
        %4452 = vmatprep.subr.mxu0 0.0
        %4453 = vmatpush1.msra.mxu0 0.0
        %4454 = vmatprep.subr.mxu0 0.0
        %4455 = vmatpush1.msra.mxu0 0.0
        %4456 = vmatprep.subr.mxu0 0.0
        %4457 = vmatpush1.msra.mxu0 0.0
        %4458 = vmatprep.subr.mxu0 0.0
        %4459 = vmatpush1.msra.mxu0 0.0
        %4460 = vmatprep.subr.mxu0 0.0
        %4461 = vmatpush1.msra.mxu0 0.0
        %4462 = vmatprep.subr.mxu0 0.0
        %4463 = vmatpush1.msra.mxu0 0.0
        %4464 = vmatprep.subr.mxu0 0.0
        %4465 = vmatpush1.msra.mxu0 0.0
        %4466 = vmatprep.subr.mxu0 0.0
        %4467 = vmatpush1.msra.mxu0 0.0
        %4468 = vmatprep.subr.mxu0 0.0
        %4469 = vmatpush1.msra.mxu0 0.0
        %4470 = vmatprep.subr.mxu0 0.0
        %4471 = vmatpush1.msra.mxu0 0.0
        %4472 = vmatprep.subr.mxu0 0.0
        %4473 = vmatpush1.msra.mxu0 0.0
        %4474 = vmatprep.subr.mxu0 0.0
        %4475 = vmatpush1.msra.mxu0 0.0
        %4476 = vmatprep.subr.mxu0 0.0
        %4477 = vmatpush1.msra.mxu0 0.0
        %4478 = vmatprep.subr.mxu0 0.0
        %4479 = vmatpush1.msra.mxu0 0.0
        %4480 = vmatprep.subr.mxu0 0.0
        %4481 = vmatpush1.msra.mxu0 0.0
        %4482 = vmatprep.subr.mxu0 0.0
        %4483 = vmatpush1.msra.mxu0 0.0
        %4484 = vmatprep.subr.mxu0 0.0
        %4485 = vmatpush1.msra.mxu0 0.0
        %4486 = vmatprep.subr.mxu0 0.0
        %4487 = vmatpush1.msra.mxu0 0.0
        %4488 = vmatprep.subr.mxu0 0.0
        %4489 = vmatpush1.msra.mxu0 0.0
        %4490 = vmatprep.subr.mxu0 0.0
        %4491 = vmatpush1.msra.mxu0 0.0
        %4492 = vmatprep.subr.mxu0 0.0
        %4493 = vmatpush1.msra.mxu0 0.0
        %4494 = vmatprep.subr.mxu0 0.0
        %4495 = vmatpush1.msra.mxu0 0.0
        %4496 = vmatprep.subr.mxu0 0.0
        %4497 = vmatpush1.msra.mxu0 0.0
        %4498 = vmatprep.subr.mxu0 0.0
        %4499 = vmatpush1.msra.mxu0 0.0
        %4500 = vmatprep.subr.mxu0 0.0
        %4501 = vmatpush1.msra.mxu0 0.0
        %4502 = vmatprep.subr.mxu0 0.0
        %4503 = vmatpush1.msra.mxu0 0.0
        %4504 = vmatprep.subr.mxu0 0.0
        %4505 = vmatpush1.msra.mxu0 0.0
        %4506 = vmatprep.mubr.f32.mxu0 0.0
        %v4507 = vand.u32 %v4326, 4294901760
        %4508 = vmatmul.mubr.f32.gmra.mrb[0].mxu0 %v4507
        %v4509 = vpop.f32.mrb[0].mxu0
        %v4510 = vadd.f32 %v4407, %v4509
        %v4511 = vpop.f32.mrb[0].mxu0
        %v4512 = vadd.f32 %v4409, %v4511
        %4513 = vmatprep.mubr.f32.mxu0 0.0
        %v4514 = vand.u32 %v4329, 4294901760
        %4515 = vmatmul.mubr.f32.gmra.mrb[0].mxu0 %v4514
        %v4516 = vpop.f32.mrb[0].mxu0
        %v4517 = vadd.f32 %v4418, %v4516
        %v4518 = vpop.f32.mrb[0].mxu0
        %v4519 = vadd.f32 %v4420, %v4518
        %4520 = vdwg.mxu0
        %v4521 = vand.u32 %v4313, 4294901760
        %v4522 = vsub.f32 %v4313, %v4521
        %4523 = vmatprep.subr.mxu0 %v4522
        %v4524 = vand.u32 %v4319, 4294901760
        %v4525 = vsub.f32 %v4319, %v4524
        %4526 = vmatpush1.msra.mxu0 %v4525
        %v4527 = vand.u32 %v4317, 4294901760
        %v4528 = vsub.f32 %v4317, %v4527
        %4529 = vmatprep.subr.mxu0 %v4528
        %v4530 = vand.u32 %v4320, 4294901760
        %v4531 = vsub.f32 %v4320, %v4530
        %4532 = vmatpush1.msra.mxu0 %v4531
        %4533 = vmatprep.subr.mxu0 0.0
        %4534 = vmatpush1.msra.mxu0 0.0
        %4535 = vmatprep.subr.mxu0 0.0
        %4536 = vmatpush1.msra.mxu0 0.0
        %4537 = vmatprep.subr.mxu0 0.0
        %4538 = vmatpush1.msra.mxu0 0.0
        %4539 = vmatprep.subr.mxu0 0.0
        %4540 = vmatpush1.msra.mxu0 0.0
        %4541 = vmatprep.subr.mxu0 0.0
        %4542 = vmatpush1.msra.mxu0 0.0
        %4543 = vmatprep.subr.mxu0 0.0
        %4544 = vmatpush1.msra.mxu0 0.0
        %4545 = vmatprep.subr.mxu0 0.0
        %4546 = vmatpush1.msra.mxu0 0.0
        %4547 = vmatprep.subr.mxu0 0.0
        %4548 = vmatpush1.msra.mxu0 0.0
        %4549 = vmatprep.subr.mxu0 0.0
        %4550 = vmatpush1.msra.mxu0 0.0
        %4551 = vmatprep.subr.mxu0 0.0
        %4552 = vmatpush1.msra.mxu0 0.0
        %4553 = vmatprep.subr.mxu0 0.0
        %4554 = vmatpush1.msra.mxu0 0.0
        %4555 = vmatprep.subr.mxu0 0.0
        %4556 = vmatpush1.msra.mxu0 0.0
        %4557 = vmatprep.subr.mxu0 0.0
        %4558 = vmatpush1.msra.mxu0 0.0
        %4559 = vmatprep.subr.mxu0 0.0
        %4560 = vmatpush1.msra.mxu0 0.0
        %4561 = vmatprep.subr.mxu0 0.0
        %4562 = vmatpush1.msra.mxu0 0.0
        %4563 = vmatprep.subr.mxu0 0.0
        %4564 = vmatpush1.msra.mxu0 0.0
        %4565 = vmatprep.subr.mxu0 0.0
        %4566 = vmatpush1.msra.mxu0 0.0
        %4567 = vmatprep.subr.mxu0 0.0
        %4568 = vmatpush1.msra.mxu0 0.0
        %4569 = vmatprep.subr.mxu0 0.0
        %4570 = vmatpush1.msra.mxu0 0.0
        %4571 = vmatprep.subr.mxu0 0.0
        %4572 = vmatpush1.msra.mxu0 0.0
        %4573 = vmatprep.subr.mxu0 0.0
        %4574 = vmatpush1.msra.mxu0 0.0
        %4575 = vmatprep.subr.mxu0 0.0
        %4576 = vmatpush1.msra.mxu0 0.0
        %4577 = vmatprep.subr.mxu0 0.0
        %4578 = vmatpush1.msra.mxu0 0.0
        %4579 = vmatprep.subr.mxu0 0.0
        %4580 = vmatpush1.msra.mxu0 0.0
        %4581 = vmatprep.subr.mxu0 0.0
        %4582 = vmatpush1.msra.mxu0 0.0
        %4583 = vmatprep.subr.mxu0 0.0
        %4584 = vmatpush1.msra.mxu0 0.0
        %4585 = vmatprep.subr.mxu0 0.0
        %4586 = vmatpush1.msra.mxu0 0.0
        %4587 = vmatprep.subr.mxu0 0.0
        %4588 = vmatpush1.msra.mxu0 0.0
        %4589 = vmatprep.subr.mxu0 0.0
        %4590 = vmatpush1.msra.mxu0 0.0
        %4591 = vmatprep.subr.mxu0 0.0
        %4592 = vmatpush1.msra.mxu0 0.0
        %4593 = vmatprep.mubr.f32.mxu0 0.0
        %v4594 = vand.u32 %v4326, 4294901760
        %v4595 = vsub.f32 %v4326, %v4594
        %4596 = vmatmul.mubr.f32.gmra.mrb[0].mxu0 %v4595
        %v4597 = vpop.f32.mrb[0].mxu0
        %v4598 = vadd.f32 %v4510, %v4597
        %v4599 = vpop.f32.mrb[0].mxu0
        %v4600 = vadd.f32 %v4512, %v4599
        %4601 = vmatprep.mubr.f32.mxu0 0.0
        %v4602 = vand.u32 %v4329, 4294901760
        %v4603 = vsub.f32 %v4329, %v4602
        %4604 = vmatmul.mubr.f32.gmra.mrb[0].mxu0 %v4603
        %v4605 = vpop.f32.mrb[0].mxu0
        %v4606 = vadd.f32 %v4517, %v4605
        %v4607 = vpop.f32.mrb[0].mxu0
        %v4608 = vadd.f32 %v4519, %v4607
        %4609 = vdwg.mxu0
        %v4610 = vand.u32 %v4313, 4294901760
        %4611 = vmatprep.subr.mxu0 %v4610
        %v4612 = vand.u32 %v4319, 4294901760
        %4613 = vmatpush1.msra.mxu0 %v4612
        %v4614 = vand.u32 %v4317, 4294901760
        %4615 = vmatprep.subr.mxu0 %v4614
        %v4616 = vand.u32 %v4320, 4294901760
        %4617 = vmatpush1.msra.mxu0 %v4616
        %4618 = vmatprep.subr.mxu0 0.0
        %4619 = vmatpush1.msra.mxu0 0.0
        %4620 = vmatprep.subr.mxu0 0.0
        %4621 = vmatpush1.msra.mxu0 0.0
        %4622 = vmatprep.subr.mxu0 0.0
        %4623 = vmatpush1.msra.mxu0 0.0
        %4624 = vmatprep.subr.mxu0 0.0
        %4625 = vmatpush1.msra.mxu0 0.0
        %4626 = vmatprep.subr.mxu0 0.0
        %4627 = vmatpush1.msra.mxu0 0.0
        %4628 = vmatprep.subr.mxu0 0.0
        %4629 = vmatpush1.msra.mxu0 0.0
        %4630 = vmatprep.subr.mxu0 0.0
        %4631 = vmatpush1.msra.mxu0 0.0
        %4632 = vmatprep.subr.mxu0 0.0
        %4633 = vmatpush1.msra.mxu0 0.0
        %4634 = vmatprep.subr.mxu0 0.0
        %4635 = vmatpush1.msra.mxu0 0.0
        %4636 = vmatprep.subr.mxu0 0.0
        %4637 = vmatpush1.msra.mxu0 0.0
        %4638 = vmatprep.subr.mxu0 0.0
        %4639 = vmatpush1.msra.mxu0 0.0
        %4640 = vmatprep.subr.mxu0 0.0
        %4641 = vmatpush1.msra.mxu0 0.0
        %4642 = vmatprep.subr.mxu0 0.0
        %4643 = vmatpush1.msra.mxu0 0.0
        %4644 = vmatprep.subr.mxu0 0.0
        %4645 = vmatpush1.msra.mxu0 0.0
        %4646 = vmatprep.subr.mxu0 0.0
        %4647 = vmatpush1.msra.mxu0 0.0
        %4648 = vmatprep.subr.mxu0 0.0
        %4649 = vmatpush1.msra.mxu0 0.0
        %4650 = vmatprep.subr.mxu0 0.0
        %4651 = vmatpush1.msra.mxu0 0.0
        %4652 = vmatprep.subr.mxu0 0.0
        %4653 = vmatpush1.msra.mxu0 0.0
        %4654 = vmatprep.subr.mxu0 0.0
        %4655 = vmatpush1.msra.mxu0 0.0
        %4656 = vmatprep.subr.mxu0 0.0
        %4657 = vmatpush1.msra.mxu0 0.0
        %4658 = vmatprep.subr.mxu0 0.0
        %4659 = vmatpush1.msra.mxu0 0.0
        %4660 = vmatprep.subr.mxu0 0.0
        %4661 = vmatpush1.msra.mxu0 0.0
        %4662 = vmatprep.subr.mxu0 0.0
        %4663 = vmatpush1.msra.mxu0 0.0
        %4664 = vmatprep.subr.mxu0 0.0
        %4665 = vmatpush1.msra.mxu0 0.0
        %4666 = vmatprep.subr.mxu0 0.0
        %4667 = vmatpush1.msra.mxu0 0.0
        %4668 = vmatprep.subr.mxu0 0.0
        %4669 = vmatpush1.msra.mxu0 0.0
        %4670 = vmatprep.subr.mxu0 0.0
        %4671 = vmatpush1.msra.mxu0 0.0
        %4672 = vmatprep.subr.mxu0 0.0
        %4673 = vmatpush1.msra.mxu0 0.0
        %4674 = vmatprep.subr.mxu0 0.0
        %4675 = vmatpush1.msra.mxu0 0.0
        %4676 = vmatprep.subr.mxu0 0.0
        %4677 = vmatpush1.msra.mxu0 0.0
        %4678 = vmatprep.mubr.f32.mxu0 0.0
        %v4679 = vand.u32 %v4326, 4294901760
        %v4680 = vsub.f32 %v4326, %v4679
        %v4681 = vand.u32 %v4680, 4294901760
        %4682 = vmatmul.mubr.f32.gmra.mrb[0].mxu0 %v4681
        %v4683 = vpop.f32.mrb[0].mxu0
        %v4684 = vadd.f32 %v4598, %v4683
        %v4685 = vpop.f32.mrb[0].mxu0
        %v4686 = vadd.f32 %v4600, %v4685
        %4687 = vmatprep.mubr.f32.mxu0 0.0
        %v4688 = vand.u32 %v4329, 4294901760
        %v4689 = vsub.f32 %v4329, %v4688
        %v4690 = vand.u32 %v4689, 4294901760
        %4691 = vmatmul.mubr.f32.gmra.mrb[0].mxu0 %v4690
        %v4692 = vpop.f32.mrb[0].mxu0
        %v4693 = vadd.f32 %v4606, %v4692
        %v4694 = vpop.f32.mrb[0].mxu0
        %v4695 = vadd.f32 %v4608, %v4694
        %4696 = vdwg.mxu0
        %v4697 = vand.u32 %v4313, 4294901760
        %v4698 = vsub.f32 %v4313, %v4697
        %v4699 = vand.u32 %v4698, 4294901760
        %4700 = vmatprep.subr.mxu0 %v4699
        %v4701 = vand.u32 %v4319, 4294901760
        %v4702 = vsub.f32 %v4319, %v4701
        %v4703 = vand.u32 %v4702, 4294901760
        %4704 = vmatpush1.msra.mxu0 %v4703
        %v4705 = vand.u32 %v4317, 4294901760
        %v4706 = vsub.f32 %v4317, %v4705
        %v4707 = vand.u32 %v4706, 4294901760
        %4708 = vmatprep.subr.mxu0 %v4707
        %v4709 = vand.u32 %v4320, 4294901760
        %v4710 = vsub.f32 %v4320, %v4709
        %v4711 = vand.u32 %v4710, 4294901760
        %4712 = vmatpush1.msra.mxu0 %v4711
        %4713 = vmatprep.subr.mxu0 0.0
        %4714 = vmatpush1.msra.mxu0 0.0
        %4715 = vmatprep.subr.mxu0 0.0
        %4716 = vmatpush1.msra.mxu0 0.0
        %4717 = vmatprep.subr.mxu0 0.0
        %4718 = vmatpush1.msra.mxu0 0.0
        %4719 = vmatprep.subr.mxu0 0.0
        %4720 = vmatpush1.msra.mxu0 0.0
        %4721 = vmatprep.subr.mxu0 0.0
        %4722 = vmatpush1.msra.mxu0 0.0
        %4723 = vmatprep.subr.mxu0 0.0
        %4724 = vmatpush1.msra.mxu0 0.0
        %4725 = vmatprep.subr.mxu0 0.0
        %4726 = vmatpush1.msra.mxu0 0.0
        %4727 = vmatprep.subr.mxu0 0.0
        %4728 = vmatpush1.msra.mxu0 0.0
        %4729 = vmatprep.subr.mxu0 0.0
        %4730 = vmatpush1.msra.mxu0 0.0
        %4731 = vmatprep.subr.mxu0 0.0
        %4732 = vmatpush1.msra.mxu0 0.0
        %4733 = vmatprep.subr.mxu0 0.0
        %4734 = vmatpush1.msra.mxu0 0.0
        %4735 = vmatprep.subr.mxu0 0.0
        %4736 = vmatpush1.msra.mxu0 0.0
        %4737 = vmatprep.subr.mxu0 0.0
        %4738 = vmatpush1.msra.mxu0 0.0
        %4739 = vmatprep.subr.mxu0 0.0
        %4740 = vmatpush1.msra.mxu0 0.0
        %4741 = vmatprep.subr.mxu0 0.0
        %4742 = vmatpush1.msra.mxu0 0.0
        %4743 = vmatprep.subr.mxu0 0.0
        %4744 = vmatpush1.msra.mxu0 0.0
        %4745 = vmatprep.subr.mxu0 0.0
        %4746 = vmatpush1.msra.mxu0 0.0
        %4747 = vmatprep.subr.mxu0 0.0
        %4748 = vmatpush1.msra.mxu0 0.0
        %4749 = vmatprep.subr.mxu0 0.0
        %4750 = vmatpush1.msra.mxu0 0.0
        %4751 = vmatprep.subr.mxu0 0.0
        %4752 = vmatpush1.msra.mxu0 0.0
        %4753 = vmatprep.subr.mxu0 0.0
        %4754 = vmatpush1.msra.mxu0 0.0
        %4755 = vmatprep.subr.mxu0 0.0
        %4756 = vmatpush1.msra.mxu0 0.0
        %4757 = vmatprep.subr.mxu0 0.0
        %4758 = vmatpush1.msra.mxu0 0.0
        %4759 = vmatprep.subr.mxu0 0.0
        %4760 = vmatpush1.msra.mxu0 0.0
        %4761 = vmatprep.subr.mxu0 0.0
        %4762 = vmatpush1.msra.mxu0 0.0
        %4763 = vmatprep.subr.mxu0 0.0
        %4764 = vmatpush1.msra.mxu0 0.0
        %4765 = vmatprep.subr.mxu0 0.0
        %4766 = vmatpush1.msra.mxu0 0.0
        %4767 = vmatprep.subr.mxu0 0.0
        %4768 = vmatpush1.msra.mxu0 0.0
        %4769 = vmatprep.subr.mxu0 0.0
        %4770 = vmatpush1.msra.mxu0 0.0
        %4771 = vmatprep.subr.mxu0 0.0
        %4772 = vmatpush1.msra.mxu0 0.0
        %4773 = vmatprep.mubr.f32.mxu0 0.0
        %v4774 = vand.u32 %v4326, 4294901760
        %4775 = vmatmul.mubr.f32.gmra.mrb[0].mxu0 %v4774
        %v4776 = vpop.f32.mrb[0].mxu0
        %v4777 = vadd.f32 %v4684, %v4776
        %v4778 = vpop.f32.mrb[0].mxu0
        %v4779 = vadd.f32 %v4686, %v4778
        %4780 = vmatprep.mubr.f32.mxu0 0.0
        %v4781 = vand.u32 %v4329, 4294901760
        %4782 = vmatmul.mubr.f32.gmra.mrb[0].mxu0 %v4781
        %v4783 = vpop.f32.mrb[0].mxu0
        %v4784 = vadd.f32 %v4693, %v4783
        %v4785 = vpop.f32.mrb[0].mxu0
        %v4786 = vadd.f32 %v4695, %v4785
        %4787 = vdwg.mxu0
        %v4788 = vand.u32 %v4313, 4294901760
        %4789 = vmatprep.subr.mxu0 %v4788
        %v4790 = vand.u32 %v4319, 4294901760
        %4791 = vmatpush1.msra.mxu0 %v4790
        %v4792 = vand.u32 %v4317, 4294901760
        %4793 = vmatprep.subr.mxu0 %v4792
        %v4794 = vand.u32 %v4320, 4294901760
        %4795 = vmatpush1.msra.mxu0 %v4794
        %4796 = vmatprep.subr.mxu0 0.0
        %4797 = vmatpush1.msra.mxu0 0.0
        %4798 = vmatprep.subr.mxu0 0.0
        %4799 = vmatpush1.msra.mxu0 0.0
        %4800 = vmatprep.subr.mxu0 0.0
        %4801 = vmatpush1.msra.mxu0 0.0
        %4802 = vmatprep.subr.mxu0 0.0
        %4803 = vmatpush1.msra.mxu0 0.0
        %4804 = vmatprep.subr.mxu0 0.0
        %4805 = vmatpush1.msra.mxu0 0.0
        %4806 = vmatprep.subr.mxu0 0.0
        %4807 = vmatpush1.msra.mxu0 0.0
        %4808 = vmatprep.subr.mxu0 0.0
        %4809 = vmatpush1.msra.mxu0 0.0
        %4810 = vmatprep.subr.mxu0 0.0
        %4811 = vmatpush1.msra.mxu0 0.0
        %4812 = vmatprep.subr.mxu0 0.0
        %4813 = vmatpush1.msra.mxu0 0.0
        %4814 = vmatprep.subr.mxu0 0.0
        %4815 = vmatpush1.msra.mxu0 0.0
        %4816 = vmatprep.subr.mxu0 0.0
        %4817 = vmatpush1.msra.mxu0 0.0
        %4818 = vmatprep.subr.mxu0 0.0
        %4819 = vmatpush1.msra.mxu0 0.0
        %4820 = vmatprep.subr.mxu0 0.0
        %4821 = vmatpush1.msra.mxu0 0.0
        %4822 = vmatprep.subr.mxu0 0.0
        %4823 = vmatpush1.msra.mxu0 0.0
        %4824 = vmatprep.subr.mxu0 0.0
        %4825 = vmatpush1.msra.mxu0 0.0
        %4826 = vmatprep.subr.mxu0 0.0
        %4827 = vmatpush1.msra.mxu0 0.0
        %4828 = vmatprep.subr.mxu0 0.0
        %4829 = vmatpush1.msra.mxu0 0.0
        %4830 = vmatprep.subr.mxu0 0.0
        %4831 = vmatpush1.msra.mxu0 0.0
        %4832 = vmatprep.subr.mxu0 0.0
        %4833 = vmatpush1.msra.mxu0 0.0
        %4834 = vmatprep.subr.mxu0 0.0
        %4835 = vmatpush1.msra.mxu0 0.0
        %4836 = vmatprep.subr.mxu0 0.0
        %4837 = vmatpush1.msra.mxu0 0.0
        %4838 = vmatprep.subr.mxu0 0.0
        %4839 = vmatpush1.msra.mxu0 0.0
        %4840 = vmatprep.subr.mxu0 0.0
        %4841 = vmatpush1.msra.mxu0 0.0
        %4842 = vmatprep.subr.mxu0 0.0
        %4843 = vmatpush1.msra.mxu0 0.0
        %4844 = vmatprep.subr.mxu0 0.0
        %4845 = vmatpush1.msra.mxu0 0.0
        %4846 = vmatprep.subr.mxu0 0.0
        %4847 = vmatpush1.msra.mxu0 0.0
        %4848 = vmatprep.subr.mxu0 0.0
        %4849 = vmatpush1.msra.mxu0 0.0
        %4850 = vmatprep.subr.mxu0 0.0
        %4851 = vmatpush1.msra.mxu0 0.0
        %4852 = vmatprep.subr.mxu0 0.0
        %4853 = vmatpush1.msra.mxu0 0.0
        %4854 = vmatprep.subr.mxu0 0.0
        %4855 = vmatpush1.msra.mxu0 0.0
        %4856 = vmatprep.mubr.f32.mxu0 0.0
        %v4857 = vand.u32 %v4326, 4294901760
        %4858 = vmatmul.mubr.f32.gmra.mrb[0].mxu0 %v4857
        %v4859 = vpop.f32.mrb[0].mxu0
        %v4860 = vadd.f32 %v4777, %v4859
        %v4861 = vpop.f32.mrb[0].mxu0
        %v4862 = vadd.f32 %v4779, %v4861
        %4863 = vmatprep.mubr.f32.mxu0 0.0
        %v4864 = vand.u32 %v4329, 4294901760
        %4865 = vmatmul.mubr.f32.gmra.mrb[0].mxu0 %v4864
        %v4866 = vpop.f32.mrb[0].mxu0
        %v4867 = vadd.f32 %v4784, %v4866
        %v4868 = vpop.f32.mrb[0].mxu0
        %v4869 = vadd.f32 %v4786, %v4868
        %4870 = vdwg.mxu0
        %v4871 = vadd.f32 %v4303, %v4860
        %v4872 = vadd.f32 %v4304, %v4862
        %v4873 = vadd.f32 %v4305, %v4867
        %v4874 = vadd.f32 %v4306, %v4869
        %4875 = vrot.lane.b32.xlu0 %v1398, 50
        %v4876 = vpop.permute.xlu0 %4875
        %4877 = vrot.lane.b32.xlu0 %v1402, 50
        %v4878 = vpop.permute.xlu0 %4877
        %vm4879 = vcmask 408576
        %v4880 = vsel %vm4879, %v4876, %v4878
        %v4883 = vmul.f32 %v254, %v4876
        %v4884 = vmul.f32 %v257, %v4880
        %v4885 = vmul.f32 %v255, %v4876
        %v4886 = vmul.f32 %v258, %v4880
        %s4887 = scalar_lea.vmem [#allocation5], 128
        %v4888 = vld [vmem:[%s4887] sm:$0xff]
        %v4889 = vld [vmem:[%s4887 + $0x8] sm:$0xff]
        %4894 = vrot.lane.b32.xlu0 %v4883, 78
        %v4895 = vpop.permute.xlu0 %4894
        %4896 = vrot.lane.b32.xlu0 %v4884, 78
        %v4897 = vpop.permute.xlu0 %4896
        %4898 = vrot.lane.b32.xlu0 %v4885, 78
        %v4899 = vpop.permute.xlu0 %4898
        %4900 = vrot.lane.b32.xlu0 %v4886, 78
        %v4901 = vpop.permute.xlu0 %4900
        %vm4902 = vcmask 637952
        %v4903 = vsel %vm4902, %v4895, %v4897
        %v4904 = vsel %vm4902, %v4899, %v4901
        %v4910 = vsel %vm299, %v4888, 0
        %v4913 = vsel %vm299, %v4889, 0
        %v4915 = vand.u32 %v4897, 4294901760
        %4916 = vmatprep.subr.mxu0 %v4915
        %v4917 = vand.u32 %v4903, 4294901760
        %4918 = vmatpush1.msra.mxu0 %v4917
        %v4919 = vand.u32 %v4901, 4294901760
        %4920 = vmatprep.subr.mxu0 %v4919
        %v4921 = vand.u32 %v4904, 4294901760
        %4922 = vmatpush1.msra.mxu0 %v4921
        %4923 = vmatprep.subr.mxu0 0.0
        %4924 = vmatpush1.msra.mxu0 0.0
        %4925 = vmatprep.subr.mxu0 0.0
        %4926 = vmatpush1.msra.mxu0 0.0
        %4927 = vmatprep.subr.mxu0 0.0
        %4928 = vmatpush1.msra.mxu0 0.0
        %4929 = vmatprep.subr.mxu0 0.0
        %4930 = vmatpush1.msra.mxu0 0.0
        %4931 = vmatprep.subr.mxu0 0.0
        %4932 = vmatpush1.msra.mxu0 0.0
        %4933 = vmatprep.subr.mxu0 0.0
        %4934 = vmatpush1.msra.mxu0 0.0
        %4935 = vmatprep.subr.mxu0 0.0
        %4936 = vmatpush1.msra.mxu0 0.0
        %4937 = vmatprep.subr.mxu0 0.0
        %4938 = vmatpush1.msra.mxu0 0.0
        %4939 = vmatprep.subr.mxu0 0.0
        %4940 = vmatpush1.msra.mxu0 0.0
        %4941 = vmatprep.subr.mxu0 0.0
        %4942 = vmatpush1.msra.mxu0 0.0
        %4943 = vmatprep.subr.mxu0 0.0
        %4944 = vmatpush1.msra.mxu0 0.0
        %4945 = vmatprep.subr.mxu0 0.0
        %4946 = vmatpush1.msra.mxu0 0.0
        %4947 = vmatprep.subr.mxu0 0.0
        %4948 = vmatpush1.msra.mxu0 0.0
        %4949 = vmatprep.subr.mxu0 0.0
        %4950 = vmatpush1.msra.mxu0 0.0
        %4951 = vmatprep.subr.mxu0 0.0
        %4952 = vmatpush1.msra.mxu0 0.0
        %4953 = vmatprep.subr.mxu0 0.0
        %4954 = vmatpush1.msra.mxu0 0.0
        %4955 = vmatprep.subr.mxu0 0.0
        %4956 = vmatpush1.msra.mxu0 0.0
        %4957 = vmatprep.subr.mxu0 0.0
        %4958 = vmatpush1.msra.mxu0 0.0
        %4959 = vmatprep.subr.mxu0 0.0
        %4960 = vmatpush1.msra.mxu0 0.0
        %4961 = vmatprep.subr.mxu0 0.0
        %4962 = vmatpush1.msra.mxu0 0.0
        %4963 = vmatprep.subr.mxu0 0.0
        %4964 = vmatpush1.msra.mxu0 0.0
        %4965 = vmatprep.subr.mxu0 0.0
        %4966 = vmatpush1.msra.mxu0 0.0
        %4967 = vmatprep.subr.mxu0 0.0
        %4968 = vmatpush1.msra.mxu0 0.0
        %4969 = vmatprep.subr.mxu0 0.0
        %4970 = vmatpush1.msra.mxu0 0.0
        %4971 = vmatprep.subr.mxu0 0.0
        %4972 = vmatpush1.msra.mxu0 0.0
        %4973 = vmatprep.subr.mxu0 0.0
        %4974 = vmatpush1.msra.mxu0 0.0
        %4975 = vmatprep.subr.mxu0 0.0
        %4976 = vmatpush1.msra.mxu0 0.0
        %4977 = vmatprep.subr.mxu0 0.0
        %4978 = vmatpush1.msra.mxu0 0.0
        %4979 = vmatprep.subr.mxu0 0.0
        %4980 = vmatpush1.msra.mxu0 0.0
        %4981 = vmatprep.subr.mxu0 0.0
        %4982 = vmatpush1.msra.mxu0 0.0
        %4983 = vmatprep.mubr.f32.mxu0 0.0
        %v4984 = vand.u32 %v4910, 4294901760
        %v4985 = vsub.f32 %v4910, %v4984
        %v4986 = vand.u32 %v4985, 4294901760
        %v4987 = vsub.f32 %v4985, %v4986
        %v4988 = vand.u32 %v4987, 4294901760
        %4989 = vmatmul.mubr.f32.gmra.mrb[0].mxu0 %v4988
        %v4990 = vpop.f32.mrb[0].mxu0
        %v4991 = vadd.f32 0.0, %v4990
        %v4992 = vpop.f32.mrb[0].mxu0
        %v4993 = vadd.f32 0.0, %v4992
        %4994 = vmatprep.mubr.f32.mxu0 0.0
        %v4995 = vand.u32 %v4913, 4294901760
        %v4996 = vsub.f32 %v4913, %v4995
        %v4997 = vand.u32 %v4996, 4294901760
        %v4998 = vsub.f32 %v4996, %v4997
        %v4999 = vand.u32 %v4998, 4294901760
        %5000 = vmatmul.mubr.f32.gmra.mrb[0].mxu0 %v4999
        %v5001 = vpop.f32.mrb[0].mxu0
        %v5002 = vadd.f32 0.0, %v5001
        %v5003 = vpop.f32.mrb[0].mxu0
        %v5004 = vadd.f32 0.0, %v5003
        %5005 = vdwg.mxu0
        %v5006 = vand.u32 %v4897, 4294901760
        %v5007 = vsub.f32 %v4897, %v5006
        %v5008 = vand.u32 %v5007, 4294901760
        %v5009 = vsub.f32 %v5007, %v5008
        %v5010 = vand.u32 %v5009, 4294901760
        %5011 = vmatprep.subr.mxu0 %v5010
        %v5012 = vand.u32 %v4903, 4294901760
        %v5013 = vsub.f32 %v4903, %v5012
        %v5014 = vand.u32 %v5013, 4294901760
        %v5015 = vsub.f32 %v5013, %v5014
        %v5016 = vand.u32 %v5015, 4294901760
        %5017 = vmatpush1.msra.mxu0 %v5016
        %v5018 = vand.u32 %v4901, 4294901760
        %v5019 = vsub.f32 %v4901, %v5018
        %v5020 = vand.u32 %v5019, 4294901760
        %v5021 = vsub.f32 %v5019, %v5020
        %v5022 = vand.u32 %v5021, 4294901760
        %5023 = vmatprep.subr.mxu0 %v5022
        %v5024 = vand.u32 %v4904, 4294901760
        %v5025 = vsub.f32 %v4904, %v5024
        %v5026 = vand.u32 %v5025, 4294901760
        %v5027 = vsub.f32 %v5025, %v5026
        %v5028 = vand.u32 %v5027, 4294901760
        %5029 = vmatpush1.msra.mxu0 %v5028
        %5030 = vmatprep.subr.mxu0 0.0
        %5031 = vmatpush1.msra.mxu0 0.0
        %5032 = vmatprep.subr.mxu0 0.0
        %5033 = vmatpush1.msra.mxu0 0.0
        %5034 = vmatprep.subr.mxu0 0.0
        %5035 = vmatpush1.msra.mxu0 0.0
        %5036 = vmatprep.subr.mxu0 0.0
        %5037 = vmatpush1.msra.mxu0 0.0
        %5038 = vmatprep.subr.mxu0 0.0
        %5039 = vmatpush1.msra.mxu0 0.0
        %5040 = vmatprep.subr.mxu0 0.0
        %5041 = vmatpush1.msra.mxu0 0.0
        %5042 = vmatprep.subr.mxu0 0.0
        %5043 = vmatpush1.msra.mxu0 0.0
        %5044 = vmatprep.subr.mxu0 0.0
        %5045 = vmatpush1.msra.mxu0 0.0
        %5046 = vmatprep.subr.mxu0 0.0
        %5047 = vmatpush1.msra.mxu0 0.0
        %5048 = vmatprep.subr.mxu0 0.0
        %5049 = vmatpush1.msra.mxu0 0.0
        %5050 = vmatprep.subr.mxu0 0.0
        %5051 = vmatpush1.msra.mxu0 0.0
        %5052 = vmatprep.subr.mxu0 0.0
        %5053 = vmatpush1.msra.mxu0 0.0
        %5054 = vmatprep.subr.mxu0 0.0
        %5055 = vmatpush1.msra.mxu0 0.0
        %5056 = vmatprep.subr.mxu0 0.0
        %5057 = vmatpush1.msra.mxu0 0.0
        %5058 = vmatprep.subr.mxu0 0.0
        %5059 = vmatpush1.msra.mxu0 0.0
        %5060 = vmatprep.subr.mxu0 0.0
        %5061 = vmatpush1.msra.mxu0 0.0
        %5062 = vmatprep.subr.mxu0 0.0
        %5063 = vmatpush1.msra.mxu0 0.0
        %5064 = vmatprep.subr.mxu0 0.0
        %5065 = vmatpush1.msra.mxu0 0.0
        %5066 = vmatprep.subr.mxu0 0.0
        %5067 = vmatpush1.msra.mxu0 0.0
        %5068 = vmatprep.subr.mxu0 0.0
        %5069 = vmatpush1.msra.mxu0 0.0
        %5070 = vmatprep.subr.mxu0 0.0
        %5071 = vmatpush1.msra.mxu0 0.0
        %5072 = vmatprep.subr.mxu0 0.0
        %5073 = vmatpush1.msra.mxu0 0.0
        %5074 = vmatprep.subr.mxu0 0.0
        %5075 = vmatpush1.msra.mxu0 0.0
        %5076 = vmatprep.subr.mxu0 0.0
        %5077 = vmatpush1.msra.mxu0 0.0
        %5078 = vmatprep.subr.mxu0 0.0
        %5079 = vmatpush1.msra.mxu0 0.0
        %5080 = vmatprep.subr.mxu0 0.0
        %5081 = vmatpush1.msra.mxu0 0.0
        %5082 = vmatprep.subr.mxu0 0.0
        %5083 = vmatpush1.msra.mxu0 0.0
        %5084 = vmatprep.subr.mxu0 0.0
        %5085 = vmatpush1.msra.mxu0 0.0
        %5086 = vmatprep.subr.mxu0 0.0
        %5087 = vmatpush1.msra.mxu0 0.0
        %5088 = vmatprep.subr.mxu0 0.0
        %5089 = vmatpush1.msra.mxu0 0.0
        %5090 = vmatprep.mubr.f32.mxu0 0.0
        %v5091 = vand.u32 %v4910, 4294901760
        %5092 = vmatmul.mubr.f32.gmra.mrb[0].mxu0 %v5091
        %v5093 = vpop.f32.mrb[0].mxu0
        %v5094 = vadd.f32 %v4991, %v5093
        %v5095 = vpop.f32.mrb[0].mxu0
        %v5096 = vadd.f32 %v4993, %v5095
        %5097 = vmatprep.mubr.f32.mxu0 0.0
        %v5098 = vand.u32 %v4913, 4294901760
        %5099 = vmatmul.mubr.f32.gmra.mrb[0].mxu0 %v5098
        %v5100 = vpop.f32.mrb[0].mxu0
        %v5101 = vadd.f32 %v5002, %v5100
        %v5102 = vpop.f32.mrb[0].mxu0
        %v5103 = vadd.f32 %v5004, %v5102
        %5104 = vdwg.mxu0
        %v5105 = vand.u32 %v4897, 4294901760
        %v5106 = vsub.f32 %v4897, %v5105
        %5107 = vmatprep.subr.mxu0 %v5106
        %v5108 = vand.u32 %v4903, 4294901760
        %v5109 = vsub.f32 %v4903, %v5108
        %5110 = vmatpush1.msra.mxu0 %v5109
        %v5111 = vand.u32 %v4901, 4294901760
        %v5112 = vsub.f32 %v4901, %v5111
        %5113 = vmatprep.subr.mxu0 %v5112
        %v5114 = vand.u32 %v4904, 4294901760
        %v5115 = vsub.f32 %v4904, %v5114
        %5116 = vmatpush1.msra.mxu0 %v5115
        %5117 = vmatprep.subr.mxu0 0.0
        %5118 = vmatpush1.msra.mxu0 0.0
        %5119 = vmatprep.subr.mxu0 0.0
        %5120 = vmatpush1.msra.mxu0 0.0
        %5121 = vmatprep.subr.mxu0 0.0
        %5122 = vmatpush1.msra.mxu0 0.0
        %5123 = vmatprep.subr.mxu0 0.0
        %5124 = vmatpush1.msra.mxu0 0.0
        %5125 = vmatprep.subr.mxu0 0.0
        %5126 = vmatpush1.msra.mxu0 0.0
        %5127 = vmatprep.subr.mxu0 0.0
        %5128 = vmatpush1.msra.mxu0 0.0
        %5129 = vmatprep.subr.mxu0 0.0
        %5130 = vmatpush1.msra.mxu0 0.0
        %5131 = vmatprep.subr.mxu0 0.0
        %5132 = vmatpush1.msra.mxu0 0.0
        %5133 = vmatprep.subr.mxu0 0.0
        %5134 = vmatpush1.msra.mxu0 0.0
        %5135 = vmatprep.subr.mxu0 0.0
        %5136 = vmatpush1.msra.mxu0 0.0
        %5137 = vmatprep.subr.mxu0 0.0
        %5138 = vmatpush1.msra.mxu0 0.0
        %5139 = vmatprep.subr.mxu0 0.0
        %5140 = vmatpush1.msra.mxu0 0.0
        %5141 = vmatprep.subr.mxu0 0.0
        %5142 = vmatpush1.msra.mxu0 0.0
        %5143 = vmatprep.subr.mxu0 0.0
        %5144 = vmatpush1.msra.mxu0 0.0
        %5145 = vmatprep.subr.mxu0 0.0
        %5146 = vmatpush1.msra.mxu0 0.0
        %5147 = vmatprep.subr.mxu0 0.0
        %5148 = vmatpush1.msra.mxu0 0.0
        %5149 = vmatprep.subr.mxu0 0.0
        %5150 = vmatpush1.msra.mxu0 0.0
        %5151 = vmatprep.subr.mxu0 0.0
        %5152 = vmatpush1.msra.mxu0 0.0
        %5153 = vmatprep.subr.mxu0 0.0
        %5154 = vmatpush1.msra.mxu0 0.0
        %5155 = vmatprep.subr.mxu0 0.0
        %5156 = vmatpush1.msra.mxu0 0.0
        %5157 = vmatprep.subr.mxu0 0.0
        %5158 = vmatpush1.msra.mxu0 0.0
        %5159 = vmatprep.subr.mxu0 0.0
        %5160 = vmatpush1.msra.mxu0 0.0
        %5161 = vmatprep.subr.mxu0 0.0
        %5162 = vmatpush1.msra.mxu0 0.0
        %5163 = vmatprep.subr.mxu0 0.0
        %5164 = vmatpush1.msra.mxu0 0.0
        %5165 = vmatprep.subr.mxu0 0.0
        %5166 = vmatpush1.msra.mxu0 0.0
        %5167 = vmatprep.subr.mxu0 0.0
        %5168 = vmatpush1.msra.mxu0 0.0
        %5169 = vmatprep.subr.mxu0 0.0
        %5170 = vmatpush1.msra.mxu0 0.0
        %5171 = vmatprep.subr.mxu0 0.0
        %5172 = vmatpush1.msra.mxu0 0.0
        %5173 = vmatprep.subr.mxu0 0.0
        %5174 = vmatpush1.msra.mxu0 0.0
        %5175 = vmatprep.subr.mxu0 0.0
        %5176 = vmatpush1.msra.mxu0 0.0
        %5177 = vmatprep.mubr.f32.mxu0 0.0
        %v5178 = vand.u32 %v4910, 4294901760
        %v5179 = vsub.f32 %v4910, %v5178
        %5180 = vmatmul.mubr.f32.gmra.mrb[0].mxu0 %v5179
        %v5181 = vpop.f32.mrb[0].mxu0
        %v5182 = vadd.f32 %v5094, %v5181
        %v5183 = vpop.f32.mrb[0].mxu0
        %v5184 = vadd.f32 %v5096, %v5183
        %5185 = vmatprep.mubr.f32.mxu0 0.0
        %v5186 = vand.u32 %v4913, 4294901760
        %v5187 = vsub.f32 %v4913, %v5186
        %5188 = vmatmul.mubr.f32.gmra.mrb[0].mxu0 %v5187
        %v5189 = vpop.f32.mrb[0].mxu0
        %v5190 = vadd.f32 %v5101, %v5189
        %v5191 = vpop.f32.mrb[0].mxu0
        %v5192 = vadd.f32 %v5103, %v5191
        %5193 = vdwg.mxu0
        %v5194 = vand.u32 %v4897, 4294901760
        %5195 = vmatprep.subr.mxu0 %v5194
        %v5196 = vand.u32 %v4903, 4294901760
        %5197 = vmatpush1.msra.mxu0 %v5196
        %v5198 = vand.u32 %v4901, 4294901760
        %5199 = vmatprep.subr.mxu0 %v5198
        %v5200 = vand.u32 %v4904, 4294901760
        %5201 = vmatpush1.msra.mxu0 %v5200
        %5202 = vmatprep.subr.mxu0 0.0
        %5203 = vmatpush1.msra.mxu0 0.0
        %5204 = vmatprep.subr.mxu0 0.0
        %5205 = vmatpush1.msra.mxu0 0.0
        %5206 = vmatprep.subr.mxu0 0.0
        %5207 = vmatpush1.msra.mxu0 0.0
        %5208 = vmatprep.subr.mxu0 0.0
        %5209 = vmatpush1.msra.mxu0 0.0
        %5210 = vmatprep.subr.mxu0 0.0
        %5211 = vmatpush1.msra.mxu0 0.0
        %5212 = vmatprep.subr.mxu0 0.0
        %5213 = vmatpush1.msra.mxu0 0.0
        %5214 = vmatprep.subr.mxu0 0.0
        %5215 = vmatpush1.msra.mxu0 0.0
        %5216 = vmatprep.subr.mxu0 0.0
        %5217 = vmatpush1.msra.mxu0 0.0
        %5218 = vmatprep.subr.mxu0 0.0
        %5219 = vmatpush1.msra.mxu0 0.0
        %5220 = vmatprep.subr.mxu0 0.0
        %5221 = vmatpush1.msra.mxu0 0.0
        %5222 = vmatprep.subr.mxu0 0.0
        %5223 = vmatpush1.msra.mxu0 0.0
        %5224 = vmatprep.subr.mxu0 0.0
        %5225 = vmatpush1.msra.mxu0 0.0
        %5226 = vmatprep.subr.mxu0 0.0
        %5227 = vmatpush1.msra.mxu0 0.0
        %5228 = vmatprep.subr.mxu0 0.0
        %5229 = vmatpush1.msra.mxu0 0.0
        %5230 = vmatprep.subr.mxu0 0.0
        %5231 = vmatpush1.msra.mxu0 0.0
        %5232 = vmatprep.subr.mxu0 0.0
        %5233 = vmatpush1.msra.mxu0 0.0
        %5234 = vmatprep.subr.mxu0 0.0
        %5235 = vmatpush1.msra.mxu0 0.0
        %5236 = vmatprep.subr.mxu0 0.0
        %5237 = vmatpush1.msra.mxu0 0.0
        %5238 = vmatprep.subr.mxu0 0.0
        %5239 = vmatpush1.msra.mxu0 0.0
        %5240 = vmatprep.subr.mxu0 0.0
        %5241 = vmatpush1.msra.mxu0 0.0
        %5242 = vmatprep.subr.mxu0 0.0
        %5243 = vmatpush1.msra.mxu0 0.0
        %5244 = vmatprep.subr.mxu0 0.0
        %5245 = vmatpush1.msra.mxu0 0.0
        %5246 = vmatprep.subr.mxu0 0.0
        %5247 = vmatpush1.msra.mxu0 0.0
        %5248 = vmatprep.subr.mxu0 0.0
        %5249 = vmatpush1.msra.mxu0 0.0
        %5250 = vmatprep.subr.mxu0 0.0
        %5251 = vmatpush1.msra.mxu0 0.0
        %5252 = vmatprep.subr.mxu0 0.0
        %5253 = vmatpush1.msra.mxu0 0.0
        %5254 = vmatprep.subr.mxu0 0.0
        %5255 = vmatpush1.msra.mxu0 0.0
        %5256 = vmatprep.subr.mxu0 0.0
        %5257 = vmatpush1.msra.mxu0 0.0
        %5258 = vmatprep.subr.mxu0 0.0
        %5259 = vmatpush1.msra.mxu0 0.0
        %5260 = vmatprep.subr.mxu0 0.0
        %5261 = vmatpush1.msra.mxu0 0.0
        %5262 = vmatprep.mubr.f32.mxu0 0.0
        %v5263 = vand.u32 %v4910, 4294901760
        %v5264 = vsub.f32 %v4910, %v5263
        %v5265 = vand.u32 %v5264, 4294901760
        %5266 = vmatmul.mubr.f32.gmra.mrb[0].mxu0 %v5265
        %v5267 = vpop.f32.mrb[0].mxu0
        %v5268 = vadd.f32 %v5182, %v5267
        %v5269 = vpop.f32.mrb[0].mxu0
        %v5270 = vadd.f32 %v5184, %v5269
        %5271 = vmatprep.mubr.f32.mxu0 0.0
        %v5272 = vand.u32 %v4913, 4294901760
        %v5273 = vsub.f32 %v4913, %v5272
        %v5274 = vand.u32 %v5273, 4294901760
        %5275 = vmatmul.mubr.f32.gmra.mrb[0].mxu0 %v5274
        %v5276 = vpop.f32.mrb[0].mxu0
        %v5277 = vadd.f32 %v5190, %v5276
        %v5278 = vpop.f32.mrb[0].mxu0
        %v5279 = vadd.f32 %v5192, %v5278
        %5280 = vdwg.mxu0
        %v5281 = vand.u32 %v4897, 4294901760
        %v5282 = vsub.f32 %v4897, %v5281
        %v5283 = vand.u32 %v5282, 4294901760
        %5284 = vmatprep.subr.mxu0 %v5283
        %v5285 = vand.u32 %v4903, 4294901760
        %v5286 = vsub.f32 %v4903, %v5285
        %v5287 = vand.u32 %v5286, 4294901760
        %5288 = vmatpush1.msra.mxu0 %v5287
        %v5289 = vand.u32 %v4901, 4294901760
        %v5290 = vsub.f32 %v4901, %v5289
        %v5291 = vand.u32 %v5290, 4294901760
        %5292 = vmatprep.subr.mxu0 %v5291
        %v5293 = vand.u32 %v4904, 4294901760
        %v5294 = vsub.f32 %v4904, %v5293
        %v5295 = vand.u32 %v5294, 4294901760
        %5296 = vmatpush1.msra.mxu0 %v5295
        %5297 = vmatprep.subr.mxu0 0.0
        %5298 = vmatpush1.msra.mxu0 0.0
        %5299 = vmatprep.subr.mxu0 0.0
        %5300 = vmatpush1.msra.mxu0 0.0
        %5301 = vmatprep.subr.mxu0 0.0
        %5302 = vmatpush1.msra.mxu0 0.0
        %5303 = vmatprep.subr.mxu0 0.0
        %5304 = vmatpush1.msra.mxu0 0.0
        %5305 = vmatprep.subr.mxu0 0.0
        %5306 = vmatpush1.msra.mxu0 0.0
        %5307 = vmatprep.subr.mxu0 0.0
        %5308 = vmatpush1.msra.mxu0 0.0
        %5309 = vmatprep.subr.mxu0 0.0
        %5310 = vmatpush1.msra.mxu0 0.0
        %5311 = vmatprep.subr.mxu0 0.0
        %5312 = vmatpush1.msra.mxu0 0.0
        %5313 = vmatprep.subr.mxu0 0.0
        %5314 = vmatpush1.msra.mxu0 0.0
        %5315 = vmatprep.subr.mxu0 0.0
        %5316 = vmatpush1.msra.mxu0 0.0
        %5317 = vmatprep.subr.mxu0 0.0
        %5318 = vmatpush1.msra.mxu0 0.0
        %5319 = vmatprep.subr.mxu0 0.0
        %5320 = vmatpush1.msra.mxu0 0.0
        %5321 = vmatprep.subr.mxu0 0.0
        %5322 = vmatpush1.msra.mxu0 0.0
        %5323 = vmatprep.subr.mxu0 0.0
        %5324 = vmatpush1.msra.mxu0 0.0
        %5325 = vmatprep.subr.mxu0 0.0
        %5326 = vmatpush1.msra.mxu0 0.0
        %5327 = vmatprep.subr.mxu0 0.0
        %5328 = vmatpush1.msra.mxu0 0.0
        %5329 = vmatprep.subr.mxu0 0.0
        %5330 = vmatpush1.msra.mxu0 0.0
        %5331 = vmatprep.subr.mxu0 0.0
        %5332 = vmatpush1.msra.mxu0 0.0
        %5333 = vmatprep.subr.mxu0 0.0
        %5334 = vmatpush1.msra.mxu0 0.0
        %5335 = vmatprep.subr.mxu0 0.0
        %5336 = vmatpush1.msra.mxu0 0.0
        %5337 = vmatprep.subr.mxu0 0.0
        %5338 = vmatpush1.msra.mxu0 0.0
        %5339 = vmatprep.subr.mxu0 0.0
        %5340 = vmatpush1.msra.mxu0 0.0
        %5341 = vmatprep.subr.mxu0 0.0
        %5342 = vmatpush1.msra.mxu0 0.0
        %5343 = vmatprep.subr.mxu0 0.0
        %5344 = vmatpush1.msra.mxu0 0.0
        %5345 = vmatprep.subr.mxu0 0.0
        %5346 = vmatpush1.msra.mxu0 0.0
        %5347 = vmatprep.subr.mxu0 0.0
        %5348 = vmatpush1.msra.mxu0 0.0
        %5349 = vmatprep.subr.mxu0 0.0
        %5350 = vmatpush1.msra.mxu0 0.0
        %5351 = vmatprep.subr.mxu0 0.0
        %5352 = vmatpush1.msra.mxu0 0.0
        %5353 = vmatprep.subr.mxu0 0.0
        %5354 = vmatpush1.msra.mxu0 0.0
        %5355 = vmatprep.subr.mxu0 0.0
        %5356 = vmatpush1.msra.mxu0 0.0
        %5357 = vmatprep.mubr.f32.mxu0 0.0
        %v5358 = vand.u32 %v4910, 4294901760
        %5359 = vmatmul.mubr.f32.gmra.mrb[0].mxu0 %v5358
        %v5360 = vpop.f32.mrb[0].mxu0
        %v5361 = vadd.f32 %v5268, %v5360
        %v5362 = vpop.f32.mrb[0].mxu0
        %v5363 = vadd.f32 %v5270, %v5362
        %5364 = vmatprep.mubr.f32.mxu0 0.0
        %v5365 = vand.u32 %v4913, 4294901760
        %5366 = vmatmul.mubr.f32.gmra.mrb[0].mxu0 %v5365
        %v5367 = vpop.f32.mrb[0].mxu0
        %v5368 = vadd.f32 %v5277, %v5367
        %v5369 = vpop.f32.mrb[0].mxu0
        %v5370 = vadd.f32 %v5279, %v5369
        %5371 = vdwg.mxu0
        %v5372 = vand.u32 %v4897, 4294901760
        %5373 = vmatprep.subr.mxu0 %v5372
        %v5374 = vand.u32 %v4903, 4294901760
        %5375 = vmatpush1.msra.mxu0 %v5374
        %v5376 = vand.u32 %v4901, 4294901760
        %5377 = vmatprep.subr.mxu0 %v5376
        %v5378 = vand.u32 %v4904, 4294901760
        %5379 = vmatpush1.msra.mxu0 %v5378
        %5380 = vmatprep.subr.mxu0 0.0
        %5381 = vmatpush1.msra.mxu0 0.0
        %5382 = vmatprep.subr.mxu0 0.0
        %5383 = vmatpush1.msra.mxu0 0.0
        %5384 = vmatprep.subr.mxu0 0.0
        %5385 = vmatpush1.msra.mxu0 0.0
        %5386 = vmatprep.subr.mxu0 0.0
        %5387 = vmatpush1.msra.mxu0 0.0
        %5388 = vmatprep.subr.mxu0 0.0
        %5389 = vmatpush1.msra.mxu0 0.0
        %5390 = vmatprep.subr.mxu0 0.0
        %5391 = vmatpush1.msra.mxu0 0.0
        %5392 = vmatprep.subr.mxu0 0.0
        %5393 = vmatpush1.msra.mxu0 0.0
        %5394 = vmatprep.subr.mxu0 0.0
        %5395 = vmatpush1.msra.mxu0 0.0
        %5396 = vmatprep.subr.mxu0 0.0
        %5397 = vmatpush1.msra.mxu0 0.0
        %5398 = vmatprep.subr.mxu0 0.0
        %5399 = vmatpush1.msra.mxu0 0.0
        %5400 = vmatprep.subr.mxu0 0.0
        %5401 = vmatpush1.msra.mxu0 0.0
        %5402 = vmatprep.subr.mxu0 0.0
        %5403 = vmatpush1.msra.mxu0 0.0
        %5404 = vmatprep.subr.mxu0 0.0
        %5405 = vmatpush1.msra.mxu0 0.0
        %5406 = vmatprep.subr.mxu0 0.0
        %5407 = vmatpush1.msra.mxu0 0.0
        %5408 = vmatprep.subr.mxu0 0.0
        %5409 = vmatpush1.msra.mxu0 0.0
        %5410 = vmatprep.subr.mxu0 0.0
        %5411 = vmatpush1.msra.mxu0 0.0
        %5412 = vmatprep.subr.mxu0 0.0
        %5413 = vmatpush1.msra.mxu0 0.0
        %5414 = vmatprep.subr.mxu0 0.0
        %5415 = vmatpush1.msra.mxu0 0.0
        %5416 = vmatprep.subr.mxu0 0.0
        %5417 = vmatpush1.msra.mxu0 0.0
        %5418 = vmatprep.subr.mxu0 0.0
        %5419 = vmatpush1.msra.mxu0 0.0
        %5420 = vmatprep.subr.mxu0 0.0
        %5421 = vmatpush1.msra.mxu0 0.0
        %5422 = vmatprep.subr.mxu0 0.0
        %5423 = vmatpush1.msra.mxu0 0.0
        %5424 = vmatprep.subr.mxu0 0.0
        %5425 = vmatpush1.msra.mxu0 0.0
        %5426 = vmatprep.subr.mxu0 0.0
        %5427 = vmatpush1.msra.mxu0 0.0
        %5428 = vmatprep.subr.mxu0 0.0
        %5429 = vmatpush1.msra.mxu0 0.0
        %5430 = vmatprep.subr.mxu0 0.0
        %5431 = vmatpush1.msra.mxu0 0.0
        %5432 = vmatprep.subr.mxu0 0.0
        %5433 = vmatpush1.msra.mxu0 0.0
        %5434 = vmatprep.subr.mxu0 0.0
        %5435 = vmatpush1.msra.mxu0 0.0
        %5436 = vmatprep.subr.mxu0 0.0
        %5437 = vmatpush1.msra.mxu0 0.0
        %5438 = vmatprep.subr.mxu0 0.0
        %5439 = vmatpush1.msra.mxu0 0.0
        %5440 = vmatprep.mubr.f32.mxu0 0.0
        %v5441 = vand.u32 %v4910, 4294901760
        %5442 = vmatmul.mubr.f32.gmra.mrb[0].mxu0 %v5441
        %v5443 = vpop.f32.mrb[0].mxu0
        %v5444 = vadd.f32 %v5361, %v5443
        %v5445 = vpop.f32.mrb[0].mxu0
        %v5446 = vadd.f32 %v5363, %v5445
        %5447 = vmatprep.mubr.f32.mxu0 0.0
        %v5448 = vand.u32 %v4913, 4294901760
        %5449 = vmatmul.mubr.f32.gmra.mrb[0].mxu0 %v5448
        %v5450 = vpop.f32.mrb[0].mxu0
        %v5451 = vadd.f32 %v5368, %v5450
        %v5452 = vpop.f32.mrb[0].mxu0
        %v5453 = vadd.f32 %v5370, %v5452
        %5454 = vdwg.mxu0
        %v5455 = vadd.f32 %v4871, %v5444
        %v5456 = vadd.f32 %v4872, %v5446
        %v5457 = vadd.f32 %v4873, %v5451
        %v5458 = vadd.f32 %v4874, %v5453
        %v5459 = vld [vmem:[%s2] sm:$0xff]
        %v5460 = vld [vmem:[%s2 + $0x8] sm:$0xff]
        %5462 = vset.pattern.permute.xlu0 0
        %5463 = vperm.xlu0 %5462, %v5459
        %v5464 = vpop.permute.xlu0 %5463
        %5467 = vset.pattern.permute.xlu0 0
        %5468 = vperm.xlu0 %5467, %v5460
        %v5469 = vpop.permute.xlu0 %5468
        %v5471 = vadd.f32 %v5455, %v5464
        %v5472 = vadd.f32 %v5456, %v5464
        %v5473 = vadd.f32 %v5457, %v5469
        %v5474 = vadd.f32 %v5458, %v5469
        %5475 = vst [vmem:[%s230] sm:$0xff] %v5471
        %vm5476 = vcmask 523264
        %5477 = vst.msk [vmem:[%s230 + $0x8] sm:$0xff] %vm5476, %v5472
        %5478 = vst [vmem:[%s230 + $0x10] sm:$0xff] %v5473
        %5479 = vst.msk [vmem:[%s230 + $0x18] sm:$0xff] %vm5476, %v5474
        %s5480 = sand.u32 %s119, 1
        %s5481 = scalar_lea.sflag [#allocation4], %s5480
        %s5482 = sand.u32 %s119, 1
        %s5483 = smul.addr %s5482, 32
        %s5484 = scalar_lea.vmem [#allocation7], %s5483
        // Predicated region
        $region45: #{tpu_custom_call.1} parent=35 // pred_check
          %p5485 = pneg %p129
        $region46: #{tpu_custom_call.1} parent=35 // pred_check_branch
          %5487 = sbr.rel (%p5485) target = $region48
        $region47: #{tpu_custom_call.1} parent=35 // pred_region
          %s5489 = ssub.s32 512, 512
          %5490 = vsyncadd %s5481, %s5489
          %s5491 = smul.addr %s22, 4
          %s5492 = smul.addr %s5491, 128
          %s5493 = scalar_lea.hbm %s4, %s5492
          %s5494 = sshll.u32 %s5484, 4
          %s5495 = int_to_ptr.vmem [resolvable:$true] %s5494
          %5500 = dma.vmem_to_hbm [thread:$0]  %s5495, 512, %s5493, %s5481, 256, 256, 16
        $region48: #{tpu_custom_call.1} parent=35 // pred_fallthru
          _
      $region36: #{tpu_custom_call.1} parent=5 // pred_fallthru
        _
      %p5501 = scmp.le.s32.totalorder 2, %s17
      // Predicated region
      $region49: #{tpu_custom_call.1} parent=5 // pred_check
        %p5502 = pneg %p5501
      $region50: #{tpu_custom_call.1} parent=5 // pred_check_branch
        %5504 = sbr.rel (%p5502) target = $region52
      $region51: #{tpu_custom_call.1} parent=5 // pred_region
        %s5505 = ssub.s32 %s17, 2
        // Predicated region
        $region53: #{tpu_custom_call.1} parent=51 // pred_check
          %p5506 = pneg %p135
        $region54: #{tpu_custom_call.1} parent=51 // pred_check_branch
          %5508 = sbr.rel (%p5506) target = $region56
        $region55: #{tpu_custom_call.1} parent=51 // pred_region
          %s5509 = sand.u32 %s120, 1
          %s5510 = scalar_lea.sflag [#allocation4], %s5509
          %s5511 = sand.u32 %s120, 1
          %s5512 = smul.addr %s5511, 32
          %s5513 = scalar_lea.vmem [#allocation7], %s5512
          %5514 = dma.done %s5510, 512
        $region56: #{tpu_custom_call.1} parent=51 // pred_fallthru
          _
      $region52: #{tpu_custom_call.1} parent=5 // pred_fallthru
        _
    $region6: #{tpu_custom_call.1} parent=1 // loop_footer
      %s21 = sadd.s32 1, %s17
    $region7: #{tpu_custom_call.1} parent=1 // loop_footer_branch
      %16 = sbr.rel target = $region3
    $region8: #{tpu_custom_call.1} parent=1 // loop_exit
      _
    %5515 = vsyncpa [#allocation3], 1
    %s5516 = scalar_lea.sflag [#allocation3], 1
    %5517 = vsyncpa %s5516, 1
    %5518 = vsyncpa [#allocation6], 1
    %5519 = vsyncpa [#allocation4], 1
    %s5520 = scalar_lea.sflag [#allocation4], 1
    %5521 = vsyncpa %s5520, 1

</llo_original>
